<compile_context>
chip_gen: v5e
topology: v5e:2x2
jax: 0.10.0
libtpu: 0.0.40
codegen_flags: <defaults>
</compile_context>

<pallas_src>
import math

import jax
import jax.numpy as jnp
from jax.experimental import pallas as pl
from jax.experimental.pallas import tpu as pltpu


def _pick_tile(n, cap):
    """Largest divisor of n that is <= cap (>=1)."""
    t = max(1, min(cap, n))
    while n % t:
        t -= 1
    return t


def _conv3x3_bias_relu_kernel(xp_ref, w_ref, b_ref, o_ref):
    """3x3 'same' conv + bias + ReLU for one (batch, row-tile) block, NHWC.

    xp_ref: (1, H+2, W+2, Cin)  bf16, full padded image (resident per batch)
    w_ref:  (3, 3, Cin, Cout)   bf16
    b_ref:  (1, Cout)           f32
    o_ref:  (1, TH, W, Cout)    bf16
    """
    r = pl.program_id(1)
    _, th, wout, _ = o_ref.shape
    row0 = r * th
    kh, kw = w_ref.shape[0], w_ref.shape[1]

    # Hoist the (tiny) weight taps and bias out of the row loop.
    w_taps = [[w_ref[dy, dx] for dx in range(kw)] for dy in range(kh)]
    bias = b_ref[...]                                        # (1, Cout)

    for i in range(th):                                      # unrolled row loop
        acc = None
        for dy in range(kh):
            for dx in range(kw):
                patch = xp_ref[0, row0 + i + dy, pl.ds(dx, wout), :]   # (W, Cin)
                t = jnp.dot(patch, w_taps[dy][dx],
                            preferred_element_type=jnp.float32)
                acc = t if acc is None else acc + t
        o_ref[0, i] = jnp.maximum(acc + bias, 0.0).astype(o_ref.dtype)


def _conv3x3_pool_shortcut_residual_kernel(xp_ref, h1p_ref, w2_ref, b2_ref,
                                           wsc_ref, bsc_ref, pool_ref, o_ref):
    """Fused: conv2(3x3) -> 2x2 avg-pool (+ folded main_branch_weight)
              + shortcut (2x2 avg-pool -> 1x1 conv)  + residual add.   NHWC.

    xp_ref:   (1, H+2, W+2, Cin)   bf16   padded input image
    h1p_ref:  (1, H+2, W+2, Cmid)  bf16   padded ReLU(conv1) activations
    w2_ref:   (3, 3, Cmid, Cout)   bf16   conv2 weight * main_branch_weight
    b2_ref:   (1, Cout)            f32    conv2 bias  * main_branch_weight
    wsc_ref:  (Cin, Cout)          bf16   1x1 shortcut weight
    bsc_ref:  (1, Cout)            f32    shortcut bias
    pool_ref: (W/2, W)             f32    avg-pool matrix (0.25 at [v,2v],[v,2v+1])
    o_ref:    (1, TP, W/2, Cout)   f32
    """
    r = pl.program_id(1)
    _, tp, _, _ = o_ref.shape
    row0 = r * tp
    kh, kw = w2_ref.shape[0], w2_ref.shape[1]
    wfull = pool_ref.shape[1]

    w_taps = [[w2_ref[dy, dx] for dx in range(kw)] for dy in range(kh)]
    wsc = wsc_ref[...].astype(jnp.float32)                    # (Cin, Cout)
    b2 = b2_ref[...]
    bsc = bsc_ref[...]
    pool = pool_ref[...]                                      # (W/2, W)

    for i in range(tp):                                       # unrolled pooled rows
        u = row0 + i

        # --- main branch: conv2 rows 2u and 2u+1 (full width), summed, then
        #     pooled along W via the pool matmul -> 2x2 average pooling. ---
        acc = None
        for a in range(2):
            for dy in range(kh):
                for dx in range(kw):
                    patch = h1p_ref[0, 2 * u + a + dy, pl.ds(dx, wfull), :]
                    t = jnp.dot(patch, w_taps[dy][dx],
                                preferred_element_type=jnp.float32)
                    acc = t if acc is None else acc + t       # (W, Cout) f32
        main = jnp.dot(pool, acc, preferred_element_type=jnp.float32) + b2

        # --- shortcut: 2x2 avg-pool of x, then 1x1 conv + bias. ---
        xs = (xp_ref[0, 2 * u + 1, pl.ds(1, wfull), :].astype(jnp.float32) +
              xp_ref[0, 2 * u + 2, pl.ds(1, wfull), :].astype(jnp.float32))
        xpool = jnp.dot(pool, xs, preferred_element_type=jnp.float32)   # (W/2, Cin)
        sc = jnp.dot(xpool, wsc, preferred_element_type=jnp.float32) + bsc

        o_ref[0, i] = (sc + main).astype(o_ref.dtype)


def optimized_residual_block(x, w1, b1, w2, b2, wsc, bsc, main_branch_weight,
                             *, row_tile=8, compute_dtype=jnp.bfloat16):
    """Forward pass of OptimizedResidualBlock (use_sn=False).

    x: (N, Cin, H, W) f32    w1: (Cout, Cin, 3, 3)   w2: (Cout, Cout, 3, 3)
    wsc: (Cout, Cin, 1, 1)   biases: (Cout,)         main_branch_weight: scalar
    Returns (N, Cout, H//2, W//2) f32.
    """
    N, Cin, H, W = x.shape
    Cout = w1.shape[0]
    assert w1.shape == (Cout, Cin, 3, 3), w1.shape
    assert w2.shape == (Cout, Cout, 3, 3), w2.shape
    assert wsc.shape == (Cout, Cin, 1, 1), wsc.shape
    assert H % 2 == 0 and W % 2 == 0
    H2, W2 = H // 2, W // 2

    alpha = jnp.asarray(main_branch_weight, jnp.float32)

    th = _pick_tile(H, row_tile)            # conv1 output rows per grid step
    tp = _pick_tile(H2, max(1, row_tile // 2))  # pooled output rows per grid step

    cparams = pltpu.CompilerParams(
        dimension_semantics=("parallel", "arbitrary"),
        vmem_limit_bytes=32 * 1024 * 1024,
    )

    # --- layout plumbing (plain JAX, done once): NCHW -> NHWC + zero pad + bf16 ---
    x_nhwc = jnp.transpose(x, (0, 2, 3, 1))
    xp = jnp.pad(x_nhwc, ((0, 0), (1, 1), (1, 1), (0, 0))).astype(compute_dtype)

    w1t = jnp.transpose(w1, (2, 3, 1, 0)).astype(compute_dtype)       # (3,3,Cin,Cout)
    b1t = b1.reshape(1, Cout).astype(jnp.float32)

    # --- kernel 1: conv1 + bias + ReLU ---
    h1 = pl.pallas_call(
        _conv3x3_bias_relu_kernel,
        out_shape=jax.ShapeDtypeStruct((N, H, W, Cout), compute_dtype),
        grid=(N, H // th),
        in_specs=[
            pl.BlockSpec((1, H + 2, W + 2, Cin), lambda n, r: (n, 0, 0, 0)),
            pl.BlockSpec((3, 3, Cin, Cout), lambda n, r: (0, 0, 0, 0)),
            pl.BlockSpec((1, Cout), lambda n, r: (0, 0)),
        ],
        out_specs=pl.BlockSpec((1, th, W, Cout), lambda n, r: (n, r, 0, 0)),
        compiler_params=cparams,
    )(xp, w1t, b1t)

    # TODO(synk): this zero-pad of h1 is one extra HBM pass; it could be removed
    # by having kernel 1 write into a pre-padded buffer via input_output_aliases.
    h1p = jnp.pad(h1, ((0, 0), (1, 1), (1, 1), (0, 0)))

    # Fold main_branch_weight into the conv2 weight/bias (pooling is linear),
    # so the kernel never rescales anything per grid step.
    w2t = (alpha * jnp.transpose(w2, (2, 3, 1, 0))).astype(compute_dtype)  # (3,3,Cout,Cout)
    b2t = (alpha * b2).reshape(1, Cout).astype(jnp.float32)
    wsct = wsc.reshape(Cout, Cin).T.astype(compute_dtype)                  # (Cin, Cout)
    bsct = bsc.reshape(1, Cout).astype(jnp.float32)

    # 2x2 average pooling along W expressed as a small matmul (no strided /
    # reshape ops needed inside the kernel); row pairs are summed in-kernel.
    rows = jnp.arange(W2)
    pool_mat = jnp.zeros((W2, W), jnp.float32)
    pool_mat = pool_mat.at[rows, 2 * rows].set(0.25)
    pool_mat = pool_mat.at[rows, 2 * rows + 1].set(0.25)

    # --- kernel 2: conv2 + pool + alpha (folded) + shortcut + residual add ---
    out_nhwc = pl.pallas_call(
        _conv3x3_pool_shortcut_residual_kernel,
        out_shape=jax.ShapeDtypeStruct((N, H2, W2, Cout), jnp.float32),
        grid=(N, H2 // tp),
        in_specs=[
            pl.BlockSpec((1, H + 2, W + 2, Cin), lambda n, r: (n, 0, 0, 0)),
            pl.BlockSpec((1, H + 2, W + 2, Cout), lambda n, r: (n, 0, 0, 0)),
            pl.BlockSpec((3, 3, Cout, Cout), lambda n, r: (0, 0, 0, 0)),
            pl.BlockSpec((1, Cout), lambda n, r: (0, 0)),
            pl.BlockSpec((Cin, Cout), lambda n, r: (0, 0)),
            pl.BlockSpec((1, Cout), lambda n, r: (0, 0)),
            pl.BlockSpec((W2, W), lambda n, r: (0, 0)),
        ],
        out_specs=pl.BlockSpec((1, tp, W2, Cout), lambda n, r: (n, r, 0, 0)),
        compiler_params=cparams,
    )(xp, h1p, w2t, b2t, wsct, bsct, pool_mat)

    return jnp.transpose(out_nhwc, (0, 3, 1, 2))              # NHWC -> NCHW


def _reference(x, w1, b1, w2, b2, wsc, bsc, alpha):
    """Pure-JAX f32 reference of the PyTorch forward."""
    def conv(v, w, pad):
        return jax.lax.conv_general_dilated(
            v, w, window_strides=(1, 1),
            padding=((pad, pad), (pad, pad)),
            dimension_numbers=("NCHW", "OIHW", "NCHW"))

    def pool(v):
        n, c, h, w_ = v.shape
        return v.reshape(n, c, h // 2, 2, w_ // 2, 2).mean(axis=(3, 5))

    h = jax.nn.relu(conv(x, w1, 1) + b1.reshape(1, -1, 1, 1))
    main = pool(conv(h, w2, 1) + b2.reshape(1, -1, 1, 1))
    sc = conv(pool(x), wsc, 0) + bsc.reshape(1, -1, 1, 1)
    return sc + alpha * main


if __name__ == "__main__":
    key = jax.random.PRNGKey(0)
    ks = jax.random.split(key, 4)

    N, Cin, H, W = 2, 4, 16, 16
    Cout, K = 8, 3

    def conv_params(k, cout, cin, ksize):
        fan_in = cin * ksize * ksize
        bound = 1.0 / math.sqrt(fan_in)
        kw_, kb_ = jax.random.split(k)
        w = jax.random.uniform(kw_, (cout, cin, ksize, ksize), jnp.float32,
                               minval=-bound, maxval=bound)
        b = jax.random.uniform(kb_, (cout,), jnp.float32,
                               minval=-bound, maxval=bound)
        return w, b

    x = jax.random.normal(ks[0], (N, Cin, H, W), dtype=jnp.float32)
    w1, b1 = conv_params(ks[1], Cout, Cin, K)
    w2, b2 = conv_params(ks[2], Cout, Cout, K)
    wsc, bsc = conv_params(ks[3], Cout, Cin, 1)
    # main_branch_weight is a learnable scalar (initialized to 0.0 in the module);
    # use a non-zero value so the main branch actually contributes to the check.
    alpha = jnp.float32(0.7)

    out = optimized_residual_block(x, w1, b1, w2, b2, wsc, bsc, alpha)
    out = jax.block_until_ready(out)

    ref = _reference(x, w1, b1, w2, b2, wsc, bsc, alpha)
    assert out.shape == (N, Cout, H // 2, W // 2), out.shape
    # bf16 operands vs f32 reference -> loosened tolerance.
    assert jnp.allclose(out, ref, atol=2e-2, rtol=2e-2), \
        float(jnp.max(jnp.abs(out - ref)))

    print("KERNEL_OK")
</pallas_src>

<mosaic_0001>
module attributes {stable_mosaic.version = 11 : i64} {
  func.func @_conv3x3_bias_relu_kernel(%arg0: i32, %arg1: i32, %arg2: memref<1x18x18x4xbf16, #tpu.memory_space<vmem>>, %arg3: memref<3x3x4x8xbf16, #tpu.memory_space<vmem>>, %arg4: memref<1x8xf32, #tpu.memory_space<vmem>>, %arg5: memref<1x8x16x8xbf16, #tpu.memory_space<vmem>>) attributes {dimension_semantics = [#tpu.dimension_semantics<parallel>, #tpu.dimension_semantics<arbitrary>], iteration_bounds = array<i64: 2, 2>, scalar_prefetch = 0 : i64, scratch_operands = 0 : i64, tpu.core_type = #tpu.core_type<tc>, window_params = [{transform_indices = @transform_0, window_bounds = array<i64: 1, 18, 18, 4>}, {pipeline_mode = #tpu.pipeline_mode<synchronous>, transform_indices = @transform_1, window_bounds = array<i64: 3, 3, 4, 8>}, {pipeline_mode = #tpu.pipeline_mode<synchronous>, transform_indices = @transform_2, window_bounds = array<i64: 1, 8>}, {transform_indices = @transform_3, window_bounds = array<i64: 1, 8, 16, 8>}]} {
    %c8_i32 = arith.constant 8 : i32
    %0 = arith.muli %arg1, %c8_i32 : i32
    %c0 = arith.constant 0 : index
    %c0_0 = arith.constant 0 : index
    %c0_1 = arith.constant 0 : index
    %c0_2 = arith.constant 0 : index
    %1 = vector.load %arg3[%c0, %c0_0, %c0_1, %c0_2] : memref<3x3x4x8xbf16, #tpu.memory_space<vmem>>, vector<1x1x4x8xbf16>
    %2 = vector.shape_cast %1 : vector<1x1x4x8xbf16> to vector<4x8xbf16>
    %c0_3 = arith.constant 0 : index
    %c1 = arith.constant 1 : index
    %c0_4 = arith.constant 0 : index
    %c0_5 = arith.constant 0 : index
    %3 = vector.load %arg3[%c0_3, %c1, %c0_4, %c0_5] : memref<3x3x4x8xbf16, #tpu.memory_space<vmem>>, vector<1x1x4x8xbf16>
    %4 = vector.shape_cast %3 : vector<1x1x4x8xbf16> to vector<4x8xbf16>
    %c0_6 = arith.constant 0 : index
    %c2 = arith.constant 2 : index
    %c0_7 = arith.constant 0 : index
    %c0_8 = arith.constant 0 : index
    %5 = vector.load %arg3[%c0_6, %c2, %c0_7, %c0_8] : memref<3x3x4x8xbf16, #tpu.memory_space<vmem>>, vector<1x1x4x8xbf16>
    %6 = vector.shape_cast %5 : vector<1x1x4x8xbf16> to vector<4x8xbf16>
    %c1_9 = arith.constant 1 : index
    %c0_10 = arith.constant 0 : index
    %c0_11 = arith.constant 0 : index
    %c0_12 = arith.constant 0 : index
    %7 = vector.load %arg3[%c1_9, %c0_10, %c0_11, %c0_12] : memref<3x3x4x8xbf16, #tpu.memory_space<vmem>>, vector<1x1x4x8xbf16>
    %8 = vector.shape_cast %7 : vector<1x1x4x8xbf16> to vector<4x8xbf16>
    %c1_13 = arith.constant 1 : index
    %c1_14 = arith.constant 1 : index
    %c0_15 = arith.constant 0 : index
    %c0_16 = arith.constant 0 : index
    %9 = vector.load %arg3[%c1_13, %c1_14, %c0_15, %c0_16] : memref<3x3x4x8xbf16, #tpu.memory_space<vmem>>, vector<1x1x4x8xbf16>
    %10 = vector.shape_cast %9 : vector<1x1x4x8xbf16> to vector<4x8xbf16>
    %c1_17 = arith.constant 1 : index
    %c2_18 = arith.constant 2 : index
    %c0_19 = arith.constant 0 : index
    %c0_20 = arith.constant 0 : index
    %11 = vector.load %arg3[%c1_17, %c2_18, %c0_19, %c0_20] : memref<3x3x4x8xbf16, #tpu.memory_space<vmem>>, vector<1x1x4x8xbf16>
    %12 = vector.shape_cast %11 : vector<1x1x4x8xbf16> to vector<4x8xbf16>
    %c2_21 = arith.constant 2 : index
    %c0_22 = arith.constant 0 : index
    %c0_23 = arith.constant 0 : index
    %c0_24 = arith.constant 0 : index
    %13 = vector.load %arg3[%c2_21, %c0_22, %c0_23, %c0_24] : memref<3x3x4x8xbf16, #tpu.memory_space<vmem>>, vector<1x1x4x8xbf16>
    %14 = vector.shape_cast %13 : vector<1x1x4x8xbf16> to vector<4x8xbf16>
    %c2_25 = arith.constant 2 : index
    %c1_26 = arith.constant 1 : index
    %c0_27 = arith.constant 0 : index
    %c0_28 = arith.constant 0 : index
    %15 = vector.load %arg3[%c2_25, %c1_26, %c0_27, %c0_28] : memref<3x3x4x8xbf16, #tpu.memory_space<vmem>>, vector<1x1x4x8xbf16>
    %16 = vector.shape_cast %15 : vector<1x1x4x8xbf16> to vector<4x8xbf16>
    %c2_29 = arith.constant 2 : index
    %c2_30 = arith.constant 2 : index
    %c0_31 = arith.constant 0 : index
    %c0_32 = arith.constant 0 : index
    %17 = vector.load %arg3[%c2_29, %c2_30, %c0_31, %c0_32] : memref<3x3x4x8xbf16, #tpu.memory_space<vmem>>, vector<1x1x4x8xbf16>
    %18 = vector.shape_cast %17 : vector<1x1x4x8xbf16> to vector<4x8xbf16>
    %c0_33 = arith.constant 0 : index
    %c0_34 = arith.constant 0 : index
    %19 = vector.load %arg4[%c0_33, %c0_34] : memref<1x8xf32, #tpu.memory_space<vmem>>, vector<1x8xf32>
    %c0_i32 = arith.constant 0 : i32
    %20 = arith.addi %0, %c0_i32 : i32
    %c0_i32_35 = arith.constant 0 : i32
    %21 = arith.addi %20, %c0_i32_35 : i32
    %c0_36 = arith.constant 0 : index
    %22 = arith.index_cast %21 : i32 to index
    %c0_37 = arith.constant 0 : index
    %c0_38 = arith.constant 0 : index
    %23 = vector.load %arg2[%c0_36, %22, %c0_37, %c0_38] : memref<1x18x18x4xbf16, #tpu.memory_space<vmem>>, vector<1x1x16x4xbf16>
    %24 = vector.shape_cast %23 : vector<1x1x16x4xbf16> to vector<16x4xbf16>
    %cst = arith.constant dense<0.000000e+00> : vector<16x8xf32>
    %25 = tpu.matmul %24, %2, %cst {dimension_numbers = #tpu.dot_dimension_numbers<[1], [0], [0], [1], [0, 0, 1, 1], [], []>} : vector<16x4xbf16>, vector<4x8xbf16>, vector<16x8xf32> -> vector<16x8xf32>
    %c0_i32_39 = arith.constant 0 : i32
    %26 = arith.addi %0, %c0_i32_39 : i32
    %c0_i32_40 = arith.constant 0 : i32
    %27 = arith.addi %26, %c0_i32_40 : i32
    %c0_41 = arith.constant 0 : index
    %28 = arith.index_cast %27 : i32 to index
    %c1_42 = arith.constant 1 : index
    %c0_43 = arith.constant 0 : index
    %29 = vector.load %arg2[%c0_41, %28, %c1_42, %c0_43] : memref<1x18x18x4xbf16, #tpu.memory_space<vmem>>, vector<1x1x16x4xbf16>
    %30 = vector.shape_cast %29 : vector<1x1x16x4xbf16> to vector<16x4xbf16>
    %cst_44 = arith.constant dense<0.000000e+00> : vector<16x8xf32>
    %31 = tpu.matmul %30, %4, %cst_44 {dimension_numbers = #tpu.dot_dimension_numbers<[1], [0], [0], [1], [0, 0, 1, 1], [], []>} : vector<16x4xbf16>, vector<4x8xbf16>, vector<16x8xf32> -> vector<16x8xf32>
    %32 = arith.addf %25, %31 : vector<16x8xf32>
    %c0_i32_45 = arith.constant 0 : i32
    %33 = arith.addi %0, %c0_i32_45 : i32
    %c0_i32_46 = arith.constant 0 : i32
    %34 = arith.addi %33, %c0_i32_46 : i32
    %c0_47 = arith.constant 0 : index
    %35 = arith.index_cast %34 : i32 to index
    %c2_48 = arith.constant 2 : index
    %c0_49 = arith.constant 0 : index
    %36 = vector.load %arg2[%c0_47, %35, %c2_48, %c0_49] : memref<1x18x18x4xbf16, #tpu.memory_space<vmem>>, vector<1x1x16x4xbf16>
    %37 = vector.shape_cast %36 : vector<1x1x16x4xbf16> to vector<16x4xbf16>
    %cst_50 = arith.constant dense<0.000000e+00> : vector<16x8xf32>
    %38 = tpu.matmul %37, %6, %cst_50 {dimension_numbers = #tpu.dot_dimension_numbers<[1], [0], [0], [1], [0, 0, 1, 1], [], []>} : vector<16x4xbf16>, vector<4x8xbf16>, vector<16x8xf32> -> vector<16x8xf32>
    %39 = arith.addf %32, %38 : vector<16x8xf32>
    %c0_i32_51 = arith.constant 0 : i32
    %40 = arith.addi %0, %c0_i32_51 : i32
    %c1_i32 = arith.constant 1 : i32
    %41 = arith.addi %40, %c1_i32 : i32
    %c0_52 = arith.constant 0 : index
    %42 = arith.index_cast %41 : i32 to index
    %c0_53 = arith.constant 0 : index
    %c0_54 = arith.constant 0 : index
    %43 = vector.load %arg2[%c0_52, %42, %c0_53, %c0_54] : memref<1x18x18x4xbf16, #tpu.memory_space<vmem>>, vector<1x1x16x4xbf16>
    %44 = vector.shape_cast %43 : vector<1x1x16x4xbf16> to vector<16x4xbf16>
    %cst_55 = arith.constant dense<0.000000e+00> : vector<16x8xf32>
    %45 = tpu.matmul %44, %8, %cst_55 {dimension_numbers = #tpu.dot_dimension_numbers<[1], [0], [0], [1], [0, 0, 1, 1], [], []>} : vector<16x4xbf16>, vector<4x8xbf16>, vector<16x8xf32> -> vector<16x8xf32>
    %46 = arith.addf %39, %45 : vector<16x8xf32>
    %c0_i32_56 = arith.constant 0 : i32
    %47 = arith.addi %0, %c0_i32_56 : i32
    %c1_i32_57 = arith.constant 1 : i32
    %48 = arith.addi %47, %c1_i32_57 : i32
    %c0_58 = arith.constant 0 : index
    %49 = arith.index_cast %48 : i32 to index
    %c1_59 = arith.constant 1 : index
    %c0_60 = arith.constant 0 : index
    %50 = vector.load %arg2[%c0_58, %49, %c1_59, %c0_60] : memref<1x18x18x4xbf16, #tpu.memory_space<vmem>>, vector<1x1x16x4xbf16>
    %51 = vector.shape_cast %50 : vector<1x1x16x4xbf16> to vector<16x4xbf16>
    %cst_61 = arith.constant dense<0.000000e+00> : vector<16x8xf32>
    %52 = tpu.matmul %51, %10, %cst_61 {dimension_numbers = #tpu.dot_dimension_numbers<[1], [0], [0], [1], [0, 0, 1, 1], [], []>} : vector<16x4xbf16>, vector<4x8xbf16>, vector<16x8xf32> -> vector<16x8xf32>
    %53 = arith.addf %46, %52 : vector<16x8xf32>
    %c0_i32_62 = arith.constant 0 : i32
    %54 = arith.addi %0, %c0_i32_62 : i32
    %c1_i32_63 = arith.constant 1 : i32
    %55 = arith.addi %54, %c1_i32_63 : i32
    %c0_64 = arith.constant 0 : index
    %56 = arith.index_cast %55 : i32 to index
    %c2_65 = arith.constant 2 : index
    %c0_66 = arith.constant 0 : index
    %57 = vector.load %arg2[%c0_64, %56, %c2_65, %c0_66] : memref<1x18x18x4xbf16, #tpu.memory_space<vmem>>, vector<1x1x16x4xbf16>
    %58 = vector.shape_cast %57 : vector<1x1x16x4xbf16> to vector<16x4xbf16>
    %cst_67 = arith.constant dense<0.000000e+00> : vector<16x8xf32>
    %59 = tpu.matmul %58, %12, %cst_67 {dimension_numbers = #tpu.dot_dimension_numbers<[1], [0], [0], [1], [0, 0, 1, 1], [], []>} : vector<16x4xbf16>, vector<4x8xbf16>, vector<16x8xf32> -> vector<16x8xf32>
    %60 = arith.addf %53, %59 : vector<16x8xf32>
    %c0_i32_68 = arith.constant 0 : i32
    %61 = arith.addi %0, %c0_i32_68 : i32
    %c2_i32 = arith.constant 2 : i32
    %62 = arith.addi %61, %c2_i32 : i32
    %c0_69 = arith.constant 0 : index
    %63 = arith.index_cast %62 : i32 to index
    %c0_70 = arith.constant 0 : index
    %c0_71 = arith.constant 0 : index
    %64 = vector.load %arg2[%c0_69, %63, %c0_70, %c0_71] : memref<1x18x18x4xbf16, #tpu.memory_space<vmem>>, vector<1x1x16x4xbf16>
    %65 = vector.shape_cast %64 : vector<1x1x16x4xbf16> to vector<16x4xbf16>
    %cst_72 = arith.constant dense<0.000000e+00> : vector<16x8xf32>
    %66 = tpu.matmul %65, %14, %cst_72 {dimension_numbers = #tpu.dot_dimension_numbers<[1], [0], [0], [1], [0, 0, 1, 1], [], []>} : vector<16x4xbf16>, vector<4x8xbf16>, vector<16x8xf32> -> vector<16x8xf32>
    %67 = arith.addf %60, %66 : vector<16x8xf32>
    %c0_i32_73 = arith.constant 0 : i32
    %68 = arith.addi %0, %c0_i32_73 : i32
    %c2_i32_74 = arith.constant 2 : i32
    %69 = arith.addi %68, %c2_i32_74 : i32
    %c0_75 = arith.constant 0 : index
    %70 = arith.index_cast %69 : i32 to index
    %c1_76 = arith.constant 1 : index
    %c0_77 = arith.constant 0 : index
    %71 = vector.load %arg2[%c0_75, %70, %c1_76, %c0_77] : memref<1x18x18x4xbf16, #tpu.memory_space<vmem>>, vector<1x1x16x4xbf16>
    %72 = vector.shape_cast %71 : vector<1x1x16x4xbf16> to vector<16x4xbf16>
    %cst_78 = arith.constant dense<0.000000e+00> : vector<16x8xf32>
    %73 = tpu.matmul %72, %16, %cst_78 {dimension_numbers = #tpu.dot_dimension_numbers<[1], [0], [0], [1], [0, 0, 1, 1], [], []>} : vector<16x4xbf16>, vector<4x8xbf16>, vector<16x8xf32> -> vector<16x8xf32>
    %74 = arith.addf %67, %73 : vector<16x8xf32>
    %c0_i32_79 = arith.constant 0 : i32
    %75 = arith.addi %0, %c0_i32_79 : i32
    %c2_i32_80 = arith.constant 2 : i32
    %76 = arith.addi %75, %c2_i32_80 : i32
    %c0_81 = arith.constant 0 : index
    %77 = arith.index_cast %76 : i32 to index
    %c2_82 = arith.constant 2 : index
    %c0_83 = arith.constant 0 : index
    %78 = vector.load %arg2[%c0_81, %77, %c2_82, %c0_83] : memref<1x18x18x4xbf16, #tpu.memory_space<vmem>>, vector<1x1x16x4xbf16>
    %79 = vector.shape_cast %78 : vector<1x1x16x4xbf16> to vector<16x4xbf16>
    %cst_84 = arith.constant dense<0.000000e+00> : vector<16x8xf32>
    %80 = tpu.matmul %79, %18, %cst_84 {dimension_numbers = #tpu.dot_dimension_numbers<[1], [0], [0], [1], [0, 0, 1, 1], [], []>} : vector<16x4xbf16>, vector<4x8xbf16>, vector<16x8xf32> -> vector<16x8xf32>
    %81 = arith.addf %74, %80 : vector<16x8xf32>
    %82 = vector.broadcast %19 : vector<1x8xf32> to vector<16x8xf32>
    %83 = arith.addf %81, %82 : vector<16x8xf32>
    %cst_85 = arith.constant 0.000000e+00 : f32
    %84 = vector.broadcast %cst_85 : f32 to vector<16x8xf32>
    %85 = arith.maximumf %83, %84 : vector<16x8xf32>
    %86 = arith.truncf %85 : vector<16x8xf32> to vector<16x8xbf16>
    %c0_86 = arith.constant 0 : index
    %c0_87 = arith.constant 0 : index
    %c0_88 = arith.constant 0 : index
    %c0_89 = arith.constant 0 : index
    %87 = vector.load %arg5[%c0_86, %c0_87, %c0_88, %c0_89] : memref<1x8x16x8xbf16, #tpu.memory_space<vmem>>, vector<1x1x16x8xbf16>
    %88 = vector.shape_cast %87 : vector<1x1x16x8xbf16> to vector<16x8xbf16>
    %89 = vector.shape_cast %86 : vector<16x8xbf16> to vector<1x1x16x8xbf16>
    tpu.vector_store %arg5[%c0_86, %c0_87, %c0_88, %c0_89], %89 {strides = array<i32>} : memref<1x8x16x8xbf16, #tpu.memory_space<vmem>>, vector<1x1x16x8xbf16>,
    %c1_i32_90 = arith.constant 1 : i32
    %90 = arith.addi %0, %c1_i32_90 : i32
    %c0_i32_91 = arith.constant 0 : i32
    %91 = arith.addi %90, %c0_i32_91 : i32
    %c0_92 = arith.constant 0 : index
    %92 = arith.index_cast %91 : i32 to index
    %c0_93 = arith.constant 0 : index
    %c0_94 = arith.constant 0 : index
    %93 = vector.load %arg2[%c0_92, %92, %c0_93, %c0_94] : memref<1x18x18x4xbf16, #tpu.memory_space<vmem>>, vector<1x1x16x4xbf16>
    %94 = vector.shape_cast %93 : vector<1x1x16x4xbf16> to vector<16x4xbf16>
    %cst_95 = arith.constant dense<0.000000e+00> : vector<16x8xf32>
    %95 = tpu.matmul %94, %2, %cst_95 {dimension_numbers = #tpu.dot_dimension_numbers<[1], [0], [0], [1], [0, 0, 1, 1], [], []>} : vector<16x4xbf16>, vector<4x8xbf16>, vector<16x8xf32> -> vector<16x8xf32>
    %c1_i32_96 = arith.constant 1 : i32
    %96 = arith.addi %0, %c1_i32_96 : i32
    %c0_i32_97 = arith.constant 0 : i32
    %97 = arith.addi %96, %c0_i32_97 : i32
    %c0_98 = arith.constant 0 : index
    %98 = arith.index_cast %97 : i32 to index
    %c1_99 = arith.constant 1 : index
    %c0_100 = arith.constant 0 : index
    %99 = vector.load %arg2[%c0_98, %98, %c1_99, %c0_100] : memref<1x18x18x4xbf16, #tpu.memory_space<vmem>>, vector<1x1x16x4xbf16>
    %100 = vector.shape_cast %99 : vector<1x1x16x4xbf16> to vector<16x4xbf16>
    %cst_101 = arith.constant dense<0.000000e+00> : vector<16x8xf32>
    %101 = tpu.matmul %100, %4, %cst_101 {dimension_numbers = #tpu.dot_dimension_numbers<[1], [0], [0], [1], [0, 0, 1, 1], [], []>} : vector<16x4xbf16>, vector<4x8xbf16>, vector<16x8xf32> -> vector<16x8xf32>
    %102 = arith.addf %95, %101 : vector<16x8xf32>
    %c1_i32_102 = arith.constant 1 : i32
    %103 = arith.addi %0, %c1_i32_102 : i32
    %c0_i32_103 = arith.constant 0 : i32
    %104 = arith.addi %103, %c0_i32_103 : i32
    %c0_104 = arith.constant 0 : index
    %105 = arith.index_cast %104 : i32 to index
    %c2_105 = arith.constant 2 : index
    %c0_106 = arith.constant 0 : index
    %106 = vector.load %arg2[%c0_104, %105, %c2_105, %c0_106] : memref<1x18x18x4xbf16, #tpu.memory_space<vmem>>, vector<1x1x16x4xbf16>
    %107 = vector.shape_cast %106 : vector<1x1x16x4xbf16> to vector<16x4xbf16>
    %cst_107 = arith.constant dense<0.000000e+00> : vector<16x8xf32>
    %108 = tpu.matmul %107, %6, %cst_107 {dimension_numbers = #tpu.dot_dimension_numbers<[1], [0], [0], [1], [0, 0, 1, 1], [], []>} : vector<16x4xbf16>, vector<4x8xbf16>, vector<16x8xf32> -> vector<16x8xf32>
    %109 = arith.addf %102, %108 : vector<16x8xf32>
    %c1_i32_108 = arith.constant 1 : i32
    %110 = arith.addi %0, %c1_i32_108 : i32
    %c1_i32_109 = arith.constant 1 : i32
    %111 = arith.addi %110, %c1_i32_109 : i32
    %c0_110 = arith.constant 0 : index
    %112 = arith.index_cast %111 : i32 to index
    %c0_111 = arith.constant 0 : index
    %c0_112 = arith.constant 0 : index
    %113 = vector.load %arg2[%c0_110, %112, %c0_111, %c0_112] : memref<1x18x18x4xbf16, #tpu.memory_space<vmem>>, vector<1x1x16x4xbf16>
    %114 = vector.shape_cast %113 : vector<1x1x16x4xbf16> to vector<16x4xbf16>
    %cst_113 = arith.constant dense<0.000000e+00> : vector<16x8xf32>
    %115 = tpu.matmul %114, %8, %cst_113 {dimension_numbers = #tpu.dot_dimension_numbers<[1], [0], [0], [1], [0, 0, 1, 1], [], []>} : vector<16x4xbf16>, vector<4x8xbf16>, vector<16x8xf32> -> vector<16x8xf32>
    %116 = arith.addf %109, %115 : vector<16x8xf32>
    %c1_i32_114 = arith.constant 1 : i32
    %117 = arith.addi %0, %c1_i32_114 : i32
    %c1_i32_115 = arith.constant 1 : i32
    %118 = arith.addi %117, %c1_i32_115 : i32
    %c0_116 = arith.constant 0 : index
    %119 = arith.index_cast %118 : i32 to index
    %c1_117 = arith.constant 1 : index
    %c0_118 = arith.constant 0 : index
    %120 = vector.load %arg2[%c0_116, %119, %c1_117, %c0_118] : memref<1x18x18x4xbf16, #tpu.memory_space<vmem>>, vector<1x1x16x4xbf16>
    %121 = vector.shape_cast %120 : vector<1x1x16x4xbf16> to vector<16x4xbf16>
    %cst_119 = arith.constant dense<0.000000e+00> : vector<16x8xf32>
    %122 = tpu.matmul %121, %10, %cst_119 {dimension_numbers = #tpu.dot_dimension_numbers<[1], [0], [0], [1], [0, 0, 1, 1], [], []>} : vector<16x4xbf16>, vector<4x8xbf16>, vector<16x8xf32> -> vector<16x8xf32>
    %123 = arith.addf %116, %122 : vector<16x8xf32>
    %c1_i32_120 = arith.constant 1 : i32
    %124 = arith.addi %0, %c1_i32_120 : i32
    %c1_i32_121 = arith.constant 1 : i32
    %125 = arith.addi %124, %c1_i32_121 : i32
    %c0_122 = arith.constant 0 : index
    %126 = arith.index_cast %125 : i32 to index
    %c2_123 = arith.constant 2 : index
    %c0_124 = arith.constant 0 : index
    %127 = vector.load %arg2[%c0_122, %126, %c2_123, %c0_124] : memref<1x18x18x4xbf16, #tpu.memory_space<vmem>>, vector<1x1x16x4xbf16>
    %128 = vector.shape_cast %127 : vector<1x1x16x4xbf16> to vector<16x4xbf16>
    %cst_125 = arith.constant dense<0.000000e+00> : vector<16x8xf32>
    %129 = tpu.matmul %128, %12, %cst_125 {dimension_numbers = #tpu.dot_dimension_numbers<[1], [0], [0], [1], [0, 0, 1, 1], [], []>} : vector<16x4xbf16>, vector<4x8xbf16>, vector<16x8xf32> -> vector<16x8xf32>
    %130 = arith.addf %123, %129 : vector<16x8xf32>
    %c1_i32_126 = arith.constant 1 : i32
    %131 = arith.addi %0, %c1_i32_126 : i32
    %c2_i32_127 = arith.constant 2 : i32
    %132 = arith.addi %131, %c2_i32_127 : i32
    %c0_128 = arith.constant 0 : index
    %133 = arith.index_cast %132 : i32 to index
    %c0_129 = arith.constant 0 : index
    %c0_130 = arith.constant 0 : index
    %134 = vector.load %arg2[%c0_128, %133, %c0_129, %c0_130] : memref<1x18x18x4xbf16, #tpu.memory_space<vmem>>, vector<1x1x16x4xbf16>
    %135 = vector.shape_cast %134 : vector<1x1x16x4xbf16> to vector<16x4xbf16>
    %cst_131 = arith.constant dense<0.000000e+00> : vector<16x8xf32>
    %136 = tpu.matmul %135, %14, %cst_131 {dimension_numbers = #tpu.dot_dimension_numbers<[1], [0], [0], [1], [0, 0, 1, 1], [], []>} : vector<16x4xbf16>, vector<4x8xbf16>, vector<16x8xf32> -> vector<16x8xf32>
    %137 = arith.addf %130, %136 : vector<16x8xf32>
    %c1_i32_132 = arith.constant 1 : i32
    %138 = arith.addi %0, %c1_i32_132 : i32
    %c2_i32_133 = arith.constant 2 : i32
    %139 = arith.addi %138, %c2_i32_133 : i32
    %c0_134 = arith.constant 0 : index
    %140 = arith.index_cast %139 : i32 to index
    %c1_135 = arith.constant 1 : index
    %c0_136 = arith.constant 0 : index
    %141 = vector.load %arg2[%c0_134, %140, %c1_135, %c0_136] : memref<1x18x18x4xbf16, #tpu.memory_space<vmem>>, vector<1x1x16x4xbf16>
    %142 = vector.shape_cast %141 : vector<1x1x16x4xbf16> to vector<16x4xbf16>
    %cst_137 = arith.constant dense<0.000000e+00> : vector<16x8xf32>
    %143 = tpu.matmul %142, %16, %cst_137 {dimension_numbers = #tpu.dot_dimension_numbers<[1], [0], [0], [1], [0, 0, 1, 1], [], []>} : vector<16x4xbf16>, vector<4x8xbf16>, vector<16x8xf32> -> vector<16x8xf32>
    %144 = arith.addf %137, %143 : vector<16x8xf32>
    %c1_i32_138 = arith.constant 1 : i32
    %145 = arith.addi %0, %c1_i32_138 : i32
    %c2_i32_139 = arith.constant 2 : i32
    %146 = arith.addi %145, %c2_i32_139 : i32
    %c0_140 = arith.constant 0 : index
    %147 = arith.index_cast %146 : i32 to index
    %c2_141 = arith.constant 2 : index
    %c0_142 = arith.constant 0 : index
    %148 = vector.load %arg2[%c0_140, %147, %c2_141, %c0_142] : memref<1x18x18x4xbf16, #tpu.memory_space<vmem>>, vector<1x1x16x4xbf16>
    %149 = vector.shape_cast %148 : vector<1x1x16x4xbf16> to vector<16x4xbf16>
    %cst_143 = arith.constant dense<0.000000e+00> : vector<16x8xf32>
    %150 = tpu.matmul %149, %18, %cst_143 {dimension_numbers = #tpu.dot_dimension_numbers<[1], [0], [0], [1], [0, 0, 1, 1], [], []>} : vector<16x4xbf16>, vector<4x8xbf16>, vector<16x8xf32> -> vector<16x8xf32>
    %151 = arith.addf %144, %150 : vector<16x8xf32>
    %152 = vector.broadcast %19 : vector<1x8xf32> to vector<16x8xf32>
    %153 = arith.addf %151, %152 : vector<16x8xf32>
    %cst_144 = arith.constant 0.000000e+00 : f32
    %154 = vector.broadcast %cst_144 : f32 to vector<16x8xf32>
    %155 = arith.maximumf %153, %154 : vector<16x8xf32>
    %156 = arith.truncf %155 : vector<16x8xf32> to vector<16x8xbf16>
    %c0_145 = arith.constant 0 : index
    %c1_146 = arith.constant 1 : index
    %c0_147 = arith.constant 0 : index
    %c0_148 = arith.constant 0 : index
    %157 = vector.load %arg5[%c0_145, %c1_146, %c0_147, %c0_148] : memref<1x8x16x8xbf16, #tpu.memory_space<vmem>>, vector<1x1x16x8xbf16>
    %158 = vector.shape_cast %157 : vector<1x1x16x8xbf16> to vector<16x8xbf16>
    %159 = vector.shape_cast %156 : vector<16x8xbf16> to vector<1x1x16x8xbf16>
    tpu.vector_store %arg5[%c0_145, %c1_146, %c0_147, %c0_148], %159 {strides = array<i32>} : memref<1x8x16x8xbf16, #tpu.memory_space<vmem>>, vector<1x1x16x8xbf16>,
    %c2_i32_149 = arith.constant 2 : i32
    %160 = arith.addi %0, %c2_i32_149 : i32
    %c0_i32_150 = arith.constant 0 : i32
    %161 = arith.addi %160, %c0_i32_150 : i32
    %c0_151 = arith.constant 0 : index
    %162 = arith.index_cast %161 : i32 to index
    %c0_152 = arith.constant 0 : index
    %c0_153 = arith.constant 0 : index
    %163 = vector.load %arg2[%c0_151, %162, %c0_152, %c0_153] : memref<1x18x18x4xbf16, #tpu.memory_space<vmem>>, vector<1x1x16x4xbf16>
    %164 = vector.shape_cast %163 : vector<1x1x16x4xbf16> to vector<16x4xbf16>
    %cst_154 = arith.constant dense<0.000000e+00> : vector<16x8xf32>
    %165 = tpu.matmul %164, %2, %cst_154 {dimension_numbers = #tpu.dot_dimension_numbers<[1], [0], [0], [1], [0, 0, 1, 1], [], []>} : vector<16x4xbf16>, vector<4x8xbf16>, vector<16x8xf32> -> vector<16x8xf32>
    %c2_i32_155 = arith.constant 2 : i32
    %166 = arith.addi %0, %c2_i32_155 : i32
    %c0_i32_156 = arith.constant 0 : i32
    %167 = arith.addi %166, %c0_i32_156 : i32
    %c0_157 = arith.constant 0 : index
    %168 = arith.index_cast %167 : i32 to index
    %c1_158 = arith.constant 1 : index
    %c0_159 = arith.constant 0 : index
    %169 = vector.load %arg2[%c0_157, %168, %c1_158, %c0_159] : memref<1x18x18x4xbf16, #tpu.memory_space<vmem>>, vector<1x1x16x4xbf16>
    %170 = vector.shape_cast %169 : vector<1x1x16x4xbf16> to vector<16x4xbf16>
    %cst_160 = arith.constant dense<0.000000e+00> : vector<16x8xf32>
    %171 = tpu.matmul %170, %4, %cst_160 {dimension_numbers = #tpu.dot_dimension_numbers<[1], [0], [0], [1], [0, 0, 1, 1], [], []>} : vector<16x4xbf16>, vector<4x8xbf16>, vector<16x8xf32> -> vector<16x8xf32>
    %172 = arith.addf %165, %171 : vector<16x8xf32>
    %c2_i32_161 = arith.constant 2 : i32
    %173 = arith.addi %0, %c2_i32_161 : i32
    %c0_i32_162 = arith.constant 0 : i32
    %174 = arith.addi %173, %c0_i32_162 : i32
    %c0_163 = arith.constant 0 : index
    %175 = arith.index_cast %174 : i32 to index
    %c2_164 = arith.constant 2 : index
    %c0_165 = arith.constant 0 : index
    %176 = vector.load %arg2[%c0_163, %175, %c2_164, %c0_165] : memref<1x18x18x4xbf16, #tpu.memory_space<vmem>>, vector<1x1x16x4xbf16>
    %177 = vector.shape_cast %176 : vector<1x1x16x4xbf16> to vector<16x4xbf16>
    %cst_166 = arith.constant dense<0.000000e+00> : vector<16x8xf32>
    %178 = tpu.matmul %177, %6, %cst_166 {dimension_numbers = #tpu.dot_dimension_numbers<[1], [0], [0], [1], [0, 0, 1, 1], [], []>} : vector<16x4xbf16>, vector<4x8xbf16>, vector<16x8xf32> -> vector<16x8xf32>
    %179 = arith.addf %172, %178 : vector<16x8xf32>
    %c2_i32_167 = arith.constant 2 : i32
    %180 = arith.addi %0, %c2_i32_167 : i32
    %c1_i32_168 = arith.constant 1 : i32
    %181 = arith.addi %180, %c1_i32_168 : i32
    %c0_169 = arith.constant 0 : index
    %182 = arith.index_cast %181 : i32 to index
    %c0_170 = arith.constant 0 : index
    %c0_171 = arith.constant 0 : index
    %183 = vector.load %arg2[%c0_169, %182, %c0_170, %c0_171] : memref<1x18x18x4xbf16, #tpu.memory_space<vmem>>, vector<1x1x16x4xbf16>
    %184 = vector.shape_cast %183 : vector<1x1x16x4xbf16> to vector<16x4xbf16>
    %cst_172 = arith.constant dense<0.000000e+00> : vector<16x8xf32>
    %185 = tpu.matmul %184, %8, %cst_172 {dimension_numbers = #tpu.dot_dimension_numbers<[1], [0], [0], [1], [0, 0, 1, 1], [], []>} : vector<16x4xbf16>, vector<4x8xbf16>, vector<16x8xf32> -> vector<16x8xf32>
    %186 = arith.addf %179, %185 : vector<16x8xf32>
    %c2_i32_173 = arith.constant 2 : i32
    %187 = arith.addi %0, %c2_i32_173 : i32
    %c1_i32_174 = arith.constant 1 : i32
    %188 = arith.addi %187, %c1_i32_174 : i32
    %c0_175 = arith.constant 0 : index
    %189 = arith.index_cast %188 : i32 to index
    %c1_176 = arith.constant 1 : index
    %c0_177 = arith.constant 0 : index
    %190 = vector.load %arg2[%c0_175, %189, %c1_176, %c0_177] : memref<1x18x18x4xbf16, #tpu.memory_space<vmem>>, vector<1x1x16x4xbf16>
    %191 = vector.shape_cast %190 : vector<1x1x16x4xbf16> to vector<16x4xbf16>
    %cst_178 = arith.constant dense<0.000000e+00> : vector<16x8xf32>
    %192 = tpu.matmul %191, %10, %cst_178 {dimension_numbers = #tpu.dot_dimension_numbers<[1], [0], [0], [1], [0, 0, 1, 1], [], []>} : vector<16x4xbf16>, vector<4x8xbf16>, vector<16x8xf32> -> vector<16x8xf32>
    %193 = arith.addf %186, %192 : vector<16x8xf32>
    %c2_i32_179 = arith.constant 2 : i32
    %194 = arith.addi %0, %c2_i32_179 : i32
    %c1_i32_180 = arith.constant 1 : i32
    %195 = arith.addi %194, %c1_i32_180 : i32
    %c0_181 = arith.constant 0 : index
    %196 = arith.index_cast %195 : i32 to index
    %c2_182 = arith.constant 2 : index
    %c0_183 = arith.constant 0 : index
    %197 = vector.load %arg2[%c0_181, %196, %c2_182, %c0_183] : memref<1x18x18x4xbf16, #tpu.memory_space<vmem>>, vector<1x1x16x4xbf16>
    %198 = vector.shape_cast %197 : vector<1x1x16x4xbf16> to vector<16x4xbf16>
    %cst_184 = arith.constant dense<0.000000e+00> : vector<16x8xf32>
    %199 = tpu.matmul %198, %12, %cst_184 {dimension_numbers = #tpu.dot_dimension_numbers<[1], [0], [0], [1], [0, 0, 1, 1], [], []>} : vector<16x4xbf16>, vector<4x8xbf16>, vector<16x8xf32> -> vector<16x8xf32>
    %200 = arith.addf %193, %199 : vector<16x8xf32>
    %c2_i32_185 = arith.constant 2 : i32
    %201 = arith.addi %0, %c2_i32_185 : i32
    %c2_i32_186 = arith.constant 2 : i32
    %202 = arith.addi %201, %c2_i32_186 : i32
    %c0_187 = arith.constant 0 : index
    %203 = arith.index_cast %202 : i32 to index
    %c0_188 = arith.constant 0 : index
    %c0_189 = arith.constant 0 : index
    %204 = vector.load %arg2[%c0_187, %203, %c0_188, %c0_189] : memref<1x18x18x4xbf16, #tpu.memory_space<vmem>>, vector<1x1x16x4xbf16>
    %205 = vector.shape_cast %204 : vector<1x1x16x4xbf16> to vector<16x4xbf16>
    %cst_190 = arith.constant dense<0.000000e+00> : vector<16x8xf32>
    %206 = tpu.matmul %205, %14, %cst_190 {dimension_numbers = #tpu.dot_dimension_numbers<[1], [0], [0], [1], [0, 0, 1, 1], [], []>} : vector<16x4xbf16>, vector<4x8xbf16>, vector<16x8xf32> -> vector<16x8xf32>
    %207 = arith.addf %200, %206 : vector<16x8xf32>
    %c2_i32_191 = arith.constant 2 : i32
    %208 = arith.addi %0, %c2_i32_191 : i32
    %c2_i32_192 = arith.constant 2 : i32
    %209 = arith.addi %208, %c2_i32_192 : i32
    %c0_193 = arith.constant 0 : index
    %210 = arith.index_cast %209 : i32 to index
    %c1_194 = arith.constant 1 : index
    %c0_195 = arith.constant 0 : index
    %211 = vector.load %arg2[%c0_193, %210, %c1_194, %c0_195] : memref<1x18x18x4xbf16, #tpu.memory_space<vmem>>, vector<1x1x16x4xbf16>
    %212 = vector.shape_cast %211 : vector<1x1x16x4xbf16> to vector<16x4xbf16>
    %cst_196 = arith.constant dense<0.000000e+00> : vector<16x8xf32>
    %213 = tpu.matmul %212, %16, %cst_196 {dimension_numbers = #tpu.dot_dimension_numbers<[1], [0], [0], [1], [0, 0, 1, 1], [], []>} : vector<16x4xbf16>, vector<4x8xbf16>, vector<16x8xf32> -> vector<16x8xf32>
    %214 = arith.addf %207, %213 : vector<16x8xf32>
    %c2_i32_197 = arith.constant 2 : i32
    %215 = arith.addi %0, %c2_i32_197 : i32
    %c2_i32_198 = arith.constant 2 : i32
    %216 = arith.addi %215, %c2_i32_198 : i32
    %c0_199 = arith.constant 0 : index
    %217 = arith.index_cast %216 : i32 to index
    %c2_200 = arith.constant 2 : index
    %c0_201 = arith.constant 0 : index
    %218 = vector.load %arg2[%c0_199, %217, %c2_200, %c0_201] : memref<1x18x18x4xbf16, #tpu.memory_space<vmem>>, vector<1x1x16x4xbf16>
    %219 = vector.shape_cast %218 : vector<1x1x16x4xbf16> to vector<16x4xbf16>
    %cst_202 = arith.constant dense<0.000000e+00> : vector<16x8xf32>
    %220 = tpu.matmul %219, %18, %cst_202 {dimension_numbers = #tpu.dot_dimension_numbers<[1], [0], [0], [1], [0, 0, 1, 1], [], []>} : vector<16x4xbf16>, vector<4x8xbf16>, vector<16x8xf32> -> vector<16x8xf32>
    %221 = arith.addf %214, %220 : vector<16x8xf32>
    %222 = vector.broadcast %19 : vector<1x8xf32> to vector<16x8xf32>
    %223 = arith.addf %221, %222 : vector<16x8xf32>
    %cst_203 = arith.constant 0.000000e+00 : f32
    %224 = vector.broadcast %cst_203 : f32 to vector<16x8xf32>
    %225 = arith.maximumf %223, %224 : vector<16x8xf32>
    %226 = arith.truncf %225 : vector<16x8xf32> to vector<16x8xbf16>
    %c0_204 = arith.constant 0 : index
    %c2_205 = arith.constant 2 : index
    %c0_206 = arith.constant 0 : index
    %c0_207 = arith.constant 0 : index
    %227 = vector.load %arg5[%c0_204, %c2_205, %c0_206, %c0_207] : memref<1x8x16x8xbf16, #tpu.memory_space<vmem>>, vector<1x1x16x8xbf16>
    %228 = vector.shape_cast %227 : vector<1x1x16x8xbf16> to vector<16x8xbf16>
    %229 = vector.shape_cast %226 : vector<16x8xbf16> to vector<1x1x16x8xbf16>
    tpu.vector_store %arg5[%c0_204, %c2_205, %c0_206, %c0_207], %229 {strides = array<i32>} : memref<1x8x16x8xbf16, #tpu.memory_space<vmem>>, vector<1x1x16x8xbf16>,
    %c3_i32 = arith.constant 3 : i32
    %230 = arith.addi %0, %c3_i32 : i32
    %c0_i32_208 = arith.constant 0 : i32
    %231 = arith.addi %230, %c0_i32_208 : i32
    %c0_209 = arith.constant 0 : index
    %232 = arith.index_cast %231 : i32 to index
    %c0_210 = arith.constant 0 : index
    %c0_211 = arith.constant 0 : index
    %233 = vector.load %arg2[%c0_209, %232, %c0_210, %c0_211] : memref<1x18x18x4xbf16, #tpu.memory_space<vmem>>, vector<1x1x16x4xbf16>
    %234 = vector.shape_cast %233 : vector<1x1x16x4xbf16> to vector<16x4xbf16>
    %cst_212 = arith.constant dense<0.000000e+00> : vector<16x8xf32>
    %235 = tpu.matmul %234, %2, %cst_212 {dimension_numbers = #tpu.dot_dimension_numbers<[1], [0], [0], [1], [0, 0, 1, 1], [], []>} : vector<16x4xbf16>, vector<4x8xbf16>, vector<16x8xf32> -> vector<16x8xf32>
    %c3_i32_213 = arith.constant 3 : i32
    %236 = arith.addi %0, %c3_i32_213 : i32
    %c0_i32_214 = arith.constant 0 : i32
    %237 = arith.addi %236, %c0_i32_214 : i32
    %c0_215 = arith.constant 0 : index
    %238 = arith.index_cast %237 : i32 to index
    %c1_216 = arith.constant 1 : index
    %c0_217 = arith.constant 0 : index
    %239 = vector.load %arg2[%c0_215, %238, %c1_216, %c0_217] : memref<1x18x18x4xbf16, #tpu.memory_space<vmem>>, vector<1x1x16x4xbf16>
    %240 = vector.shape_cast %239 : vector<1x1x16x4xbf16> to vector<16x4xbf16>
    %cst_218 = arith.constant dense<0.000000e+00> : vector<16x8xf32>
    %241 = tpu.matmul %240, %4, %cst_218 {dimension_numbers = #tpu.dot_dimension_numbers<[1], [0], [0], [1], [0, 0, 1, 1], [], []>} : vector<16x4xbf16>, vector<4x8xbf16>, vector<16x8xf32> -> vector<16x8xf32>
    %242 = arith.addf %235, %241 : vector<16x8xf32>
    %c3_i32_219 = arith.constant 3 : i32
    %243 = arith.addi %0, %c3_i32_219 : i32
    %c0_i32_220 = arith.constant 0 : i32
    %244 = arith.addi %243, %c0_i32_220 : i32
    %c0_221 = arith.constant 0 : index
    %245 = arith.index_cast %244 : i32 to index
    %c2_222 = arith.constant 2 : index
    %c0_223 = arith.constant 0 : index
    %246 = vector.load %arg2[%c0_221, %245, %c2_222, %c0_223] : memref<1x18x18x4xbf16, #tpu.memory_space<vmem>>, vector<1x1x16x4xbf16>
    %247 = vector.shape_cast %246 : vector<1x1x16x4xbf16> to vector<16x4xbf16>
    %cst_224 = arith.constant dense<0.000000e+00> : vector<16x8xf32>
    %248 = tpu.matmul %247, %6, %cst_224 {dimension_numbers = #tpu.dot_dimension_numbers<[1], [0], [0], [1], [0, 0, 1, 1], [], []>} : vector<16x4xbf16>, vector<4x8xbf16>, vector<16x8xf32> -> vector<16x8xf32>
    %249 = arith.addf %242, %248 : vector<16x8xf32>
    %c3_i32_225 = arith.constant 3 : i32
    %250 = arith.addi %0, %c3_i32_225 : i32
    %c1_i32_226 = arith.constant 1 : i32
    %251 = arith.addi %250, %c1_i32_226 : i32
    %c0_227 = arith.constant 0 : index
    %252 = arith.index_cast %251 : i32 to index
    %c0_228 = arith.constant 0 : index
    %c0_229 = arith.constant 0 : index
    %253 = vector.load %arg2[%c0_227, %252, %c0_228, %c0_229] : memref<1x18x18x4xbf16, #tpu.memory_space<vmem>>, vector<1x1x16x4xbf16>
    %254 = vector.shape_cast %253 : vector<1x1x16x4xbf16> to vector<16x4xbf16>
    %cst_230 = arith.constant dense<0.000000e+00> : vector<16x8xf32>
    %255 = tpu.matmul %254, %8, %cst_230 {dimension_numbers = #tpu.dot_dimension_numbers<[1], [0], [0], [1], [0, 0, 1, 1], [], []>} : vector<16x4xbf16>, vector<4x8xbf16>, vector<16x8xf32> -> vector<16x8xf32>
    %256 = arith.addf %249, %255 : vector<16x8xf32>
    %c3_i32_231 = arith.constant 3 : i32
    %257 = arith.addi %0, %c3_i32_231 : i32
    %c1_i32_232 = arith.constant 1 : i32
    %258 = arith.addi %257, %c1_i32_232 : i32
    %c0_233 = arith.constant 0 : index
    %259 = arith.index_cast %258 : i32 to index
    %c1_234 = arith.constant 1 : index
    %c0_235 = arith.constant 0 : index
    %260 = vector.load %arg2[%c0_233, %259, %c1_234, %c0_235] : memref<1x18x18x4xbf16, #tpu.memory_space<vmem>>, vector<1x1x16x4xbf16>
    %261 = vector.shape_cast %260 : vector<1x1x16x4xbf16> to vector<16x4xbf16>
    %cst_236 = arith.constant dense<0.000000e+00> : vector<16x8xf32>
    %262 = tpu.matmul %261, %10, %cst_236 {dimension_numbers = #tpu.dot_dimension_numbers<[1], [0], [0], [1], [0, 0, 1, 1], [], []>} : vector<16x4xbf16>, vector<4x8xbf16>, vector<16x8xf32> -> vector<16x8xf32>
    %263 = arith.addf %256, %262 : vector<16x8xf32>
    %c3_i32_237 = arith.constant 3 : i32
    %264 = arith.addi %0, %c3_i32_237 : i32
    %c1_i32_238 = arith.constant 1 : i32
    %265 = arith.addi %264, %c1_i32_238 : i32
    %c0_239 = arith.constant 0 : index
    %266 = arith.index_cast %265 : i32 to index
    %c2_240 = arith.constant 2 : index
    %c0_241 = arith.constant 0 : index
    %267 = vector.load %arg2[%c0_239, %266, %c2_240, %c0_241] : memref<1x18x18x4xbf16, #tpu.memory_space<vmem>>, vector<1x1x16x4xbf16>
    %268 = vector.shape_cast %267 : vector<1x1x16x4xbf16> to vector<16x4xbf16>
    %cst_242 = arith.constant dense<0.000000e+00> : vector<16x8xf32>
    %269 = tpu.matmul %268, %12, %cst_242 {dimension_numbers = #tpu.dot_dimension_numbers<[1], [0], [0], [1], [0, 0, 1, 1], [], []>} : vector<16x4xbf16>, vector<4x8xbf16>, vector<16x8xf32> -> vector<16x8xf32>
    %270 = arith.addf %263, %269 : vector<16x8xf32>
    %c3_i32_243 = arith.constant 3 : i32
    %271 = arith.addi %0, %c3_i32_243 : i32
    %c2_i32_244 = arith.constant 2 : i32
    %272 = arith.addi %271, %c2_i32_244 : i32
    %c0_245 = arith.constant 0 : index
    %273 = arith.index_cast %272 : i32 to index
    %c0_246 = arith.constant 0 : index
    %c0_247 = arith.constant 0 : index
    %274 = vector.load %arg2[%c0_245, %273, %c0_246, %c0_247] : memref<1x18x18x4xbf16, #tpu.memory_space<vmem>>, vector<1x1x16x4xbf16>
    %275 = vector.shape_cast %274 : vector<1x1x16x4xbf16> to vector<16x4xbf16>
    %cst_248 = arith.constant dense<0.000000e+00> : vector<16x8xf32>
    %276 = tpu.matmul %275, %14, %cst_248 {dimension_numbers = #tpu.dot_dimension_numbers<[1], [0], [0], [1], [0, 0, 1, 1], [], []>} : vector<16x4xbf16>, vector<4x8xbf16>, vector<16x8xf32> -> vector<16x8xf32>
    %277 = arith.addf %270, %276 : vector<16x8xf32>
    %c3_i32_249 = arith.constant 3 : i32
    %278 = arith.addi %0, %c3_i32_249 : i32
    %c2_i32_250 = arith.constant 2 : i32
    %279 = arith.addi %278, %c2_i32_250 : i32
    %c0_251 = arith.constant 0 : index
    %280 = arith.index_cast %279 : i32 to index
    %c1_252 = arith.constant 1 : index
    %c0_253 = arith.constant 0 : index
    %281 = vector.load %arg2[%c0_251, %280, %c1_252, %c0_253] : memref<1x18x18x4xbf16, #tpu.memory_space<vmem>>, vector<1x1x16x4xbf16>
    %282 = vector.shape_cast %281 : vector<1x1x16x4xbf16> to vector<16x4xbf16>
    %cst_254 = arith.constant dense<0.000000e+00> : vector<16x8xf32>
    %283 = tpu.matmul %282, %16, %cst_254 {dimension_numbers = #tpu.dot_dimension_numbers<[1], [0], [0], [1], [0, 0, 1, 1], [], []>} : vector<16x4xbf16>, vector<4x8xbf16>, vector<16x8xf32> -> vector<16x8xf32>
    %284 = arith.addf %277, %283 : vector<16x8xf32>
    %c3_i32_255 = arith.constant 3 : i32
    %285 = arith.addi %0, %c3_i32_255 : i32
    %c2_i32_256 = arith.constant 2 : i32
    %286 = arith.addi %285, %c2_i32_256 : i32
    %c0_257 = arith.constant 0 : index
    %287 = arith.index_cast %286 : i32 to index
    %c2_258 = arith.constant 2 : index
    %c0_259 = arith.constant 0 : index
    %288 = vector.load %arg2[%c0_257, %287, %c2_258, %c0_259] : memref<1x18x18x4xbf16, #tpu.memory_space<vmem>>, vector<1x1x16x4xbf16>
    %289 = vector.shape_cast %288 : vector<1x1x16x4xbf16> to vector<16x4xbf16>
    %cst_260 = arith.constant dense<0.000000e+00> : vector<16x8xf32>
    %290 = tpu.matmul %289, %18, %cst_260 {dimension_numbers = #tpu.dot_dimension_numbers<[1], [0], [0], [1], [0, 0, 1, 1], [], []>} : vector<16x4xbf16>, vector<4x8xbf16>, vector<16x8xf32> -> vector<16x8xf32>
    %291 = arith.addf %284, %290 : vector<16x8xf32>
    %292 = vector.broadcast %19 : vector<1x8xf32> to vector<16x8xf32>
    %293 = arith.addf %291, %292 : vector<16x8xf32>
    %cst_261 = arith.constant 0.000000e+00 : f32
    %294 = vector.broadcast %cst_261 : f32 to vector<16x8xf32>
    %295 = arith.maximumf %293, %294 : vector<16x8xf32>
    %296 = arith.truncf %295 : vector<16x8xf32> to vector<16x8xbf16>
    %c0_262 = arith.constant 0 : index
    %c3 = arith.constant 3 : index
    %c0_263 = arith.constant 0 : index
    %c0_264 = arith.constant 0 : index
    %297 = vector.load %arg5[%c0_262, %c3, %c0_263, %c0_264] : memref<1x8x16x8xbf16, #tpu.memory_space<vmem>>, vector<1x1x16x8xbf16>
    %298 = vector.shape_cast %297 : vector<1x1x16x8xbf16> to vector<16x8xbf16>
    %299 = vector.shape_cast %296 : vector<16x8xbf16> to vector<1x1x16x8xbf16>
    tpu.vector_store %arg5[%c0_262, %c3, %c0_263, %c0_264], %299 {strides = array<i32>} : memref<1x8x16x8xbf16, #tpu.memory_space<vmem>>, vector<1x1x16x8xbf16>,
    %c4_i32 = arith.constant 4 : i32
    %300 = arith.addi %0, %c4_i32 : i32
    %c0_i32_265 = arith.constant 0 : i32
    %301 = arith.addi %300, %c0_i32_265 : i32
    %c0_266 = arith.constant 0 : index
    %302 = arith.index_cast %301 : i32 to index
    %c0_267 = arith.constant 0 : index
    %c0_268 = arith.constant 0 : index
    %303 = vector.load %arg2[%c0_266, %302, %c0_267, %c0_268] : memref<1x18x18x4xbf16, #tpu.memory_space<vmem>>, vector<1x1x16x4xbf16>
    %304 = vector.shape_cast %303 : vector<1x1x16x4xbf16> to vector<16x4xbf16>
    %cst_269 = arith.constant dense<0.000000e+00> : vector<16x8xf32>
    %305 = tpu.matmul %304, %2, %cst_269 {dimension_numbers = #tpu.dot_dimension_numbers<[1], [0], [0], [1], [0, 0, 1, 1], [], []>} : vector<16x4xbf16>, vector<4x8xbf16>, vector<16x8xf32> -> vector<16x8xf32>
    %c4_i32_270 = arith.constant 4 : i32
    %306 = arith.addi %0, %c4_i32_270 : i32
    %c0_i32_271 = arith.constant 0 : i32
    %307 = arith.addi %306, %c0_i32_271 : i32
    %c0_272 = arith.constant 0 : index
    %308 = arith.index_cast %307 : i32 to index
    %c1_273 = arith.constant 1 : index
    %c0_274 = arith.constant 0 : index
    %309 = vector.load %arg2[%c0_272, %308, %c1_273, %c0_274] : memref<1x18x18x4xbf16, #tpu.memory_space<vmem>>, vector<1x1x16x4xbf16>
    %310 = vector.shape_cast %309 : vector<1x1x16x4xbf16> to vector<16x4xbf16>
    %cst_275 = arith.constant dense<0.000000e+00> : vector<16x8xf32>
    %311 = tpu.matmul %310, %4, %cst_275 {dimension_numbers = #tpu.dot_dimension_numbers<[1], [0], [0], [1], [0, 0, 1, 1], [], []>} : vector<16x4xbf16>, vector<4x8xbf16>, vector<16x8xf32> -> vector<16x8xf32>
    %312 = arith.addf %305, %311 : vector<16x8xf32>
    %c4_i32_276 = arith.constant 4 : i32
    %313 = arith.addi %0, %c4_i32_276 : i32
    %c0_i32_277 = arith.constant 0 : i32
    %314 = arith.addi %313, %c0_i32_277 : i32
    %c0_278 = arith.constant 0 : index
    %315 = arith.index_cast %314 : i32 to index
    %c2_279 = arith.constant 2 : index
    %c0_280 = arith.constant 0 : index
    %316 = vector.load %arg2[%c0_278, %315, %c2_279, %c0_280] : memref<1x18x18x4xbf16, #tpu.memory_space<vmem>>, vector<1x1x16x4xbf16>
    %317 = vector.shape_cast %316 : vector<1x1x16x4xbf16> to vector<16x4xbf16>
    %cst_281 = arith.constant dense<0.000000e+00> : vector<16x8xf32>
    %318 = tpu.matmul %317, %6, %cst_281 {dimension_numbers = #tpu.dot_dimension_numbers<[1], [0], [0], [1], [0, 0, 1, 1], [], []>} : vector<16x4xbf16>, vector<4x8xbf16>, vector<16x8xf32> -> vector<16x8xf32>
    %319 = arith.addf %312, %318 : vector<16x8xf32>
    %c4_i32_282 = arith.constant 4 : i32
    %320 = arith.addi %0, %c4_i32_282 : i32
    %c1_i32_283 = arith.constant 1 : i32
    %321 = arith.addi %320, %c1_i32_283 : i32
    %c0_284 = arith.constant 0 : index
    %322 = arith.index_cast %321 : i32 to index
    %c0_285 = arith.constant 0 : index
    %c0_286 = arith.constant 0 : index
    %323 = vector.load %arg2[%c0_284, %322, %c0_285, %c0_286] : memref<1x18x18x4xbf16, #tpu.memory_space<vmem>>, vector<1x1x16x4xbf16>
    %324 = vector.shape_cast %323 : vector<1x1x16x4xbf16> to vector<16x4xbf16>
    %cst_287 = arith.constant dense<0.000000e+00> : vector<16x8xf32>
    %325 = tpu.matmul %324, %8, %cst_287 {dimension_numbers = #tpu.dot_dimension_numbers<[1], [0], [0], [1], [0, 0, 1, 1], [], []>} : vector<16x4xbf16>, vector<4x8xbf16>, vector<16x8xf32> -> vector<16x8xf32>
    %326 = arith.addf %319, %325 : vector<16x8xf32>
    %c4_i32_288 = arith.constant 4 : i32
    %327 = arith.addi %0, %c4_i32_288 : i32
    %c1_i32_289 = arith.constant 1 : i32
    %328 = arith.addi %327, %c1_i32_289 : i32
    %c0_290 = arith.constant 0 : index
    %329 = arith.index_cast %328 : i32 to index
    %c1_291 = arith.constant 1 : index
    %c0_292 = arith.constant 0 : index
    %330 = vector.load %arg2[%c0_290, %329, %c1_291, %c0_292] : memref<1x18x18x4xbf16, #tpu.memory_space<vmem>>, vector<1x1x16x4xbf16>
    %331 = vector.shape_cast %330 : vector<1x1x16x4xbf16> to vector<16x4xbf16>
    %cst_293 = arith.constant dense<0.000000e+00> : vector<16x8xf32>
    %332 = tpu.matmul %331, %10, %cst_293 {dimension_numbers = #tpu.dot_dimension_numbers<[1], [0], [0], [1], [0, 0, 1, 1], [], []>} : vector<16x4xbf16>, vector<4x8xbf16>, vector<16x8xf32> -> vector<16x8xf32>
    %333 = arith.addf %326, %332 : vector<16x8xf32>
    %c4_i32_294 = arith.constant 4 : i32
    %334 = arith.addi %0, %c4_i32_294 : i32
    %c1_i32_295 = arith.constant 1 : i32
    %335 = arith.addi %334, %c1_i32_295 : i32
    %c0_296 = arith.constant 0 : index
    %336 = arith.index_cast %335 : i32 to index
    %c2_297 = arith.constant 2 : index
    %c0_298 = arith.constant 0 : index
    %337 = vector.load %arg2[%c0_296, %336, %c2_297, %c0_298] : memref<1x18x18x4xbf16, #tpu.memory_space<vmem>>, vector<1x1x16x4xbf16>
    %338 = vector.shape_cast %337 : vector<1x1x16x4xbf16> to vector<16x4xbf16>
    %cst_299 = arith.constant dense<0.000000e+00> : vector<16x8xf32>
    %339 = tpu.matmul %338, %12, %cst_299 {dimension_numbers = #tpu.dot_dimension_numbers<[1], [0], [0], [1], [0, 0, 1, 1], [], []>} : vector<16x4xbf16>, vector<4x8xbf16>, vector<16x8xf32> -> vector<16x8xf32>
    %340 = arith.addf %333, %339 : vector<16x8xf32>
    %c4_i32_300 = arith.constant 4 : i32
    %341 = arith.addi %0, %c4_i32_300 : i32
    %c2_i32_301 = arith.constant 2 : i32
    %342 = arith.addi %341, %c2_i32_301 : i32
    %c0_302 = arith.constant 0 : index
    %343 = arith.index_cast %342 : i32 to index
    %c0_303 = arith.constant 0 : index
    %c0_304 = arith.constant 0 : index
    %344 = vector.load %arg2[%c0_302, %343, %c0_303, %c0_304] : memref<1x18x18x4xbf16, #tpu.memory_space<vmem>>, vector<1x1x16x4xbf16>
    %345 = vector.shape_cast %344 : vector<1x1x16x4xbf16> to vector<16x4xbf16>
    %cst_305 = arith.constant dense<0.000000e+00> : vector<16x8xf32>
    %346 = tpu.matmul %345, %14, %cst_305 {dimension_numbers = #tpu.dot_dimension_numbers<[1], [0], [0], [1], [0, 0, 1, 1], [], []>} : vector<16x4xbf16>, vector<4x8xbf16>, vector<16x8xf32> -> vector<16x8xf32>
    %347 = arith.addf %340, %346 : vector<16x8xf32>
    %c4_i32_306 = arith.constant 4 : i32
    %348 = arith.addi %0, %c4_i32_306 : i32
    %c2_i32_307 = arith.constant 2 : i32
    %349 = arith.addi %348, %c2_i32_307 : i32
    %c0_308 = arith.constant 0 : index
    %350 = arith.index_cast %349 : i32 to index
    %c1_309 = arith.constant 1 : index
    %c0_310 = arith.constant 0 : index
    %351 = vector.load %arg2[%c0_308, %350, %c1_309, %c0_310] : memref<1x18x18x4xbf16, #tpu.memory_space<vmem>>, vector<1x1x16x4xbf16>
    %352 = vector.shape_cast %351 : vector<1x1x16x4xbf16> to vector<16x4xbf16>
    %cst_311 = arith.constant dense<0.000000e+00> : vector<16x8xf32>
    %353 = tpu.matmul %352, %16, %cst_311 {dimension_numbers = #tpu.dot_dimension_numbers<[1], [0], [0], [1], [0, 0, 1, 1], [], []>} : vector<16x4xbf16>, vector<4x8xbf16>, vector<16x8xf32> -> vector<16x8xf32>
    %354 = arith.addf %347, %353 : vector<16x8xf32>
    %c4_i32_312 = arith.constant 4 : i32
    %355 = arith.addi %0, %c4_i32_312 : i32
    %c2_i32_313 = arith.constant 2 : i32
    %356 = arith.addi %355, %c2_i32_313 : i32
    %c0_314 = arith.constant 0 : index
    %357 = arith.index_cast %356 : i32 to index
    %c2_315 = arith.constant 2 : index
    %c0_316 = arith.constant 0 : index
    %358 = vector.load %arg2[%c0_314, %357, %c2_315, %c0_316] : memref<1x18x18x4xbf16, #tpu.memory_space<vmem>>, vector<1x1x16x4xbf16>
    %359 = vector.shape_cast %358 : vector<1x1x16x4xbf16> to vector<16x4xbf16>
    %cst_317 = arith.constant dense<0.000000e+00> : vector<16x8xf32>
    %360 = tpu.matmul %359, %18, %cst_317 {dimension_numbers = #tpu.dot_dimension_numbers<[1], [0], [0], [1], [0, 0, 1, 1], [], []>} : vector<16x4xbf16>, vector<4x8xbf16>, vector<16x8xf32> -> vector<16x8xf32>
    %361 = arith.addf %354, %360 : vector<16x8xf32>
    %362 = vector.broadcast %19 : vector<1x8xf32> to vector<16x8xf32>
    %363 = arith.addf %361, %362 : vector<16x8xf32>
    %cst_318 = arith.constant 0.000000e+00 : f32
    %364 = vector.broadcast %cst_318 : f32 to vector<16x8xf32>
    %365 = arith.maximumf %363, %364 : vector<16x8xf32>
    %366 = arith.truncf %365 : vector<16x8xf32> to vector<16x8xbf16>
    %c0_319 = arith.constant 0 : index
    %c4 = arith.constant 4 : index
    %c0_320 = arith.constant 0 : index
    %c0_321 = arith.constant 0 : index
    %367 = vector.load %arg5[%c0_319, %c4, %c0_320, %c0_321] : memref<1x8x16x8xbf16, #tpu.memory_space<vmem>>, vector<1x1x16x8xbf16>
    %368 = vector.shape_cast %367 : vector<1x1x16x8xbf16> to vector<16x8xbf16>
    %369 = vector.shape_cast %366 : vector<16x8xbf16> to vector<1x1x16x8xbf16>
    tpu.vector_store %arg5[%c0_319, %c4, %c0_320, %c0_321], %369 {strides = array<i32>} : memref<1x8x16x8xbf16, #tpu.memory_space<vmem>>, vector<1x1x16x8xbf16>,
    %c5_i32 = arith.constant 5 : i32
    %370 = arith.addi %0, %c5_i32 : i32
    %c0_i32_322 = arith.constant 0 : i32
    %371 = arith.addi %370, %c0_i32_322 : i32
    %c0_323 = arith.constant 0 : index
    %372 = arith.index_cast %371 : i32 to index
    %c0_324 = arith.constant 0 : index
    %c0_325 = arith.constant 0 : index
    %373 = vector.load %arg2[%c0_323, %372, %c0_324, %c0_325] : memref<1x18x18x4xbf16, #tpu.memory_space<vmem>>, vector<1x1x16x4xbf16>
    %374 = vector.shape_cast %373 : vector<1x1x16x4xbf16> to vector<16x4xbf16>
    %cst_326 = arith.constant dense<0.000000e+00> : vector<16x8xf32>
    %375 = tpu.matmul %374, %2, %cst_326 {dimension_numbers = #tpu.dot_dimension_numbers<[1], [0], [0], [1], [0, 0, 1, 1], [], []>} : vector<16x4xbf16>, vector<4x8xbf16>, vector<16x8xf32> -> vector<16x8xf32>
    %c5_i32_327 = arith.constant 5 : i32
    %376 = arith.addi %0, %c5_i32_327 : i32
    %c0_i32_328 = arith.constant 0 : i32
    %377 = arith.addi %376, %c0_i32_328 : i32
    %c0_329 = arith.constant 0 : index
    %378 = arith.index_cast %377 : i32 to index
    %c1_330 = arith.constant 1 : index
    %c0_331 = arith.constant 0 : index
    %379 = vector.load %arg2[%c0_329, %378, %c1_330, %c0_331] : memref<1x18x18x4xbf16, #tpu.memory_space<vmem>>, vector<1x1x16x4xbf16>
    %380 = vector.shape_cast %379 : vector<1x1x16x4xbf16> to vector<16x4xbf16>
    %cst_332 = arith.constant dense<0.000000e+00> : vector<16x8xf32>
    %381 = tpu.matmul %380, %4, %cst_332 {dimension_numbers = #tpu.dot_dimension_numbers<[1], [0], [0], [1], [0, 0, 1, 1], [], []>} : vector<16x4xbf16>, vector<4x8xbf16>, vector<16x8xf32> -> vector<16x8xf32>
    %382 = arith.addf %375, %381 : vector<16x8xf32>
    %c5_i32_333 = arith.constant 5 : i32
    %383 = arith.addi %0, %c5_i32_333 : i32
    %c0_i32_334 = arith.constant 0 : i32
    %384 = arith.addi %383, %c0_i32_334 : i32
    %c0_335 = arith.constant 0 : index
    %385 = arith.index_cast %384 : i32 to index
    %c2_336 = arith.constant 2 : index
    %c0_337 = arith.constant 0 : index
    %386 = vector.load %arg2[%c0_335, %385, %c2_336, %c0_337] : memref<1x18x18x4xbf16, #tpu.memory_space<vmem>>, vector<1x1x16x4xbf16>
    %387 = vector.shape_cast %386 : vector<1x1x16x4xbf16> to vector<16x4xbf16>
    %cst_338 = arith.constant dense<0.000000e+00> : vector<16x8xf32>
    %388 = tpu.matmul %387, %6, %cst_338 {dimension_numbers = #tpu.dot_dimension_numbers<[1], [0], [0], [1], [0, 0, 1, 1], [], []>} : vector<16x4xbf16>, vector<4x8xbf16>, vector<16x8xf32> -> vector<16x8xf32>
    %389 = arith.addf %382, %388 : vector<16x8xf32>
    %c5_i32_339 = arith.constant 5 : i32
    %390 = arith.addi %0, %c5_i32_339 : i32
    %c1_i32_340 = arith.constant 1 : i32
    %391 = arith.addi %390, %c1_i32_340 : i32
    %c0_341 = arith.constant 0 : index
    %392 = arith.index_cast %391 : i32 to index
    %c0_342 = arith.constant 0 : index
    %c0_343 = arith.constant 0 : index
    %393 = vector.load %arg2[%c0_341, %392, %c0_342, %c0_343] : memref<1x18x18x4xbf16, #tpu.memory_space<vmem>>, vector<1x1x16x4xbf16>
    %394 = vector.shape_cast %393 : vector<1x1x16x4xbf16> to vector<16x4xbf16>
    %cst_344 = arith.constant dense<0.000000e+00> : vector<16x8xf32>
    %395 = tpu.matmul %394, %8, %cst_344 {dimension_numbers = #tpu.dot_dimension_numbers<[1], [0], [0], [1], [0, 0, 1, 1], [], []>} : vector<16x4xbf16>, vector<4x8xbf16>, vector<16x8xf32> -> vector<16x8xf32>
    %396 = arith.addf %389, %395 : vector<16x8xf32>
    %c5_i32_345 = arith.constant 5 : i32
    %397 = arith.addi %0, %c5_i32_345 : i32
    %c1_i32_346 = arith.constant 1 : i32
    %398 = arith.addi %397, %c1_i32_346 : i32
    %c0_347 = arith.constant 0 : index
    %399 = arith.index_cast %398 : i32 to index
    %c1_348 = arith.constant 1 : index
    %c0_349 = arith.constant 0 : index
    %400 = vector.load %arg2[%c0_347, %399, %c1_348, %c0_349] : memref<1x18x18x4xbf16, #tpu.memory_space<vmem>>, vector<1x1x16x4xbf16>
    %401 = vector.shape_cast %400 : vector<1x1x16x4xbf16> to vector<16x4xbf16>
    %cst_350 = arith.constant dense<0.000000e+00> : vector<16x8xf32>
    %402 = tpu.matmul %401, %10, %cst_350 {dimension_numbers = #tpu.dot_dimension_numbers<[1], [0], [0], [1], [0, 0, 1, 1], [], []>} : vector<16x4xbf16>, vector<4x8xbf16>, vector<16x8xf32> -> vector<16x8xf32>
    %403 = arith.addf %396, %402 : vector<16x8xf32>
    %c5_i32_351 = arith.constant 5 : i32
    %404 = arith.addi %0, %c5_i32_351 : i32
    %c1_i32_352 = arith.constant 1 : i32
    %405 = arith.addi %404, %c1_i32_352 : i32
    %c0_353 = arith.constant 0 : index
    %406 = arith.index_cast %405 : i32 to index
    %c2_354 = arith.constant 2 : index
    %c0_355 = arith.constant 0 : index
    %407 = vector.load %arg2[%c0_353, %406, %c2_354, %c0_355] : memref<1x18x18x4xbf16, #tpu.memory_space<vmem>>, vector<1x1x16x4xbf16>
    %408 = vector.shape_cast %407 : vector<1x1x16x4xbf16> to vector<16x4xbf16>
    %cst_356 = arith.constant dense<0.000000e+00> : vector<16x8xf32>
    %409 = tpu.matmul %408, %12, %cst_356 {dimension_numbers = #tpu.dot_dimension_numbers<[1], [0], [0], [1], [0, 0, 1, 1], [], []>} : vector<16x4xbf16>, vector<4x8xbf16>, vector<16x8xf32> -> vector<16x8xf32>
    %410 = arith.addf %403, %409 : vector<16x8xf32>
    %c5_i32_357 = arith.constant 5 : i32
    %411 = arith.addi %0, %c5_i32_357 : i32
    %c2_i32_358 = arith.constant 2 : i32
    %412 = arith.addi %411, %c2_i32_358 : i32
    %c0_359 = arith.constant 0 : index
    %413 = arith.index_cast %412 : i32 to index
    %c0_360 = arith.constant 0 : index
    %c0_361 = arith.constant 0 : index
    %414 = vector.load %arg2[%c0_359, %413, %c0_360, %c0_361] : memref<1x18x18x4xbf16, #tpu.memory_space<vmem>>, vector<1x1x16x4xbf16>
    %415 = vector.shape_cast %414 : vector<1x1x16x4xbf16> to vector<16x4xbf16>
    %cst_362 = arith.constant dense<0.000000e+00> : vector<16x8xf32>
    %416 = tpu.matmul %415, %14, %cst_362 {dimension_numbers = #tpu.dot_dimension_numbers<[1], [0], [0], [1], [0, 0, 1, 1], [], []>} : vector<16x4xbf16>, vector<4x8xbf16>, vector<16x8xf32> -> vector<16x8xf32>
    %417 = arith.addf %410, %416 : vector<16x8xf32>
    %c5_i32_363 = arith.constant 5 : i32
    %418 = arith.addi %0, %c5_i32_363 : i32
    %c2_i32_364 = arith.constant 2 : i32
    %419 = arith.addi %418, %c2_i32_364 : i32
    %c0_365 = arith.constant 0 : index
    %420 = arith.index_cast %419 : i32 to index
    %c1_366 = arith.constant 1 : index
    %c0_367 = arith.constant 0 : index
    %421 = vector.load %arg2[%c0_365, %420, %c1_366, %c0_367] : memref<1x18x18x4xbf16, #tpu.memory_space<vmem>>, vector<1x1x16x4xbf16>
    %422 = vector.shape_cast %421 : vector<1x1x16x4xbf16> to vector<16x4xbf16>
    %cst_368 = arith.constant dense<0.000000e+00> : vector<16x8xf32>
    %423 = tpu.matmul %422, %16, %cst_368 {dimension_numbers = #tpu.dot_dimension_numbers<[1], [0], [0], [1], [0, 0, 1, 1], [], []>} : vector<16x4xbf16>, vector<4x8xbf16>, vector<16x8xf32> -> vector<16x8xf32>
    %424 = arith.addf %417, %423 : vector<16x8xf32>
    %c5_i32_369 = arith.constant 5 : i32
    %425 = arith.addi %0, %c5_i32_369 : i32
    %c2_i32_370 = arith.constant 2 : i32
    %426 = arith.addi %425, %c2_i32_370 : i32
    %c0_371 = arith.constant 0 : index
    %427 = arith.index_cast %426 : i32 to index
    %c2_372 = arith.constant 2 : index
    %c0_373 = arith.constant 0 : index
    %428 = vector.load %arg2[%c0_371, %427, %c2_372, %c0_373] : memref<1x18x18x4xbf16, #tpu.memory_space<vmem>>, vector<1x1x16x4xbf16>
    %429 = vector.shape_cast %428 : vector<1x1x16x4xbf16> to vector<16x4xbf16>
    %cst_374 = arith.constant dense<0.000000e+00> : vector<16x8xf32>
    %430 = tpu.matmul %429, %18, %cst_374 {dimension_numbers = #tpu.dot_dimension_numbers<[1], [0], [0], [1], [0, 0, 1, 1], [], []>} : vector<16x4xbf16>, vector<4x8xbf16>, vector<16x8xf32> -> vector<16x8xf32>
    %431 = arith.addf %424, %430 : vector<16x8xf32>
    %432 = vector.broadcast %19 : vector<1x8xf32> to vector<16x8xf32>
    %433 = arith.addf %431, %432 : vector<16x8xf32>
    %cst_375 = arith.constant 0.000000e+00 : f32
    %434 = vector.broadcast %cst_375 : f32 to vector<16x8xf32>
    %435 = arith.maximumf %433, %434 : vector<16x8xf32>
    %436 = arith.truncf %435 : vector<16x8xf32> to vector<16x8xbf16>
    %c0_376 = arith.constant 0 : index
    %c5 = arith.constant 5 : index
    %c0_377 = arith.constant 0 : index
    %c0_378 = arith.constant 0 : index
    %437 = vector.load %arg5[%c0_376, %c5, %c0_377, %c0_378] : memref<1x8x16x8xbf16, #tpu.memory_space<vmem>>, vector<1x1x16x8xbf16>
    %438 = vector.shape_cast %437 : vector<1x1x16x8xbf16> to vector<16x8xbf16>
    %439 = vector.shape_cast %436 : vector<16x8xbf16> to vector<1x1x16x8xbf16>
    tpu.vector_store %arg5[%c0_376, %c5, %c0_377, %c0_378], %439 {strides = array<i32>} : memref<1x8x16x8xbf16, #tpu.memory_space<vmem>>, vector<1x1x16x8xbf16>,
    %c6_i32 = arith.constant 6 : i32
    %440 = arith.addi %0, %c6_i32 : i32
    %c0_i32_379 = arith.constant 0 : i32
    %441 = arith.addi %440, %c0_i32_379 : i32
    %c0_380 = arith.constant 0 : index
    %442 = arith.index_cast %441 : i32 to index
    %c0_381 = arith.constant 0 : index
    %c0_382 = arith.constant 0 : index
    %443 = vector.load %arg2[%c0_380, %442, %c0_381, %c0_382] : memref<1x18x18x4xbf16, #tpu.memory_space<vmem>>, vector<1x1x16x4xbf16>
    %444 = vector.shape_cast %443 : vector<1x1x16x4xbf16> to vector<16x4xbf16>
    %cst_383 = arith.constant dense<0.000000e+00> : vector<16x8xf32>
    %445 = tpu.matmul %444, %2, %cst_383 {dimension_numbers = #tpu.dot_dimension_numbers<[1], [0], [0], [1], [0, 0, 1, 1], [], []>} : vector<16x4xbf16>, vector<4x8xbf16>, vector<16x8xf32> -> vector<16x8xf32>
    %c6_i32_384 = arith.constant 6 : i32
    %446 = arith.addi %0, %c6_i32_384 : i32
    %c0_i32_385 = arith.constant 0 : i32
    %447 = arith.addi %446, %c0_i32_385 : i32
    %c0_386 = arith.constant 0 : index
    %448 = arith.index_cast %447 : i32 to index
    %c1_387 = arith.constant 1 : index
    %c0_388 = arith.constant 0 : index
    %449 = vector.load %arg2[%c0_386, %448, %c1_387, %c0_388] : memref<1x18x18x4xbf16, #tpu.memory_space<vmem>>, vector<1x1x16x4xbf16>
    %450 = vector.shape_cast %449 : vector<1x1x16x4xbf16> to vector<16x4xbf16>
    %cst_389 = arith.constant dense<0.000000e+00> : vector<16x8xf32>
    %451 = tpu.matmul %450, %4, %cst_389 {dimension_numbers = #tpu.dot_dimension_numbers<[1], [0], [0], [1], [0, 0, 1, 1], [], []>} : vector<16x4xbf16>, vector<4x8xbf16>, vector<16x8xf32> -> vector<16x8xf32>
    %452 = arith.addf %445, %451 : vector<16x8xf32>
    %c6_i32_390 = arith.constant 6 : i32
    %453 = arith.addi %0, %c6_i32_390 : i32
    %c0_i32_391 = arith.constant 0 : i32
    %454 = arith.addi %453, %c0_i32_391 : i32
    %c0_392 = arith.constant 0 : index
    %455 = arith.index_cast %454 : i32 to index
    %c2_393 = arith.constant 2 : index
    %c0_394 = arith.constant 0 : index
    %456 = vector.load %arg2[%c0_392, %455, %c2_393, %c0_394] : memref<1x18x18x4xbf16, #tpu.memory_space<vmem>>, vector<1x1x16x4xbf16>
    %457 = vector.shape_cast %456 : vector<1x1x16x4xbf16> to vector<16x4xbf16>
    %cst_395 = arith.constant dense<0.000000e+00> : vector<16x8xf32>
    %458 = tpu.matmul %457, %6, %cst_395 {dimension_numbers = #tpu.dot_dimension_numbers<[1], [0], [0], [1], [0, 0, 1, 1], [], []>} : vector<16x4xbf16>, vector<4x8xbf16>, vector<16x8xf32> -> vector<16x8xf32>
    %459 = arith.addf %452, %458 : vector<16x8xf32>
    %c6_i32_396 = arith.constant 6 : i32
    %460 = arith.addi %0, %c6_i32_396 : i32
    %c1_i32_397 = arith.constant 1 : i32
    %461 = arith.addi %460, %c1_i32_397 : i32
    %c0_398 = arith.constant 0 : index
    %462 = arith.index_cast %461 : i32 to index
    %c0_399 = arith.constant 0 : index
    %c0_400 = arith.constant 0 : index
    %463 = vector.load %arg2[%c0_398, %462, %c0_399, %c0_400] : memref<1x18x18x4xbf16, #tpu.memory_space<vmem>>, vector<1x1x16x4xbf16>
    %464 = vector.shape_cast %463 : vector<1x1x16x4xbf16> to vector<16x4xbf16>
    %cst_401 = arith.constant dense<0.000000e+00> : vector<16x8xf32>
    %465 = tpu.matmul %464, %8, %cst_401 {dimension_numbers = #tpu.dot_dimension_numbers<[1], [0], [0], [1], [0, 0, 1, 1], [], []>} : vector<16x4xbf16>, vector<4x8xbf16>, vector<16x8xf32> -> vector<16x8xf32>
    %466 = arith.addf %459, %465 : vector<16x8xf32>
    %c6_i32_402 = arith.constant 6 : i32
    %467 = arith.addi %0, %c6_i32_402 : i32
    %c1_i32_403 = arith.constant 1 : i32
    %468 = arith.addi %467, %c1_i32_403 : i32
    %c0_404 = arith.constant 0 : index
    %469 = arith.index_cast %468 : i32 to index
    %c1_405 = arith.constant 1 : index
    %c0_406 = arith.constant 0 : index
    %470 = vector.load %arg2[%c0_404, %469, %c1_405, %c0_406] : memref<1x18x18x4xbf16, #tpu.memory_space<vmem>>, vector<1x1x16x4xbf16>
    %471 = vector.shape_cast %470 : vector<1x1x16x4xbf16> to vector<16x4xbf16>
    %cst_407 = arith.constant dense<0.000000e+00> : vector<16x8xf32>
    %472 = tpu.matmul %471, %10, %cst_407 {dimension_numbers = #tpu.dot_dimension_numbers<[1], [0], [0], [1], [0, 0, 1, 1], [], []>} : vector<16x4xbf16>, vector<4x8xbf16>, vector<16x8xf32> -> vector<16x8xf32>
    %473 = arith.addf %466, %472 : vector<16x8xf32>
    %c6_i32_408 = arith.constant 6 : i32
    %474 = arith.addi %0, %c6_i32_408 : i32
    %c1_i32_409 = arith.constant 1 : i32
    %475 = arith.addi %474, %c1_i32_409 : i32
    %c0_410 = arith.constant 0 : index
    %476 = arith.index_cast %475 : i32 to index
    %c2_411 = arith.constant 2 : index
    %c0_412 = arith.constant 0 : index
    %477 = vector.load %arg2[%c0_410, %476, %c2_411, %c0_412] : memref<1x18x18x4xbf16, #tpu.memory_space<vmem>>, vector<1x1x16x4xbf16>
    %478 = vector.shape_cast %477 : vector<1x1x16x4xbf16> to vector<16x4xbf16>
    %cst_413 = arith.constant dense<0.000000e+00> : vector<16x8xf32>
    %479 = tpu.matmul %478, %12, %cst_413 {dimension_numbers = #tpu.dot_dimension_numbers<[1], [0], [0], [1], [0, 0, 1, 1], [], []>} : vector<16x4xbf16>, vector<4x8xbf16>, vector<16x8xf32> -> vector<16x8xf32>
    %480 = arith.addf %473, %479 : vector<16x8xf32>
    %c6_i32_414 = arith.constant 6 : i32
    %481 = arith.addi %0, %c6_i32_414 : i32
    %c2_i32_415 = arith.constant 2 : i32
    %482 = arith.addi %481, %c2_i32_415 : i32
    %c0_416 = arith.constant 0 : index
    %483 = arith.index_cast %482 : i32 to index
    %c0_417 = arith.constant 0 : index
    %c0_418 = arith.constant 0 : index
    %484 = vector.load %arg2[%c0_416, %483, %c0_417, %c0_418] : memref<1x18x18x4xbf16, #tpu.memory_space<vmem>>, vector<1x1x16x4xbf16>
    %485 = vector.shape_cast %484 : vector<1x1x16x4xbf16> to vector<16x4xbf16>
    %cst_419 = arith.constant dense<0.000000e+00> : vector<16x8xf32>
    %486 = tpu.matmul %485, %14, %cst_419 {dimension_numbers = #tpu.dot_dimension_numbers<[1], [0], [0], [1], [0, 0, 1, 1], [], []>} : vector<16x4xbf16>, vector<4x8xbf16>, vector<16x8xf32> -> vector<16x8xf32>
    %487 = arith.addf %480, %486 : vector<16x8xf32>
    %c6_i32_420 = arith.constant 6 : i32
    %488 = arith.addi %0, %c6_i32_420 : i32
    %c2_i32_421 = arith.constant 2 : i32
    %489 = arith.addi %488, %c2_i32_421 : i32
    %c0_422 = arith.constant 0 : index
    %490 = arith.index_cast %489 : i32 to index
    %c1_423 = arith.constant 1 : index
    %c0_424 = arith.constant 0 : index
    %491 = vector.load %arg2[%c0_422, %490, %c1_423, %c0_424] : memref<1x18x18x4xbf16, #tpu.memory_space<vmem>>, vector<1x1x16x4xbf16>
    %492 = vector.shape_cast %491 : vector<1x1x16x4xbf16> to vector<16x4xbf16>
    %cst_425 = arith.constant dense<0.000000e+00> : vector<16x8xf32>
    %493 = tpu.matmul %492, %16, %cst_425 {dimension_numbers = #tpu.dot_dimension_numbers<[1], [0], [0], [1], [0, 0, 1, 1], [], []>} : vector<16x4xbf16>, vector<4x8xbf16>, vector<16x8xf32> -> vector<16x8xf32>
    %494 = arith.addf %487, %493 : vector<16x8xf32>
    %c6_i32_426 = arith.constant 6 : i32
    %495 = arith.addi %0, %c6_i32_426 : i32
    %c2_i32_427 = arith.constant 2 : i32
    %496 = arith.addi %495, %c2_i32_427 : i32
    %c0_428 = arith.constant 0 : index
    %497 = arith.index_cast %496 : i32 to index
    %c2_429 = arith.constant 2 : index
    %c0_430 = arith.constant 0 : index
    %498 = vector.load %arg2[%c0_428, %497, %c2_429, %c0_430] : memref<1x18x18x4xbf16, #tpu.memory_space<vmem>>, vector<1x1x16x4xbf16>
    %499 = vector.shape_cast %498 : vector<1x1x16x4xbf16> to vector<16x4xbf16>
    %cst_431 = arith.constant dense<0.000000e+00> : vector<16x8xf32>
    %500 = tpu.matmul %499, %18, %cst_431 {dimension_numbers = #tpu.dot_dimension_numbers<[1], [0], [0], [1], [0, 0, 1, 1], [], []>} : vector<16x4xbf16>, vector<4x8xbf16>, vector<16x8xf32> -> vector<16x8xf32>
    %501 = arith.addf %494, %500 : vector<16x8xf32>
    %502 = vector.broadcast %19 : vector<1x8xf32> to vector<16x8xf32>
    %503 = arith.addf %501, %502 : vector<16x8xf32>
    %cst_432 = arith.constant 0.000000e+00 : f32
    %504 = vector.broadcast %cst_432 : f32 to vector<16x8xf32>
    %505 = arith.maximumf %503, %504 : vector<16x8xf32>
    %506 = arith.truncf %505 : vector<16x8xf32> to vector<16x8xbf16>
    %c0_433 = arith.constant 0 : index
    %c6 = arith.constant 6 : index
    %c0_434 = arith.constant 0 : index
    %c0_435 = arith.constant 0 : index
    %507 = vector.load %arg5[%c0_433, %c6, %c0_434, %c0_435] : memref<1x8x16x8xbf16, #tpu.memory_space<vmem>>, vector<1x1x16x8xbf16>
    %508 = vector.shape_cast %507 : vector<1x1x16x8xbf16> to vector<16x8xbf16>
    %509 = vector.shape_cast %506 : vector<16x8xbf16> to vector<1x1x16x8xbf16>
    tpu.vector_store %arg5[%c0_433, %c6, %c0_434, %c0_435], %509 {strides = array<i32>} : memref<1x8x16x8xbf16, #tpu.memory_space<vmem>>, vector<1x1x16x8xbf16>,
    %c7_i32 = arith.constant 7 : i32
    %510 = arith.addi %0, %c7_i32 : i32
    %c0_i32_436 = arith.constant 0 : i32
    %511 = arith.addi %510, %c0_i32_436 : i32
    %c0_437 = arith.constant 0 : index
    %512 = arith.index_cast %511 : i32 to index
    %c0_438 = arith.constant 0 : index
    %c0_439 = arith.constant 0 : index
    %513 = vector.load %arg2[%c0_437, %512, %c0_438, %c0_439] : memref<1x18x18x4xbf16, #tpu.memory_space<vmem>>, vector<1x1x16x4xbf16>
    %514 = vector.shape_cast %513 : vector<1x1x16x4xbf16> to vector<16x4xbf16>
    %cst_440 = arith.constant dense<0.000000e+00> : vector<16x8xf32>
    %515 = tpu.matmul %514, %2, %cst_440 {dimension_numbers = #tpu.dot_dimension_numbers<[1], [0], [0], [1], [0, 0, 1, 1], [], []>} : vector<16x4xbf16>, vector<4x8xbf16>, vector<16x8xf32> -> vector<16x8xf32>
    %c7_i32_441 = arith.constant 7 : i32
    %516 = arith.addi %0, %c7_i32_441 : i32
    %c0_i32_442 = arith.constant 0 : i32
    %517 = arith.addi %516, %c0_i32_442 : i32
    %c0_443 = arith.constant 0 : index
    %518 = arith.index_cast %517 : i32 to index
    %c1_444 = arith.constant 1 : index
    %c0_445 = arith.constant 0 : index
    %519 = vector.load %arg2[%c0_443, %518, %c1_444, %c0_445] : memref<1x18x18x4xbf16, #tpu.memory_space<vmem>>, vector<1x1x16x4xbf16>
    %520 = vector.shape_cast %519 : vector<1x1x16x4xbf16> to vector<16x4xbf16>
    %cst_446 = arith.constant dense<0.000000e+00> : vector<16x8xf32>
    %521 = tpu.matmul %520, %4, %cst_446 {dimension_numbers = #tpu.dot_dimension_numbers<[1], [0], [0], [1], [0, 0, 1, 1], [], []>} : vector<16x4xbf16>, vector<4x8xbf16>, vector<16x8xf32> -> vector<16x8xf32>
    %522 = arith.addf %515, %521 : vector<16x8xf32>
    %c7_i32_447 = arith.constant 7 : i32
    %523 = arith.addi %0, %c7_i32_447 : i32
    %c0_i32_448 = arith.constant 0 : i32
    %524 = arith.addi %523, %c0_i32_448 : i32
    %c0_449 = arith.constant 0 : index
    %525 = arith.index_cast %524 : i32 to index
    %c2_450 = arith.constant 2 : index
    %c0_451 = arith.constant 0 : index
    %526 = vector.load %arg2[%c0_449, %525, %c2_450, %c0_451] : memref<1x18x18x4xbf16, #tpu.memory_space<vmem>>, vector<1x1x16x4xbf16>
    %527 = vector.shape_cast %526 : vector<1x1x16x4xbf16> to vector<16x4xbf16>
    %cst_452 = arith.constant dense<0.000000e+00> : vector<16x8xf32>
    %528 = tpu.matmul %527, %6, %cst_452 {dimension_numbers = #tpu.dot_dimension_numbers<[1], [0], [0], [1], [0, 0, 1, 1], [], []>} : vector<16x4xbf16>, vector<4x8xbf16>, vector<16x8xf32> -> vector<16x8xf32>
    %529 = arith.addf %522, %528 : vector<16x8xf32>
    %c7_i32_453 = arith.constant 7 : i32
    %530 = arith.addi %0, %c7_i32_453 : i32
    %c1_i32_454 = arith.constant 1 : i32
    %531 = arith.addi %530, %c1_i32_454 : i32
    %c0_455 = arith.constant 0 : index
    %532 = arith.index_cast %531 : i32 to index
    %c0_456 = arith.constant 0 : index
    %c0_457 = arith.constant 0 : index
    %533 = vector.load %arg2[%c0_455, %532, %c0_456, %c0_457] : memref<1x18x18x4xbf16, #tpu.memory_space<vmem>>, vector<1x1x16x4xbf16>
    %534 = vector.shape_cast %533 : vector<1x1x16x4xbf16> to vector<16x4xbf16>
    %cst_458 = arith.constant dense<0.000000e+00> : vector<16x8xf32>
    %535 = tpu.matmul %534, %8, %cst_458 {dimension_numbers = #tpu.dot_dimension_numbers<[1], [0], [0], [1], [0, 0, 1, 1], [], []>} : vector<16x4xbf16>, vector<4x8xbf16>, vector<16x8xf32> -> vector<16x8xf32>
    %536 = arith.addf %529, %535 : vector<16x8xf32>
    %c7_i32_459 = arith.constant 7 : i32
    %537 = arith.addi %0, %c7_i32_459 : i32
    %c1_i32_460 = arith.constant 1 : i32
    %538 = arith.addi %537, %c1_i32_460 : i32
    %c0_461 = arith.constant 0 : index
    %539 = arith.index_cast %538 : i32 to index
    %c1_462 = arith.constant 1 : index
    %c0_463 = arith.constant 0 : index
    %540 = vector.load %arg2[%c0_461, %539, %c1_462, %c0_463] : memref<1x18x18x4xbf16, #tpu.memory_space<vmem>>, vector<1x1x16x4xbf16>
    %541 = vector.shape_cast %540 : vector<1x1x16x4xbf16> to vector<16x4xbf16>
    %cst_464 = arith.constant dense<0.000000e+00> : vector<16x8xf32>
    %542 = tpu.matmul %541, %10, %cst_464 {dimension_numbers = #tpu.dot_dimension_numbers<[1], [0], [0], [1], [0, 0, 1, 1], [], []>} : vector<16x4xbf16>, vector<4x8xbf16>, vector<16x8xf32> -> vector<16x8xf32>
    %543 = arith.addf %536, %542 : vector<16x8xf32>
    %c7_i32_465 = arith.constant 7 : i32
    %544 = arith.addi %0, %c7_i32_465 : i32
    %c1_i32_466 = arith.constant 1 : i32
    %545 = arith.addi %544, %c1_i32_466 : i32
    %c0_467 = arith.constant 0 : index
    %546 = arith.index_cast %545 : i32 to index
    %c2_468 = arith.constant 2 : index
    %c0_469 = arith.constant 0 : index
    %547 = vector.load %arg2[%c0_467, %546, %c2_468, %c0_469] : memref<1x18x18x4xbf16, #tpu.memory_space<vmem>>, vector<1x1x16x4xbf16>
    %548 = vector.shape_cast %547 : vector<1x1x16x4xbf16> to vector<16x4xbf16>
    %cst_470 = arith.constant dense<0.000000e+00> : vector<16x8xf32>
    %549 = tpu.matmul %548, %12, %cst_470 {dimension_numbers = #tpu.dot_dimension_numbers<[1], [0], [0], [1], [0, 0, 1, 1], [], []>} : vector<16x4xbf16>, vector<4x8xbf16>, vector<16x8xf32> -> vector<16x8xf32>
    %550 = arith.addf %543, %549 : vector<16x8xf32>
    %c7_i32_471 = arith.constant 7 : i32
    %551 = arith.addi %0, %c7_i32_471 : i32
    %c2_i32_472 = arith.constant 2 : i32
    %552 = arith.addi %551, %c2_i32_472 : i32
    %c0_473 = arith.constant 0 : index
    %553 = arith.index_cast %552 : i32 to index
    %c0_474 = arith.constant 0 : index
    %c0_475 = arith.constant 0 : index
    %554 = vector.load %arg2[%c0_473, %553, %c0_474, %c0_475] : memref<1x18x18x4xbf16, #tpu.memory_space<vmem>>, vector<1x1x16x4xbf16>
    %555 = vector.shape_cast %554 : vector<1x1x16x4xbf16> to vector<16x4xbf16>
    %cst_476 = arith.constant dense<0.000000e+00> : vector<16x8xf32>
    %556 = tpu.matmul %555, %14, %cst_476 {dimension_numbers = #tpu.dot_dimension_numbers<[1], [0], [0], [1], [0, 0, 1, 1], [], []>} : vector<16x4xbf16>, vector<4x8xbf16>, vector<16x8xf32> -> vector<16x8xf32>
    %557 = arith.addf %550, %556 : vector<16x8xf32>
    %c7_i32_477 = arith.constant 7 : i32
    %558 = arith.addi %0, %c7_i32_477 : i32
    %c2_i32_478 = arith.constant 2 : i32
    %559 = arith.addi %558, %c2_i32_478 : i32
    %c0_479 = arith.constant 0 : index
    %560 = arith.index_cast %559 : i32 to index
    %c1_480 = arith.constant 1 : index
    %c0_481 = arith.constant 0 : index
    %561 = vector.load %arg2[%c0_479, %560, %c1_480, %c0_481] : memref<1x18x18x4xbf16, #tpu.memory_space<vmem>>, vector<1x1x16x4xbf16>
    %562 = vector.shape_cast %561 : vector<1x1x16x4xbf16> to vector<16x4xbf16>
    %cst_482 = arith.constant dense<0.000000e+00> : vector<16x8xf32>
    %563 = tpu.matmul %562, %16, %cst_482 {dimension_numbers = #tpu.dot_dimension_numbers<[1], [0], [0], [1], [0, 0, 1, 1], [], []>} : vector<16x4xbf16>, vector<4x8xbf16>, vector<16x8xf32> -> vector<16x8xf32>
    %564 = arith.addf %557, %563 : vector<16x8xf32>
    %c7_i32_483 = arith.constant 7 : i32
    %565 = arith.addi %0, %c7_i32_483 : i32
    %c2_i32_484 = arith.constant 2 : i32
    %566 = arith.addi %565, %c2_i32_484 : i32
    %c0_485 = arith.constant 0 : index
    %567 = arith.index_cast %566 : i32 to index
    %c2_486 = arith.constant 2 : index
    %c0_487 = arith.constant 0 : index
    %568 = vector.load %arg2[%c0_485, %567, %c2_486, %c0_487] : memref<1x18x18x4xbf16, #tpu.memory_space<vmem>>, vector<1x1x16x4xbf16>
    %569 = vector.shape_cast %568 : vector<1x1x16x4xbf16> to vector<16x4xbf16>
    %cst_488 = arith.constant dense<0.000000e+00> : vector<16x8xf32>
    %570 = tpu.matmul %569, %18, %cst_488 {dimension_numbers = #tpu.dot_dimension_numbers<[1], [0], [0], [1], [0, 0, 1, 1], [], []>} : vector<16x4xbf16>, vector<4x8xbf16>, vector<16x8xf32> -> vector<16x8xf32>
    %571 = arith.addf %564, %570 : vector<16x8xf32>
    %572 = vector.broadcast %19 : vector<1x8xf32> to vector<16x8xf32>
    %573 = arith.addf %571, %572 : vector<16x8xf32>
    %cst_489 = arith.constant 0.000000e+00 : f32
    %574 = vector.broadcast %cst_489 : f32 to vector<16x8xf32>
    %575 = arith.maximumf %573, %574 : vector<16x8xf32>
    %576 = arith.truncf %575 : vector<16x8xf32> to vector<16x8xbf16>
    %c0_490 = arith.constant 0 : index
    %c7 = arith.constant 7 : index
    %c0_491 = arith.constant 0 : index
    %c0_492 = arith.constant 0 : index
    %577 = vector.load %arg5[%c0_490, %c7, %c0_491, %c0_492] : memref<1x8x16x8xbf16, #tpu.memory_space<vmem>>, vector<1x1x16x8xbf16>
    %578 = vector.shape_cast %577 : vector<1x1x16x8xbf16> to vector<16x8xbf16>
    %579 = vector.shape_cast %576 : vector<16x8xbf16> to vector<1x1x16x8xbf16>
    tpu.vector_store %arg5[%c0_490, %c7, %c0_491, %c0_492], %579 {strides = array<i32>} : memref<1x8x16x8xbf16, #tpu.memory_space<vmem>>, vector<1x1x16x8xbf16>,
    return
  }
  func.func @transform_0(%arg0: i32, %arg1: i32) -> (i32, i32, i32, i32) {
    %c0_i32 = arith.constant 0 : i32
    %c0_i32_0 = arith.constant 0 : i32
    %c0_i32_1 = arith.constant 0 : i32
    %c0_i32_2 = arith.constant 0 : i32
    return %arg0, %c0_i32, %c0_i32_0, %c0_i32_1 : i32, i32, i32, i32
  }
  func.func @transform_1(%arg0: i32, %arg1: i32) -> (i32, i32, i32, i32) {
    %c0_i32 = arith.constant 0 : i32
    %c0_i32_0 = arith.constant 0 : i32
    %c0_i32_1 = arith.constant 0 : i32
    %c0_i32_2 = arith.constant 0 : i32
    %c0_i32_3 = arith.constant 0 : i32
    return %c0_i32, %c0_i32_0, %c0_i32_1, %c0_i32_2 : i32, i32, i32, i32
  }
  func.func @transform_2(%arg0: i32, %arg1: i32) -> (i32, i32) {
    %c0_i32 = arith.constant 0 : i32
    %c0_i32_0 = arith.constant 0 : i32
    %c0_i32_1 = arith.constant 0 : i32
    return %c0_i32, %c0_i32_0 : i32, i32
  }
  func.func @transform_3(%arg0: i32, %arg1: i32) -> (i32, i32, i32, i32) {
    %c0_i32 = arith.constant 0 : i32
    %c0_i32_0 = arith.constant 0 : i32
    %c0_i32_1 = arith.constant 0 : i32
    return %arg0, %arg1, %c0_i32, %c0_i32_0 : i32, i32, i32, i32
  }
}

</mosaic_0001>

<llo_original>
// kernel: tpu_custom_call.1
$region0: #{tpu_custom_call.1}
  #allocation0 [shape = 'u32[]', space=smem, size = 0x4, offset = 0x4, fixed_abs, tag = 'smem constant byte address 0x4 - core index']
  #allocation1 [shape = 'u32[72,128]{1,0:T(1,128)}', space=vmem, size = 0x9000, scoped, tag = 'internal scratch']
  %s0 = inlined_call_operand.vmem [shape: bf16[2,18,18,4], index: 0, kind: input, shape index: {}]
  %s1 = inlined_call_operand.vmem [shape: bf16[3,3,4,8], index: 1, kind: input, shape index: {}]
  %s2 = inlined_call_operand.vmem [shape: f32[1,8], index: 2, kind: input, shape index: {}]
  %s3 = inlined_call_operand.vmem [shape: bf16[2,16,16,8], index: 3, kind: output, shape index: {}]
  %s4 = sld [smem:[#allocation0]]
  $region45: #{tpu_custom_call.1} parent=0
    _
  %s6 = ssub.s32 1, %s4
  %s7 = scalar_select 0, %s6, %s4
  loop: start=0, step=1, limit=6
  $region2: #{tpu_custom_call.1} parent=0 // loop_pre_header
    _
  $region3: #{tpu_custom_call.1} parent=0 // loop_header
    %s9 = sphi 0, %s13
    %p10 = scmp.ge.s32.totalorder %s9, 6
    %s16 = sphi 0, %s28
    %s17 = sphi 0, %s24
    %s18 = sphi 0, %s16
    %s19 = sphi 0, %s17
    %s20 = sphi 0, %s18
    %s21 = sphi 0, %s19
    %s31 = sphi 0, %s33
    %s34 = sphi 0, %s31
    %s35 = sphi 0, %s34
    %s51 = sphi 0, %s35
    %s55 = sphi 0, %s55
    %s57 = sphi 0, %s55
    %s58 = sphi 0, %s57
    %s72 = sphi 0, %s58
    %s76 = sphi 0, %s76
    %s78 = sphi 0, %s76
    %s79 = sphi 0, %s78
    %s93 = sphi 0, %s79
    %s101 = sphi 0, %s103
    %s104 = sphi 0, %s101
    %s105 = sphi 0, %s104
    %s121 = sphi 0, %s105
  $region4: #{tpu_custom_call.1} parent=0 // loop_header_branch
    %12 = sbr.rel (%p10) target = $region8
  $region5: #{tpu_custom_call.1} parent=0 // loop_body
    %s14 = ssub.s32 %s9, 1
    %s15 = ssub.s32 %s9, 2
    %s22 = sadd.s32 1, %s17
    %p23 = scmp.ge.s32.totalorder %s22, 2
    %s24 = scalar_select %p23, 0, %s22
    %s25 = sadd.s32 1, %s16
    %s26 = scalar_select %p23, %s25, %s16
    %p27 = scmp.ge.s32.totalorder %s26, 2
    %s28 = scalar_select %p27, 0, %s26
    %s29 = ssub.s32 %s16, %s28
    %p30 = scmp.eq.s32.totalorder %s29, 0
    %s32 = sadd.s32 %s31, 1
    %s33 = scalar_select %p30, %s31, %s32
    %p36 = pneg %p30
    %p37 = scmp.eq.s32.totalorder %s9, 3
    %p38 = por %p36, %p37
    %p39 = scmp.ne.s32.totalorder %s31, %s34
    %p40 = scmp.eq.s32.totalorder %s9, 0
    %p41 = por %p39, %p40
    %p42 = scmp.ne.s32.totalorder %s31, %s34
    %p43 = scmp.eq.s32.totalorder %s14, 3
    %p44 = por %p42, %p43
    %p45 = scmp.ne.s32.totalorder %s34, %s35
    %p46 = scmp.eq.s32.totalorder %s14, 0
    %p47 = por %p45, %p46
    %p48 = scmp.ne.s32.totalorder %s34, %s35
    %p49 = scmp.eq.s32.totalorder %s15, 3
    %p50 = por %p48, %p49
    %p52 = scmp.ne.s32.totalorder %s35, %s51
    %p53 = scmp.eq.s32.totalorder %s15, 0
    %p54 = por %p52, %p53
    %s56 = sadd.s32 %s55, 1
    %p59 = scmp.eq.s32.totalorder %s9, 3
    %p60 = scmp.ne.s32.totalorder %s55, %s57
    %p61 = scmp.eq.s32.totalorder %s9, 0
    %p62 = por %p60, %p61
    %p63 = scmp.ne.s32.totalorder %s55, %s57
    %p64 = scmp.eq.s32.totalorder %s14, 3
    %p65 = por %p63, %p64
    %p66 = scmp.ne.s32.totalorder %s57, %s58
    %p67 = scmp.eq.s32.totalorder %s14, 0
    %p68 = por %p66, %p67
    %p69 = scmp.ne.s32.totalorder %s57, %s58
    %p70 = scmp.eq.s32.totalorder %s15, 3
    %p71 = por %p69, %p70
    %p73 = scmp.ne.s32.totalorder %s58, %s72
    %p74 = scmp.eq.s32.totalorder %s15, 0
    %p75 = por %p73, %p74
    %s77 = sadd.s32 %s76, 1
    %p80 = scmp.eq.s32.totalorder %s9, 3
    %p81 = scmp.ne.s32.totalorder %s76, %s78
    %p82 = scmp.eq.s32.totalorder %s9, 0
    %p83 = por %p81, %p82
    %p84 = scmp.ne.s32.totalorder %s76, %s78
    %p85 = scmp.eq.s32.totalorder %s14, 3
    %p86 = por %p84, %p85
    %p87 = scmp.ne.s32.totalorder %s78, %s79
    %p88 = scmp.eq.s32.totalorder %s14, 0
    %p89 = por %p87, %p88
    %p90 = scmp.ne.s32.totalorder %s78, %s79
    %p91 = scmp.eq.s32.totalorder %s15, 3
    %p92 = por %p90, %p91
    %p94 = scmp.ne.s32.totalorder %s79, %s93
    %p95 = scmp.eq.s32.totalorder %s15, 0
    %p96 = por %p94, %p95
    %s97 = ssub.s32 %s16, %s28
    %s98 = ssub.s32 %s17, %s24
    %s99 = sor.u32 %s97, %s98
    %p100 = scmp.eq.s32.totalorder %s99, 0
    %s102 = sadd.s32 %s101, 1
    %s103 = scalar_select %p100, %s101, %s102
    %p106 = pneg %p100
    %p107 = scmp.eq.s32.totalorder %s9, 3
    %p108 = por %p106, %p107
    %p109 = scmp.ne.s32.totalorder %s101, %s104
    %p110 = scmp.eq.s32.totalorder %s9, 0
    %p111 = por %p109, %p110
    %p112 = scmp.ne.s32.totalorder %s101, %s104
    %p113 = scmp.eq.s32.totalorder %s14, 3
    %p114 = por %p112, %p113
    %p115 = scmp.ne.s32.totalorder %s104, %s105
    %p116 = scmp.eq.s32.totalorder %s14, 0
    %p117 = por %p115, %p116
    %p118 = scmp.ne.s32.totalorder %s104, %s105
    %p119 = scmp.eq.s32.totalorder %s15, 3
    %p120 = por %p118, %p119
    %p122 = scmp.ne.s32.totalorder %s105, %s121
    %p123 = scmp.eq.s32.totalorder %s15, 0
    %p124 = por %p122, %p123
    %p125 = scmp.le.s32.totalorder 1, %s9
    %p126 = scmp.lt.s32.totalorder %s9, 5
    %p127 = pnand %p125, %p126
    %p128 = pneg %p127
    // Predicated region
    $region9: #{tpu_custom_call.1} parent=5 // pred_check
      _
    $region10: #{tpu_custom_call.1} parent=5 // pred_check_branch
      %130 = sbr.rel (%p127) target = $region12
    $region11: #{tpu_custom_call.1} parent=5 // pred_region
      %s131 = ssub.s32 %s9, 1
      // Predicated region
      $region13: #{tpu_custom_call.1} parent=11 // pred_check
        %p132 = pneg %p68
      $region14: #{tpu_custom_call.1} parent=11 // pred_check_branch
        %134 = sbr.rel (%p132) target = $region16
      $region15: #{tpu_custom_call.1} parent=11 // pred_region
        _
      $region16: #{tpu_custom_call.1} parent=11 // pred_fallthru
        _
      // Predicated region
      $region17: #{tpu_custom_call.1} parent=11 // pred_check
        %p135 = pneg %p89
      $region18: #{tpu_custom_call.1} parent=11 // pred_check_branch
        %137 = sbr.rel (%p135) target = $region20
      $region19: #{tpu_custom_call.1} parent=11 // pred_region
        _
      $region20: #{tpu_custom_call.1} parent=11 // pred_fallthru
        _
    $region12: #{tpu_custom_call.1} parent=5 // pred_fallthru
      _
    %p138 = scmp.lt.s32.totalorder %s9, 4
    // Predicated region
    $region21: #{tpu_custom_call.1} parent=5 // pred_check
      %p139 = pneg %p138
    $region22: #{tpu_custom_call.1} parent=5 // pred_check_branch
      %141 = sbr.rel (%p139) target = $region24
    $region23: #{tpu_custom_call.1} parent=5 // pred_region
      // Predicated region
      $region25: #{tpu_custom_call.1} parent=23 // pred_check
        %p142 = pneg %p41
      $region26: #{tpu_custom_call.1} parent=23 // pred_check_branch
        %144 = sbr.rel (%p142) target = $region28
      $region27: #{tpu_custom_call.1} parent=23 // pred_region
        %p145 = scmp.lt.s32.totalorder %s16, 1
        %s146 = scalar_select %p145, %s16, 1
        %s147 = smul.addr %s146, 54
        %s148 = smul.addr %s147, 4
        %s149 = scalar_lea.vmem %s0, %s148
      $region28: #{tpu_custom_call.1} parent=23 // pred_fallthru
        _
    $region24: #{tpu_custom_call.1} parent=5 // pred_fallthru
      _
    %p150 = scmp.le.s32.totalorder 1, %s9
    %p151 = scmp.lt.s32.totalorder %s9, 5
    %p152 = pnand %p150, %p151
    %p153 = pneg %p152
    // Predicated region
    $region29: #{tpu_custom_call.1} parent=5 // pred_check
      _
    $region30: #{tpu_custom_call.1} parent=5 // pred_check_branch
      %155 = sbr.rel (%p152) target = $region32
    $region31: #{tpu_custom_call.1} parent=5 // pred_region
      %s156 = ssub.s32 %s9, 1
      %p157 = scmp.lt.s32.totalorder %s18, 1
      %s158 = scalar_select %p157, %s18, 1
      %s159 = smul.addr %s158, 54
      %s160 = smul.addr %s159, 4
      %s161 = scalar_lea.vmem %s0, %s160
      %p162 = pneg %p47
      %p163 = pneg %p44
      %p164 = pneg %p68
      %p165 = pneg %p65
      %p166 = pneg %p89
      %p167 = pneg %p86
      %p168 = pneg %p117
      %p169 = pneg %p114
      %s170 = smul.u32 8, %s19
      %p171 = scmp.lt.s32.totalorder %s18, 1
      %s172 = scalar_select %p171, %s18, 1
      %p173 = scmp.lt.s32.totalorder %s170, 15
      %s174 = scalar_select %p173, %s170, 15
      %s175 = smul.addr %s174, 2
      %s176 = smul.addr %s172, 32
      %s177 = sadd.s32 %s175, %s176
      %s178 = smul.addr %s177, 4
      %s179 = scalar_lea.vmem %s3, %s178
      %p180 = scmp.lt.s32.totalorder %s18, 1
      %s181 = scalar_select %p180, %s18, 1
      %s182 = smul.addr %s181, 54
      %s183 = smul.addr %s182, 4
      %s184 = scalar_lea.vmem %s0, %s183
      %s185 = smul.u32 8, %s19
      %p186 = scmp.lt.s32.totalorder %s18, 1
      %s187 = scalar_select %p186, %s18, 1
      %p188 = scmp.lt.s32.totalorder %s185, 15
      %s189 = scalar_select %p188, %s185, 15
      %s190 = smul.addr %s189, 2
      %s191 = smul.addr %s187, 32
      %s192 = sadd.s32 %s190, %s191
      %s193 = smul.addr %s192, 4
      %s194 = scalar_lea.vmem %s3, %s193
      %s195 = smul.u32 8, %s19
      %s197 = smul.u32 %s19, 8
      %v198 = vld [vmem:[%s1] sm:$0x3]
      %s199 = scalar_lea.vmem %s1, 2
      %v200 = vld [vmem:[%s199] sm:$0x3]
      %s201 = scalar_lea.vmem %s1, 4
      %v202 = vld [vmem:[%s201] sm:$0x3]
      %s203 = scalar_lea.vmem %s1, 6
      %v204 = vld [vmem:[%s203] sm:$0x3]
      %s205 = scalar_lea.vmem %s1, 8
      %v206 = vld [vmem:[%s205] sm:$0x3]
      %s207 = scalar_lea.vmem %s1, 10
      %v208 = vld [vmem:[%s207] sm:$0x3]
      %s209 = scalar_lea.vmem %s1, 12
      %v210 = vld [vmem:[%s209] sm:$0x3]
      %s211 = scalar_lea.vmem %s1, 14
      %v212 = vld [vmem:[%s211] sm:$0x3]
      %s213 = scalar_lea.vmem %s1, 16
      %v214 = vld [vmem:[%s213] sm:$0x3]
      %v215 = vld [vmem:[%s2] sm:$0x1]
      %s216 = smul.u32 %s197, 3
      %s217 = smul.addr %s216, 4
      %s218 = scalar_lea.vmem %s184, %s217
      %v219 = vld [vmem:[%s218] sm:$0xf]
      %v220 = vld [vmem:[%s218 + $0x4] sm:$0xf]
      %v221 = vld [vmem:[%s218 + $0x8] sm:$0x1]
      %v225 = vunpack.c.l.b16 %v219
      %v226 = vunpack.c.l.b16 %v220
      %v227 = vunpack.c.l.b16 %v221
      %v228 = vpack.c.b16 %v226, %v225
      %v229 = vpack.c.b16 %v227, %v227
      %vm230 = vsmask.f32 7424
      %v232 = vshrl.u32 %v228, 16
      %v234 = vshll.u32 %v228, 16
      %v236 = vrot.slane %v234, 1
      %v237 = vor.u32 %v232, %v236
      %v239 = vshll.u32 %v229, 16
      %v241 = vrot.slane %v239, 1
      %v242 = vsel %vm230, %v237, %v241
      %vm243 = vcmask 31744
      %v245 = vsel %vm243, %v242, 0
      %vm247 = vcmask 1041408
      %v249 = vsel %vm247, %v200, 0
      %251 = vmatpush.bf16.msra.mxu0 0
      %252 = vmatpush.bf16.msra.mxu0 0
      %253 = vmatpush.bf16.msra.mxu0 0
      %254 = vmatpush.bf16.msra.mxu0 0
      %255 = vmatpush.bf16.msra.mxu0 0
      %256 = vmatpush.bf16.msra.mxu0 0
      %257 = vmatpush.bf16.msra.mxu0 0
      %258 = vmatpush.bf16.msra.mxu0 %v249
      %259 = vmatmul.bf16.gmra.mxu0 %v245
      %v260 = vpop.f32.mrf.mxu0
      %v261 = vadd.f32 0.0, %v260
      %v262 = vpop.f32.mrf.mxu0
      %v263 = vadd.f32 0.0, %v262
      %264 = vdwg.mxu0
      %v265 = vsel %vm243, %v228, 0
      %v268 = vsel %vm247, %v198, 0
      %270 = vmatpush.bf16.msra.mxu0 0
      %271 = vmatpush.bf16.msra.mxu0 0
      %272 = vmatpush.bf16.msra.mxu0 0
      %273 = vmatpush.bf16.msra.mxu0 0
      %274 = vmatpush.bf16.msra.mxu0 0
      %275 = vmatpush.bf16.msra.mxu0 0
      %276 = vmatpush.bf16.msra.mxu0 0
      %277 = vmatpush.bf16.msra.mxu0 %v268
      %278 = vmatmul.bf16.gmra.mxu0 %v265
      %v279 = vpop.f32.mrf.mxu0
      %v280 = vadd.f32 %v261, %v279
      %v281 = vpop.f32.mrf.mxu0
      %v282 = vadd.f32 %v263, %v281
      %283 = vdwg.mxu0
      %v284 = vld [vmem:[%s218] sm:$0xe]
      %v286 = vunpack.c.l.b16 %v284
      %v287 = vpack.c.b16 %v226, %v286
      %vm288 = vcmask 1046528
      %v289 = vrot.slane %v287, 1
      %v290 = vrot.slane %v229, 1
      %v291 = vsel %vm288, %v289, %v290
      %v293 = vsel %vm243, %v291, 0
      %v296 = vsel %vm247, %v202, 0
      %298 = vmatpush.bf16.msra.mxu0 0
      %299 = vmatpush.bf16.msra.mxu0 0
      %300 = vmatpush.bf16.msra.mxu0 0
      %301 = vmatpush.bf16.msra.mxu0 0
      %302 = vmatpush.bf16.msra.mxu0 0
      %303 = vmatpush.bf16.msra.mxu0 0
      %304 = vmatpush.bf16.msra.mxu0 0
      %305 = vmatpush.bf16.msra.mxu0 %v296
      %306 = vmatmul.bf16.gmra.mxu0 %v293
      %v307 = vpop.f32.mrf.mxu0
      %v308 = vadd.f32 0.0, %v307
      %v309 = vpop.f32.mrf.mxu0
      %v310 = vadd.f32 0.0, %v309
      %311 = vdwg.mxu0
      %v312 = vadd.f32 %v280, %v308
      %v313 = vadd.f32 %v282, %v310
      %s314 = sadd.s32 %s197, 1
      %s315 = smul.u32 %s314, 3
      %s316 = smul.addr %s315, 4
      %s317 = scalar_lea.vmem %s184, %s316
      %v318 = vld [vmem:[%s317] sm:$0xf]
      %v319 = vld [vmem:[%s317 + $0x4] sm:$0xf]
      %v322 = vunpack.c.l.b16 %v318
      %v323 = vunpack.c.l.b16 %v319
      %v324 = vpack.c.b16 %v323, %v322
      %v326 = vsel %vm243, %v324, 0
      %v329 = vsel %vm247, %v204, 0
      %331 = vmatpush.bf16.msra.mxu0 0
      %332 = vmatpush.bf16.msra.mxu0 0
      %333 = vmatpush.bf16.msra.mxu0 0
      %334 = vmatpush.bf16.msra.mxu0 0
      %335 = vmatpush.bf16.msra.mxu0 0
      %336 = vmatpush.bf16.msra.mxu0 0
      %337 = vmatpush.bf16.msra.mxu0 0
      %338 = vmatpush.bf16.msra.mxu0 %v329
      %339 = vmatmul.bf16.gmra.mxu0 %v326
      %v340 = vpop.f32.mrf.mxu0
      %v341 = vadd.f32 0.0, %v340
      %v342 = vpop.f32.mrf.mxu0
      %v343 = vadd.f32 0.0, %v342
      %344 = vdwg.mxu0
      %v345 = vadd.f32 %v312, %v341
      %v346 = vadd.f32 %v313, %v343
      %v347 = vld [vmem:[%s317] sm:$0xf]
      %v348 = vld [vmem:[%s317 + $0x4] sm:$0xf]
      %v349 = vld [vmem:[%s317 + $0x8] sm:$0x1]
      %v353 = vunpack.c.l.b16 %v347
      %v354 = vunpack.c.l.b16 %v348
      %v355 = vunpack.c.l.b16 %v349
      %v356 = vpack.c.b16 %v354, %v353
      %v357 = vpack.c.b16 %v355, %v355
      %v359 = vshrl.u32 %v356, 16
      %v361 = vshll.u32 %v356, 16
      %v363 = vrot.slane %v361, 1
      %v364 = vor.u32 %v359, %v363
      %v366 = vshll.u32 %v357, 16
      %v368 = vrot.slane %v366, 1
      %v369 = vsel %vm230, %v364, %v368
      %v371 = vsel %vm243, %v369, 0
      %v374 = vsel %vm247, %v206, 0
      %376 = vmatpush.bf16.msra.mxu0 0
      %377 = vmatpush.bf16.msra.mxu0 0
      %378 = vmatpush.bf16.msra.mxu0 0
      %379 = vmatpush.bf16.msra.mxu0 0
      %380 = vmatpush.bf16.msra.mxu0 0
      %381 = vmatpush.bf16.msra.mxu0 0
      %382 = vmatpush.bf16.msra.mxu0 0
      %383 = vmatpush.bf16.msra.mxu0 %v374
      %384 = vmatmul.bf16.gmra.mxu0 %v371
      %v385 = vpop.f32.mrf.mxu0
      %v386 = vadd.f32 0.0, %v385
      %v387 = vpop.f32.mrf.mxu0
      %v388 = vadd.f32 0.0, %v387
      %389 = vdwg.mxu0
      %v390 = vadd.f32 %v345, %v386
      %v391 = vadd.f32 %v346, %v388
      %v392 = vld [vmem:[%s317] sm:$0xe]
      %v394 = vunpack.c.l.b16 %v392
      %v395 = vpack.c.b16 %v354, %v394
      %v396 = vrot.slane %v395, 1
      %v397 = vrot.slane %v357, 1
      %v398 = vsel %vm288, %v396, %v397
      %v400 = vsel %vm243, %v398, 0
      %v403 = vsel %vm247, %v208, 0
      %405 = vmatpush.bf16.msra.mxu0 0
      %406 = vmatpush.bf16.msra.mxu0 0
      %407 = vmatpush.bf16.msra.mxu0 0
      %408 = vmatpush.bf16.msra.mxu0 0
      %409 = vmatpush.bf16.msra.mxu0 0
      %410 = vmatpush.bf16.msra.mxu0 0
      %411 = vmatpush.bf16.msra.mxu0 0
      %412 = vmatpush.bf16.msra.mxu0 %v403
      %413 = vmatmul.bf16.gmra.mxu0 %v400
      %v414 = vpop.f32.mrf.mxu0
      %v415 = vadd.f32 0.0, %v414
      %v416 = vpop.f32.mrf.mxu0
      %v417 = vadd.f32 0.0, %v416
      %418 = vdwg.mxu0
      %v419 = vadd.f32 %v390, %v415
      %v420 = vadd.f32 %v391, %v417
      %s421 = sadd.s32 %s197, 2
      %s422 = smul.u32 %s421, 3
      %s423 = smul.addr %s422, 4
      %s424 = scalar_lea.vmem %s184, %s423
      %v425 = vld [vmem:[%s424] sm:$0xf]
      %v426 = vld [vmem:[%s424 + $0x4] sm:$0xf]
      %v429 = vunpack.c.l.b16 %v425
      %v430 = vunpack.c.l.b16 %v426
      %v431 = vpack.c.b16 %v430, %v429
      %v433 = vsel %vm243, %v431, 0
      %v436 = vsel %vm247, %v210, 0
      %438 = vmatpush.bf16.msra.mxu0 0
      %439 = vmatpush.bf16.msra.mxu0 0
      %440 = vmatpush.bf16.msra.mxu0 0
      %441 = vmatpush.bf16.msra.mxu0 0
      %442 = vmatpush.bf16.msra.mxu0 0
      %443 = vmatpush.bf16.msra.mxu0 0
      %444 = vmatpush.bf16.msra.mxu0 0
      %445 = vmatpush.bf16.msra.mxu0 %v436
      %446 = vmatmul.bf16.gmra.mxu0 %v433
      %v447 = vpop.f32.mrf.mxu0
      %v448 = vadd.f32 0.0, %v447
      %v449 = vpop.f32.mrf.mxu0
      %v450 = vadd.f32 0.0, %v449
      %451 = vdwg.mxu0
      %v452 = vadd.f32 %v419, %v448
      %v453 = vadd.f32 %v420, %v450
      %v454 = vld [vmem:[%s424] sm:$0xf]
      %v455 = vld [vmem:[%s424 + $0x4] sm:$0xf]
      %v456 = vld [vmem:[%s424 + $0x8] sm:$0x1]
      %v460 = vunpack.c.l.b16 %v454
      %v461 = vunpack.c.l.b16 %v455
      %v462 = vunpack.c.l.b16 %v456
      %v463 = vpack.c.b16 %v461, %v460
      %v464 = vpack.c.b16 %v462, %v462
      %v466 = vshrl.u32 %v463, 16
      %v468 = vshll.u32 %v463, 16
      %v470 = vrot.slane %v468, 1
      %v471 = vor.u32 %v466, %v470
      %v473 = vshll.u32 %v464, 16
      %v475 = vrot.slane %v473, 1
      %v476 = vsel %vm230, %v471, %v475
      %v478 = vsel %vm243, %v476, 0
      %v481 = vsel %vm247, %v212, 0
      %483 = vmatpush.bf16.msra.mxu0 0
      %484 = vmatpush.bf16.msra.mxu0 0
      %485 = vmatpush.bf16.msra.mxu0 0
      %486 = vmatpush.bf16.msra.mxu0 0
      %487 = vmatpush.bf16.msra.mxu0 0
      %488 = vmatpush.bf16.msra.mxu0 0
      %489 = vmatpush.bf16.msra.mxu0 0
      %490 = vmatpush.bf16.msra.mxu0 %v481
      %491 = vmatmul.bf16.gmra.mxu0 %v478
      %v492 = vpop.f32.mrf.mxu0
      %v493 = vadd.f32 0.0, %v492
      %v494 = vpop.f32.mrf.mxu0
      %v495 = vadd.f32 0.0, %v494
      %496 = vdwg.mxu0
      %v497 = vadd.f32 %v452, %v493
      %v498 = vadd.f32 %v453, %v495
      %v499 = vld [vmem:[%s424] sm:$0xe]
      %v501 = vunpack.c.l.b16 %v499
      %v502 = vpack.c.b16 %v461, %v501
      %v503 = vrot.slane %v502, 1
      %v504 = vrot.slane %v464, 1
      %v505 = vsel %vm288, %v503, %v504
      %v507 = vsel %vm243, %v505, 0
      %v510 = vsel %vm247, %v214, 0
      %512 = vmatpush.bf16.msra.mxu0 0
      %513 = vmatpush.bf16.msra.mxu0 0
      %514 = vmatpush.bf16.msra.mxu0 0
      %515 = vmatpush.bf16.msra.mxu0 0
      %516 = vmatpush.bf16.msra.mxu0 0
      %517 = vmatpush.bf16.msra.mxu0 0
      %518 = vmatpush.bf16.msra.mxu0 0
      %519 = vmatpush.bf16.msra.mxu0 %v510
      %520 = vmatmul.bf16.gmra.mxu0 %v507
      %v521 = vpop.f32.mrf.mxu0
      %v522 = vadd.f32 0.0, %v521
      %v523 = vpop.f32.mrf.mxu0
      %v524 = vadd.f32 0.0, %v523
      %525 = vdwg.mxu0
      %v526 = vadd.f32 %v497, %v522
      %v527 = vadd.f32 %v498, %v524
      %v529 = vperm.slane %v215, 0
      %v531 = vadd.f32 %v526, %v529
      %v532 = vadd.f32 %v527, %v529
      %v533 = vmax.f32 %v531, 0.0
      %v534 = vmax.f32 %v532, 0.0
      %v535 = vpack.c.bf16 %v533, %v533
      %v536 = vpack.c.bf16 %v534, %v534
      %vm537 = vcmask 60416
      %538 = vst.msk [vmem:[%s194] sm:$0xf] %vm537, %v535
      %539 = vst.msk [vmem:[%s194 + $0x4] sm:$0xf] %vm537, %v536
      %v540 = vld [vmem:[%s317] sm:$0xf]
      %v541 = vld [vmem:[%s317 + $0x4] sm:$0xf]
      %v542 = vld [vmem:[%s317 + $0x8] sm:$0x1]
      %v546 = vunpack.c.l.b16 %v540
      %v547 = vunpack.c.l.b16 %v541
      %v548 = vunpack.c.l.b16 %v542
      %v549 = vpack.c.b16 %v547, %v546
      %v550 = vpack.c.b16 %v548, %v548
      %v552 = vshrl.u32 %v549, 16
      %v554 = vshll.u32 %v549, 16
      %v556 = vrot.slane %v554, 1
      %v557 = vor.u32 %v552, %v556
      %v559 = vshll.u32 %v550, 16
      %v561 = vrot.slane %v559, 1
      %v562 = vsel %vm230, %v557, %v561
      %v564 = vsel %vm243, %v562, 0
      %566 = vmatpush.bf16.msra.mxu0 0
      %567 = vmatpush.bf16.msra.mxu0 0
      %568 = vmatpush.bf16.msra.mxu0 0
      %569 = vmatpush.bf16.msra.mxu0 0
      %570 = vmatpush.bf16.msra.mxu0 0
      %571 = vmatpush.bf16.msra.mxu0 0
      %572 = vmatpush.bf16.msra.mxu0 0
      %573 = vmatpush.bf16.msra.mxu0 %v249
      %574 = vmatmul.bf16.gmra.mxu0 %v564
      %v575 = vpop.f32.mrf.mxu0
      %v576 = vadd.f32 0.0, %v575
      %v577 = vpop.f32.mrf.mxu0
      %v578 = vadd.f32 0.0, %v577
      %579 = vdwg.mxu0
      %v580 = vsel %vm243, %v549, 0
      %582 = vmatpush.bf16.msra.mxu0 0
      %583 = vmatpush.bf16.msra.mxu0 0
      %584 = vmatpush.bf16.msra.mxu0 0
      %585 = vmatpush.bf16.msra.mxu0 0
      %586 = vmatpush.bf16.msra.mxu0 0
      %587 = vmatpush.bf16.msra.mxu0 0
      %588 = vmatpush.bf16.msra.mxu0 0
      %589 = vmatpush.bf16.msra.mxu0 %v268
      %590 = vmatmul.bf16.gmra.mxu0 %v580
      %v591 = vpop.f32.mrf.mxu0
      %v592 = vadd.f32 %v576, %v591
      %v593 = vpop.f32.mrf.mxu0
      %v594 = vadd.f32 %v578, %v593
      %595 = vdwg.mxu0
      %v596 = vld [vmem:[%s317] sm:$0xe]
      %v598 = vunpack.c.l.b16 %v596
      %v599 = vpack.c.b16 %v547, %v598
      %v600 = vrot.slane %v599, 1
      %v601 = vrot.slane %v550, 1
      %v602 = vsel %vm288, %v600, %v601
      %v604 = vsel %vm243, %v602, 0
      %606 = vmatpush.bf16.msra.mxu0 0
      %607 = vmatpush.bf16.msra.mxu0 0
      %608 = vmatpush.bf16.msra.mxu0 0
      %609 = vmatpush.bf16.msra.mxu0 0
      %610 = vmatpush.bf16.msra.mxu0 0
      %611 = vmatpush.bf16.msra.mxu0 0
      %612 = vmatpush.bf16.msra.mxu0 0
      %613 = vmatpush.bf16.msra.mxu0 %v296
      %614 = vmatmul.bf16.gmra.mxu0 %v604
      %v615 = vpop.f32.mrf.mxu0
      %v616 = vadd.f32 0.0, %v615
      %v617 = vpop.f32.mrf.mxu0
      %v618 = vadd.f32 0.0, %v617
      %619 = vdwg.mxu0
      %v620 = vadd.f32 %v592, %v616
      %v621 = vadd.f32 %v594, %v618
      %v622 = vld [vmem:[%s424] sm:$0xf]
      %v623 = vld [vmem:[%s424 + $0x4] sm:$0xf]
      %v626 = vunpack.c.l.b16 %v622
      %v627 = vunpack.c.l.b16 %v623
      %v628 = vpack.c.b16 %v627, %v626
      %v630 = vsel %vm243, %v628, 0
      %632 = vmatpush.bf16.msra.mxu0 0
      %633 = vmatpush.bf16.msra.mxu0 0
      %634 = vmatpush.bf16.msra.mxu0 0
      %635 = vmatpush.bf16.msra.mxu0 0
      %636 = vmatpush.bf16.msra.mxu0 0
      %637 = vmatpush.bf16.msra.mxu0 0
      %638 = vmatpush.bf16.msra.mxu0 0
      %639 = vmatpush.bf16.msra.mxu0 %v329
      %640 = vmatmul.bf16.gmra.mxu0 %v630
      %v641 = vpop.f32.mrf.mxu0
      %v642 = vadd.f32 0.0, %v641
      %v643 = vpop.f32.mrf.mxu0
      %v644 = vadd.f32 0.0, %v643
      %645 = vdwg.mxu0
      %v646 = vadd.f32 %v620, %v642
      %v647 = vadd.f32 %v621, %v644
      %v648 = vld [vmem:[%s424] sm:$0xf]
      %v649 = vld [vmem:[%s424 + $0x4] sm:$0xf]
      %v650 = vld [vmem:[%s424 + $0x8] sm:$0x1]
      %v654 = vunpack.c.l.b16 %v648
      %v655 = vunpack.c.l.b16 %v649
      %v656 = vunpack.c.l.b16 %v650
      %v657 = vpack.c.b16 %v655, %v654
      %v658 = vpack.c.b16 %v656, %v656
      %v660 = vshrl.u32 %v657, 16
      %v662 = vshll.u32 %v657, 16
      %v664 = vrot.slane %v662, 1
      %v665 = vor.u32 %v660, %v664
      %v667 = vshll.u32 %v658, 16
      %v669 = vrot.slane %v667, 1
      %v670 = vsel %vm230, %v665, %v669
      %v672 = vsel %vm243, %v670, 0
      %674 = vmatpush.bf16.msra.mxu0 0
      %675 = vmatpush.bf16.msra.mxu0 0
      %676 = vmatpush.bf16.msra.mxu0 0
      %677 = vmatpush.bf16.msra.mxu0 0
      %678 = vmatpush.bf16.msra.mxu0 0
      %679 = vmatpush.bf16.msra.mxu0 0
      %680 = vmatpush.bf16.msra.mxu0 0
      %681 = vmatpush.bf16.msra.mxu0 %v374
      %682 = vmatmul.bf16.gmra.mxu0 %v672
      %v683 = vpop.f32.mrf.mxu0
      %v684 = vadd.f32 0.0, %v683
      %v685 = vpop.f32.mrf.mxu0
      %v686 = vadd.f32 0.0, %v685
      %687 = vdwg.mxu0
      %v688 = vadd.f32 %v646, %v684
      %v689 = vadd.f32 %v647, %v686
      %v690 = vld [vmem:[%s424] sm:$0xe]
      %v692 = vunpack.c.l.b16 %v690
      %v693 = vpack.c.b16 %v655, %v692
      %v694 = vrot.slane %v693, 1
      %v695 = vrot.slane %v658, 1
      %v696 = vsel %vm288, %v694, %v695
      %v698 = vsel %vm243, %v696, 0
      %700 = vmatpush.bf16.msra.mxu0 0
      %701 = vmatpush.bf16.msra.mxu0 0
      %702 = vmatpush.bf16.msra.mxu0 0
      %703 = vmatpush.bf16.msra.mxu0 0
      %704 = vmatpush.bf16.msra.mxu0 0
      %705 = vmatpush.bf16.msra.mxu0 0
      %706 = vmatpush.bf16.msra.mxu0 0
      %707 = vmatpush.bf16.msra.mxu0 %v403
      %708 = vmatmul.bf16.gmra.mxu0 %v698
      %v709 = vpop.f32.mrf.mxu0
      %v710 = vadd.f32 0.0, %v709
      %v711 = vpop.f32.mrf.mxu0
      %v712 = vadd.f32 0.0, %v711
      %713 = vdwg.mxu0
      %v714 = vadd.f32 %v688, %v710
      %v715 = vadd.f32 %v689, %v712
      %s716 = sadd.s32 %s197, 3
      %s717 = smul.u32 %s716, 3
      %s718 = smul.addr %s717, 4
      %s719 = scalar_lea.vmem %s184, %s718
      %v720 = vld [vmem:[%s719] sm:$0xf]
      %v721 = vld [vmem:[%s719 + $0x4] sm:$0xf]
      %v724 = vunpack.c.l.b16 %v720
      %v725 = vunpack.c.l.b16 %v721
      %v726 = vpack.c.b16 %v725, %v724
      %v728 = vsel %vm243, %v726, 0
      %730 = vmatpush.bf16.msra.mxu0 0
      %731 = vmatpush.bf16.msra.mxu0 0
      %732 = vmatpush.bf16.msra.mxu0 0
      %733 = vmatpush.bf16.msra.mxu0 0
      %734 = vmatpush.bf16.msra.mxu0 0
      %735 = vmatpush.bf16.msra.mxu0 0
      %736 = vmatpush.bf16.msra.mxu0 0
      %737 = vmatpush.bf16.msra.mxu0 %v436
      %738 = vmatmul.bf16.gmra.mxu0 %v728
      %v739 = vpop.f32.mrf.mxu0
      %v740 = vadd.f32 0.0, %v739
      %v741 = vpop.f32.mrf.mxu0
      %v742 = vadd.f32 0.0, %v741
      %743 = vdwg.mxu0
      %v744 = vadd.f32 %v714, %v740
      %v745 = vadd.f32 %v715, %v742
      %v746 = vld [vmem:[%s719] sm:$0xf]
      %v747 = vld [vmem:[%s719 + $0x4] sm:$0xf]
      %v748 = vld [vmem:[%s719 + $0x8] sm:$0x1]
      %v752 = vunpack.c.l.b16 %v746
      %v753 = vunpack.c.l.b16 %v747
      %v754 = vunpack.c.l.b16 %v748
      %v755 = vpack.c.b16 %v753, %v752
      %v756 = vpack.c.b16 %v754, %v754
      %v758 = vshrl.u32 %v755, 16
      %v760 = vshll.u32 %v755, 16
      %v762 = vrot.slane %v760, 1
      %v763 = vor.u32 %v758, %v762
      %v765 = vshll.u32 %v756, 16
      %v767 = vrot.slane %v765, 1
      %v768 = vsel %vm230, %v763, %v767
      %v770 = vsel %vm243, %v768, 0
      %772 = vmatpush.bf16.msra.mxu0 0
      %773 = vmatpush.bf16.msra.mxu0 0
      %774 = vmatpush.bf16.msra.mxu0 0
      %775 = vmatpush.bf16.msra.mxu0 0
      %776 = vmatpush.bf16.msra.mxu0 0
      %777 = vmatpush.bf16.msra.mxu0 0
      %778 = vmatpush.bf16.msra.mxu0 0
      %779 = vmatpush.bf16.msra.mxu0 %v481
      %780 = vmatmul.bf16.gmra.mxu0 %v770
      %v781 = vpop.f32.mrf.mxu0
      %v782 = vadd.f32 0.0, %v781
      %v783 = vpop.f32.mrf.mxu0
      %v784 = vadd.f32 0.0, %v783
      %785 = vdwg.mxu0
      %v786 = vadd.f32 %v744, %v782
      %v787 = vadd.f32 %v745, %v784
      %v788 = vld [vmem:[%s719] sm:$0xe]
      %v790 = vunpack.c.l.b16 %v788
      %v791 = vpack.c.b16 %v753, %v790
      %v792 = vrot.slane %v791, 1
      %v793 = vrot.slane %v756, 1
      %v794 = vsel %vm288, %v792, %v793
      %v796 = vsel %vm243, %v794, 0
      %798 = vmatpush.bf16.msra.mxu0 0
      %799 = vmatpush.bf16.msra.mxu0 0
      %800 = vmatpush.bf16.msra.mxu0 0
      %801 = vmatpush.bf16.msra.mxu0 0
      %802 = vmatpush.bf16.msra.mxu0 0
      %803 = vmatpush.bf16.msra.mxu0 0
      %804 = vmatpush.bf16.msra.mxu0 0
      %805 = vmatpush.bf16.msra.mxu0 %v510
      %806 = vmatmul.bf16.gmra.mxu0 %v796
      %v807 = vpop.f32.mrf.mxu0
      %v808 = vadd.f32 0.0, %v807
      %v809 = vpop.f32.mrf.mxu0
      %v810 = vadd.f32 0.0, %v809
      %811 = vdwg.mxu0
      %v812 = vadd.f32 %v786, %v808
      %v813 = vadd.f32 %v787, %v810
      %v814 = vadd.f32 %v812, %v529
      %v815 = vadd.f32 %v813, %v529
      %v816 = vmax.f32 %v814, 0.0
      %v817 = vmax.f32 %v815, 0.0
      %v818 = vpack.c.bf16 %v816, %v816
      %v819 = vpack.c.bf16 %v817, %v817
      %s820 = scalar_lea.vmem %s194, 8
      %821 = vst.msk [vmem:[%s820] sm:$0xf] %vm537, %v818
      %822 = vst.msk [vmem:[%s820 + $0x4] sm:$0xf] %vm537, %v819
      %v823 = vld [vmem:[%s424] sm:$0xf]
      %v824 = vld [vmem:[%s424 + $0x4] sm:$0xf]
      %v825 = vld [vmem:[%s424 + $0x8] sm:$0x1]
      %v829 = vunpack.c.l.b16 %v823
      %v830 = vunpack.c.l.b16 %v824
      %v831 = vunpack.c.l.b16 %v825
      %v832 = vpack.c.b16 %v830, %v829
      %v833 = vpack.c.b16 %v831, %v831
      %v835 = vshrl.u32 %v832, 16
      %v837 = vshll.u32 %v832, 16
      %v839 = vrot.slane %v837, 1
      %v840 = vor.u32 %v835, %v839
      %v842 = vshll.u32 %v833, 16
      %v844 = vrot.slane %v842, 1
      %v845 = vsel %vm230, %v840, %v844
      %v847 = vsel %vm243, %v845, 0
      %849 = vmatpush.bf16.msra.mxu0 0
      %850 = vmatpush.bf16.msra.mxu0 0
      %851 = vmatpush.bf16.msra.mxu0 0
      %852 = vmatpush.bf16.msra.mxu0 0
      %853 = vmatpush.bf16.msra.mxu0 0
      %854 = vmatpush.bf16.msra.mxu0 0
      %855 = vmatpush.bf16.msra.mxu0 0
      %856 = vmatpush.bf16.msra.mxu0 %v249
      %857 = vmatmul.bf16.gmra.mxu0 %v847
      %v858 = vpop.f32.mrf.mxu0
      %v859 = vadd.f32 0.0, %v858
      %v860 = vpop.f32.mrf.mxu0
      %v861 = vadd.f32 0.0, %v860
      %862 = vdwg.mxu0
      %v863 = vsel %vm243, %v832, 0
      %865 = vmatpush.bf16.msra.mxu0 0
      %866 = vmatpush.bf16.msra.mxu0 0
      %867 = vmatpush.bf16.msra.mxu0 0
      %868 = vmatpush.bf16.msra.mxu0 0
      %869 = vmatpush.bf16.msra.mxu0 0
      %870 = vmatpush.bf16.msra.mxu0 0
      %871 = vmatpush.bf16.msra.mxu0 0
      %872 = vmatpush.bf16.msra.mxu0 %v268
      %873 = vmatmul.bf16.gmra.mxu0 %v863
      %v874 = vpop.f32.mrf.mxu0
      %v875 = vadd.f32 %v859, %v874
      %v876 = vpop.f32.mrf.mxu0
      %v877 = vadd.f32 %v861, %v876
      %878 = vdwg.mxu0
      %v879 = vld [vmem:[%s424] sm:$0xe]
      %v881 = vunpack.c.l.b16 %v879
      %v882 = vpack.c.b16 %v830, %v881
      %v883 = vrot.slane %v882, 1
      %v884 = vrot.slane %v833, 1
      %v885 = vsel %vm288, %v883, %v884
      %v887 = vsel %vm243, %v885, 0
      %889 = vmatpush.bf16.msra.mxu0 0
      %890 = vmatpush.bf16.msra.mxu0 0
      %891 = vmatpush.bf16.msra.mxu0 0
      %892 = vmatpush.bf16.msra.mxu0 0
      %893 = vmatpush.bf16.msra.mxu0 0
      %894 = vmatpush.bf16.msra.mxu0 0
      %895 = vmatpush.bf16.msra.mxu0 0
      %896 = vmatpush.bf16.msra.mxu0 %v296
      %897 = vmatmul.bf16.gmra.mxu0 %v887
      %v898 = vpop.f32.mrf.mxu0
      %v899 = vadd.f32 0.0, %v898
      %v900 = vpop.f32.mrf.mxu0
      %v901 = vadd.f32 0.0, %v900
      %902 = vdwg.mxu0
      %v903 = vadd.f32 %v875, %v899
      %v904 = vadd.f32 %v877, %v901
      %v905 = vld [vmem:[%s719] sm:$0xf]
      %v906 = vld [vmem:[%s719 + $0x4] sm:$0xf]
      %v909 = vunpack.c.l.b16 %v905
      %v910 = vunpack.c.l.b16 %v906
      %v911 = vpack.c.b16 %v910, %v909
      %v913 = vsel %vm243, %v911, 0
      %915 = vmatpush.bf16.msra.mxu0 0
      %916 = vmatpush.bf16.msra.mxu0 0
      %917 = vmatpush.bf16.msra.mxu0 0
      %918 = vmatpush.bf16.msra.mxu0 0
      %919 = vmatpush.bf16.msra.mxu0 0
      %920 = vmatpush.bf16.msra.mxu0 0
      %921 = vmatpush.bf16.msra.mxu0 0
      %922 = vmatpush.bf16.msra.mxu0 %v329
      %923 = vmatmul.bf16.gmra.mxu0 %v913
      %v924 = vpop.f32.mrf.mxu0
      %v925 = vadd.f32 0.0, %v924
      %v926 = vpop.f32.mrf.mxu0
      %v927 = vadd.f32 0.0, %v926
      %928 = vdwg.mxu0
      %v929 = vadd.f32 %v903, %v925
      %v930 = vadd.f32 %v904, %v927
      %v931 = vld [vmem:[%s719] sm:$0xf]
      %v932 = vld [vmem:[%s719 + $0x4] sm:$0xf]
      %v933 = vld [vmem:[%s719 + $0x8] sm:$0x1]
      %v937 = vunpack.c.l.b16 %v931
      %v938 = vunpack.c.l.b16 %v932
      %v939 = vunpack.c.l.b16 %v933
      %v940 = vpack.c.b16 %v938, %v937
      %v941 = vpack.c.b16 %v939, %v939
      %v943 = vshrl.u32 %v940, 16
      %v945 = vshll.u32 %v940, 16
      %v947 = vrot.slane %v945, 1
      %v948 = vor.u32 %v943, %v947
      %v950 = vshll.u32 %v941, 16
      %v952 = vrot.slane %v950, 1
      %v953 = vsel %vm230, %v948, %v952
      %v955 = vsel %vm243, %v953, 0
      %957 = vmatpush.bf16.msra.mxu0 0
      %958 = vmatpush.bf16.msra.mxu0 0
      %959 = vmatpush.bf16.msra.mxu0 0
      %960 = vmatpush.bf16.msra.mxu0 0
      %961 = vmatpush.bf16.msra.mxu0 0
      %962 = vmatpush.bf16.msra.mxu0 0
      %963 = vmatpush.bf16.msra.mxu0 0
      %964 = vmatpush.bf16.msra.mxu0 %v374
      %965 = vmatmul.bf16.gmra.mxu0 %v955
      %v966 = vpop.f32.mrf.mxu0
      %v967 = vadd.f32 0.0, %v966
      %v968 = vpop.f32.mrf.mxu0
      %v969 = vadd.f32 0.0, %v968
      %970 = vdwg.mxu0
      %v971 = vadd.f32 %v929, %v967
      %v972 = vadd.f32 %v930, %v969
      %v973 = vld [vmem:[%s719] sm:$0xe]
      %v975 = vunpack.c.l.b16 %v973
      %v976 = vpack.c.b16 %v938, %v975
      %v977 = vrot.slane %v976, 1
      %v978 = vrot.slane %v941, 1
      %v979 = vsel %vm288, %v977, %v978
      %v981 = vsel %vm243, %v979, 0
      %983 = vmatpush.bf16.msra.mxu0 0
      %984 = vmatpush.bf16.msra.mxu0 0
      %985 = vmatpush.bf16.msra.mxu0 0
      %986 = vmatpush.bf16.msra.mxu0 0
      %987 = vmatpush.bf16.msra.mxu0 0
      %988 = vmatpush.bf16.msra.mxu0 0
      %989 = vmatpush.bf16.msra.mxu0 0
      %990 = vmatpush.bf16.msra.mxu0 %v403
      %991 = vmatmul.bf16.gmra.mxu0 %v981
      %v992 = vpop.f32.mrf.mxu0
      %v993 = vadd.f32 0.0, %v992
      %v994 = vpop.f32.mrf.mxu0
      %v995 = vadd.f32 0.0, %v994
      %996 = vdwg.mxu0
      %v997 = vadd.f32 %v971, %v993
      %v998 = vadd.f32 %v972, %v995
      %s999 = sadd.s32 %s197, 4
      %s1000 = smul.u32 %s999, 3
      %s1001 = smul.addr %s1000, 4
      %s1002 = scalar_lea.vmem %s184, %s1001
      %v1003 = vld [vmem:[%s1002] sm:$0xf]
      %v1004 = vld [vmem:[%s1002 + $0x4] sm:$0xf]
      %v1007 = vunpack.c.l.b16 %v1003
      %v1008 = vunpack.c.l.b16 %v1004
      %v1009 = vpack.c.b16 %v1008, %v1007
      %v1011 = vsel %vm243, %v1009, 0
      %1013 = vmatpush.bf16.msra.mxu0 0
      %1014 = vmatpush.bf16.msra.mxu0 0
      %1015 = vmatpush.bf16.msra.mxu0 0
      %1016 = vmatpush.bf16.msra.mxu0 0
      %1017 = vmatpush.bf16.msra.mxu0 0
      %1018 = vmatpush.bf16.msra.mxu0 0
      %1019 = vmatpush.bf16.msra.mxu0 0
      %1020 = vmatpush.bf16.msra.mxu0 %v436
      %1021 = vmatmul.bf16.gmra.mxu0 %v1011
      %v1022 = vpop.f32.mrf.mxu0
      %v1023 = vadd.f32 0.0, %v1022
      %v1024 = vpop.f32.mrf.mxu0
      %v1025 = vadd.f32 0.0, %v1024
      %1026 = vdwg.mxu0
      %v1027 = vadd.f32 %v997, %v1023
      %v1028 = vadd.f32 %v998, %v1025
      %v1029 = vld [vmem:[%s1002] sm:$0xf]
      %v1030 = vld [vmem:[%s1002 + $0x4] sm:$0xf]
      %v1031 = vld [vmem:[%s1002 + $0x8] sm:$0x1]
      %v1035 = vunpack.c.l.b16 %v1029
      %v1036 = vunpack.c.l.b16 %v1030
      %v1037 = vunpack.c.l.b16 %v1031
      %v1038 = vpack.c.b16 %v1036, %v1035
      %v1039 = vpack.c.b16 %v1037, %v1037
      %v1041 = vshrl.u32 %v1038, 16
      %v1043 = vshll.u32 %v1038, 16
      %v1045 = vrot.slane %v1043, 1
      %v1046 = vor.u32 %v1041, %v1045
      %v1048 = vshll.u32 %v1039, 16
      %v1050 = vrot.slane %v1048, 1
      %v1051 = vsel %vm230, %v1046, %v1050
      %v1053 = vsel %vm243, %v1051, 0
      %1055 = vmatpush.bf16.msra.mxu0 0
      %1056 = vmatpush.bf16.msra.mxu0 0
      %1057 = vmatpush.bf16.msra.mxu0 0
      %1058 = vmatpush.bf16.msra.mxu0 0
      %1059 = vmatpush.bf16.msra.mxu0 0
      %1060 = vmatpush.bf16.msra.mxu0 0
      %1061 = vmatpush.bf16.msra.mxu0 0
      %1062 = vmatpush.bf16.msra.mxu0 %v481
      %1063 = vmatmul.bf16.gmra.mxu0 %v1053
      %v1064 = vpop.f32.mrf.mxu0
      %v1065 = vadd.f32 0.0, %v1064
      %v1066 = vpop.f32.mrf.mxu0
      %v1067 = vadd.f32 0.0, %v1066
      %1068 = vdwg.mxu0
      %v1069 = vadd.f32 %v1027, %v1065
      %v1070 = vadd.f32 %v1028, %v1067
      %v1071 = vld [vmem:[%s1002] sm:$0xe]
      %v1073 = vunpack.c.l.b16 %v1071
      %v1074 = vpack.c.b16 %v1036, %v1073
      %v1075 = vrot.slane %v1074, 1
      %v1076 = vrot.slane %v1039, 1
      %v1077 = vsel %vm288, %v1075, %v1076
      %v1079 = vsel %vm243, %v1077, 0
      %1081 = vmatpush.bf16.msra.mxu0 0
      %1082 = vmatpush.bf16.msra.mxu0 0
      %1083 = vmatpush.bf16.msra.mxu0 0
      %1084 = vmatpush.bf16.msra.mxu0 0
      %1085 = vmatpush.bf16.msra.mxu0 0
      %1086 = vmatpush.bf16.msra.mxu0 0
      %1087 = vmatpush.bf16.msra.mxu0 0
      %1088 = vmatpush.bf16.msra.mxu0 %v510
      %1089 = vmatmul.bf16.gmra.mxu0 %v1079
      %v1090 = vpop.f32.mrf.mxu0
      %v1091 = vadd.f32 0.0, %v1090
      %v1092 = vpop.f32.mrf.mxu0
      %v1093 = vadd.f32 0.0, %v1092
      %1094 = vdwg.mxu0
      %v1095 = vadd.f32 %v1069, %v1091
      %v1096 = vadd.f32 %v1070, %v1093
      %v1097 = vadd.f32 %v1095, %v529
      %v1098 = vadd.f32 %v1096, %v529
      %v1099 = vmax.f32 %v1097, 0.0
      %v1100 = vmax.f32 %v1098, 0.0
      %v1101 = vpack.c.bf16 %v1099, %v1099
      %v1102 = vpack.c.bf16 %v1100, %v1100
      %s1103 = scalar_lea.vmem %s194, 16
      %1104 = vst.msk [vmem:[%s1103] sm:$0xf] %vm537, %v1101
      %1105 = vst.msk [vmem:[%s1103 + $0x4] sm:$0xf] %vm537, %v1102
      %v1106 = vld [vmem:[%s719] sm:$0xf]
      %v1107 = vld [vmem:[%s719 + $0x4] sm:$0xf]
      %v1108 = vld [vmem:[%s719 + $0x8] sm:$0x1]
      %v1112 = vunpack.c.l.b16 %v1106
      %v1113 = vunpack.c.l.b16 %v1107
      %v1114 = vunpack.c.l.b16 %v1108
      %v1115 = vpack.c.b16 %v1113, %v1112
      %v1116 = vpack.c.b16 %v1114, %v1114
      %v1118 = vshrl.u32 %v1115, 16
      %v1120 = vshll.u32 %v1115, 16
      %v1122 = vrot.slane %v1120, 1
      %v1123 = vor.u32 %v1118, %v1122
      %v1125 = vshll.u32 %v1116, 16
      %v1127 = vrot.slane %v1125, 1
      %v1128 = vsel %vm230, %v1123, %v1127
      %v1130 = vsel %vm243, %v1128, 0
      %1132 = vmatpush.bf16.msra.mxu0 0
      %1133 = vmatpush.bf16.msra.mxu0 0
      %1134 = vmatpush.bf16.msra.mxu0 0
      %1135 = vmatpush.bf16.msra.mxu0 0
      %1136 = vmatpush.bf16.msra.mxu0 0
      %1137 = vmatpush.bf16.msra.mxu0 0
      %1138 = vmatpush.bf16.msra.mxu0 0
      %1139 = vmatpush.bf16.msra.mxu0 %v249
      %1140 = vmatmul.bf16.gmra.mxu0 %v1130
      %v1141 = vpop.f32.mrf.mxu0
      %v1142 = vadd.f32 0.0, %v1141
      %v1143 = vpop.f32.mrf.mxu0
      %v1144 = vadd.f32 0.0, %v1143
      %1145 = vdwg.mxu0
      %v1146 = vsel %vm243, %v1115, 0
      %1148 = vmatpush.bf16.msra.mxu0 0
      %1149 = vmatpush.bf16.msra.mxu0 0
      %1150 = vmatpush.bf16.msra.mxu0 0
      %1151 = vmatpush.bf16.msra.mxu0 0
      %1152 = vmatpush.bf16.msra.mxu0 0
      %1153 = vmatpush.bf16.msra.mxu0 0
      %1154 = vmatpush.bf16.msra.mxu0 0
      %1155 = vmatpush.bf16.msra.mxu0 %v268
      %1156 = vmatmul.bf16.gmra.mxu0 %v1146
      %v1157 = vpop.f32.mrf.mxu0
      %v1158 = vadd.f32 %v1142, %v1157
      %v1159 = vpop.f32.mrf.mxu0
      %v1160 = vadd.f32 %v1144, %v1159
      %1161 = vdwg.mxu0
      %v1162 = vld [vmem:[%s719] sm:$0xe]
      %v1164 = vunpack.c.l.b16 %v1162
      %v1165 = vpack.c.b16 %v1113, %v1164
      %v1166 = vrot.slane %v1165, 1
      %v1167 = vrot.slane %v1116, 1
      %v1168 = vsel %vm288, %v1166, %v1167
      %v1170 = vsel %vm243, %v1168, 0
      %1172 = vmatpush.bf16.msra.mxu0 0
      %1173 = vmatpush.bf16.msra.mxu0 0
      %1174 = vmatpush.bf16.msra.mxu0 0
      %1175 = vmatpush.bf16.msra.mxu0 0
      %1176 = vmatpush.bf16.msra.mxu0 0
      %1177 = vmatpush.bf16.msra.mxu0 0
      %1178 = vmatpush.bf16.msra.mxu0 0
      %1179 = vmatpush.bf16.msra.mxu0 %v296
      %1180 = vmatmul.bf16.gmra.mxu0 %v1170
      %v1181 = vpop.f32.mrf.mxu0
      %v1182 = vadd.f32 0.0, %v1181
      %v1183 = vpop.f32.mrf.mxu0
      %v1184 = vadd.f32 0.0, %v1183
      %1185 = vdwg.mxu0
      %v1186 = vadd.f32 %v1158, %v1182
      %v1187 = vadd.f32 %v1160, %v1184
      %v1188 = vld [vmem:[%s1002] sm:$0xf]
      %v1189 = vld [vmem:[%s1002 + $0x4] sm:$0xf]
      %v1192 = vunpack.c.l.b16 %v1188
      %v1193 = vunpack.c.l.b16 %v1189
      %v1194 = vpack.c.b16 %v1193, %v1192
      %v1196 = vsel %vm243, %v1194, 0
      %1198 = vmatpush.bf16.msra.mxu0 0
      %1199 = vmatpush.bf16.msra.mxu0 0
      %1200 = vmatpush.bf16.msra.mxu0 0
      %1201 = vmatpush.bf16.msra.mxu0 0
      %1202 = vmatpush.bf16.msra.mxu0 0
      %1203 = vmatpush.bf16.msra.mxu0 0
      %1204 = vmatpush.bf16.msra.mxu0 0
      %1205 = vmatpush.bf16.msra.mxu0 %v329
      %1206 = vmatmul.bf16.gmra.mxu0 %v1196
      %v1207 = vpop.f32.mrf.mxu0
      %v1208 = vadd.f32 0.0, %v1207
      %v1209 = vpop.f32.mrf.mxu0
      %v1210 = vadd.f32 0.0, %v1209
      %1211 = vdwg.mxu0
      %v1212 = vadd.f32 %v1186, %v1208
      %v1213 = vadd.f32 %v1187, %v1210
      %v1214 = vld [vmem:[%s1002] sm:$0xf]
      %v1215 = vld [vmem:[%s1002 + $0x4] sm:$0xf]
      %v1216 = vld [vmem:[%s1002 + $0x8] sm:$0x1]
      %v1220 = vunpack.c.l.b16 %v1214
      %v1221 = vunpack.c.l.b16 %v1215
      %v1222 = vunpack.c.l.b16 %v1216
      %v1223 = vpack.c.b16 %v1221, %v1220
      %v1224 = vpack.c.b16 %v1222, %v1222
      %v1226 = vshrl.u32 %v1223, 16
      %v1228 = vshll.u32 %v1223, 16
      %v1230 = vrot.slane %v1228, 1
      %v1231 = vor.u32 %v1226, %v1230
      %v1233 = vshll.u32 %v1224, 16
      %v1235 = vrot.slane %v1233, 1
      %v1236 = vsel %vm230, %v1231, %v1235
      %v1238 = vsel %vm243, %v1236, 0
      %1240 = vmatpush.bf16.msra.mxu0 0
      %1241 = vmatpush.bf16.msra.mxu0 0
      %1242 = vmatpush.bf16.msra.mxu0 0
      %1243 = vmatpush.bf16.msra.mxu0 0
      %1244 = vmatpush.bf16.msra.mxu0 0
      %1245 = vmatpush.bf16.msra.mxu0 0
      %1246 = vmatpush.bf16.msra.mxu0 0
      %1247 = vmatpush.bf16.msra.mxu0 %v374
      %1248 = vmatmul.bf16.gmra.mxu0 %v1238
      %v1249 = vpop.f32.mrf.mxu0
      %v1250 = vadd.f32 0.0, %v1249
      %v1251 = vpop.f32.mrf.mxu0
      %v1252 = vadd.f32 0.0, %v1251
      %1253 = vdwg.mxu0
      %v1254 = vadd.f32 %v1212, %v1250
      %v1255 = vadd.f32 %v1213, %v1252
      %v1256 = vld [vmem:[%s1002] sm:$0xe]
      %v1258 = vunpack.c.l.b16 %v1256
      %v1259 = vpack.c.b16 %v1221, %v1258
      %v1260 = vrot.slane %v1259, 1
      %v1261 = vrot.slane %v1224, 1
      %v1262 = vsel %vm288, %v1260, %v1261
      %v1264 = vsel %vm243, %v1262, 0
      %1266 = vmatpush.bf16.msra.mxu0 0
      %1267 = vmatpush.bf16.msra.mxu0 0
      %1268 = vmatpush.bf16.msra.mxu0 0
      %1269 = vmatpush.bf16.msra.mxu0 0
      %1270 = vmatpush.bf16.msra.mxu0 0
      %1271 = vmatpush.bf16.msra.mxu0 0
      %1272 = vmatpush.bf16.msra.mxu0 0
      %1273 = vmatpush.bf16.msra.mxu0 %v403
      %1274 = vmatmul.bf16.gmra.mxu0 %v1264
      %v1275 = vpop.f32.mrf.mxu0
      %v1276 = vadd.f32 0.0, %v1275
      %v1277 = vpop.f32.mrf.mxu0
      %v1278 = vadd.f32 0.0, %v1277
      %1279 = vdwg.mxu0
      %v1280 = vadd.f32 %v1254, %v1276
      %v1281 = vadd.f32 %v1255, %v1278
      %s1282 = sadd.s32 %s197, 5
      %s1283 = smul.u32 %s1282, 3
      %s1284 = smul.addr %s1283, 4
      %s1285 = scalar_lea.vmem %s184, %s1284
      %v1286 = vld [vmem:[%s1285] sm:$0xf]
      %v1287 = vld [vmem:[%s1285 + $0x4] sm:$0xf]
      %v1290 = vunpack.c.l.b16 %v1286
      %v1291 = vunpack.c.l.b16 %v1287
      %v1292 = vpack.c.b16 %v1291, %v1290
      %v1294 = vsel %vm243, %v1292, 0
      %1296 = vmatpush.bf16.msra.mxu0 0
      %1297 = vmatpush.bf16.msra.mxu0 0
      %1298 = vmatpush.bf16.msra.mxu0 0
      %1299 = vmatpush.bf16.msra.mxu0 0
      %1300 = vmatpush.bf16.msra.mxu0 0
      %1301 = vmatpush.bf16.msra.mxu0 0
      %1302 = vmatpush.bf16.msra.mxu0 0
      %1303 = vmatpush.bf16.msra.mxu0 %v436
      %1304 = vmatmul.bf16.gmra.mxu0 %v1294
      %v1305 = vpop.f32.mrf.mxu0
      %v1306 = vadd.f32 0.0, %v1305
      %v1307 = vpop.f32.mrf.mxu0
      %v1308 = vadd.f32 0.0, %v1307
      %1309 = vdwg.mxu0
      %v1310 = vadd.f32 %v1280, %v1306
      %v1311 = vadd.f32 %v1281, %v1308
      %v1312 = vld [vmem:[%s1285] sm:$0xf]
      %v1313 = vld [vmem:[%s1285 + $0x4] sm:$0xf]
      %v1314 = vld [vmem:[%s1285 + $0x8] sm:$0x1]
      %v1318 = vunpack.c.l.b16 %v1312
      %v1319 = vunpack.c.l.b16 %v1313
      %v1320 = vunpack.c.l.b16 %v1314
      %v1321 = vpack.c.b16 %v1319, %v1318
      %v1322 = vpack.c.b16 %v1320, %v1320
      %v1324 = vshrl.u32 %v1321, 16
      %v1326 = vshll.u32 %v1321, 16
      %v1328 = vrot.slane %v1326, 1
      %v1329 = vor.u32 %v1324, %v1328
      %v1331 = vshll.u32 %v1322, 16
      %v1333 = vrot.slane %v1331, 1
      %v1334 = vsel %vm230, %v1329, %v1333
      %v1336 = vsel %vm243, %v1334, 0
      %1338 = vmatpush.bf16.msra.mxu0 0
      %1339 = vmatpush.bf16.msra.mxu0 0
      %1340 = vmatpush.bf16.msra.mxu0 0
      %1341 = vmatpush.bf16.msra.mxu0 0
      %1342 = vmatpush.bf16.msra.mxu0 0
      %1343 = vmatpush.bf16.msra.mxu0 0
      %1344 = vmatpush.bf16.msra.mxu0 0
      %1345 = vmatpush.bf16.msra.mxu0 %v481
      %1346 = vmatmul.bf16.gmra.mxu0 %v1336
      %v1347 = vpop.f32.mrf.mxu0
      %v1348 = vadd.f32 0.0, %v1347
      %v1349 = vpop.f32.mrf.mxu0
      %v1350 = vadd.f32 0.0, %v1349
      %1351 = vdwg.mxu0
      %v1352 = vadd.f32 %v1310, %v1348
      %v1353 = vadd.f32 %v1311, %v1350
      %v1354 = vld [vmem:[%s1285] sm:$0xe]
      %v1356 = vunpack.c.l.b16 %v1354
      %v1357 = vpack.c.b16 %v1319, %v1356
      %v1358 = vrot.slane %v1357, 1
      %v1359 = vrot.slane %v1322, 1
      %v1360 = vsel %vm288, %v1358, %v1359
      %v1362 = vsel %vm243, %v1360, 0
      %1364 = vmatpush.bf16.msra.mxu0 0
      %1365 = vmatpush.bf16.msra.mxu0 0
      %1366 = vmatpush.bf16.msra.mxu0 0
      %1367 = vmatpush.bf16.msra.mxu0 0
      %1368 = vmatpush.bf16.msra.mxu0 0
      %1369 = vmatpush.bf16.msra.mxu0 0
      %1370 = vmatpush.bf16.msra.mxu0 0
      %1371 = vmatpush.bf16.msra.mxu0 %v510
      %1372 = vmatmul.bf16.gmra.mxu0 %v1362
      %v1373 = vpop.f32.mrf.mxu0
      %v1374 = vadd.f32 0.0, %v1373
      %v1375 = vpop.f32.mrf.mxu0
      %v1376 = vadd.f32 0.0, %v1375
      %1377 = vdwg.mxu0
      %v1378 = vadd.f32 %v1352, %v1374
      %v1379 = vadd.f32 %v1353, %v1376
      %v1380 = vadd.f32 %v1378, %v529
      %v1381 = vadd.f32 %v1379, %v529
      %v1382 = vmax.f32 %v1380, 0.0
      %v1383 = vmax.f32 %v1381, 0.0
      %v1384 = vpack.c.bf16 %v1382, %v1382
      %v1385 = vpack.c.bf16 %v1383, %v1383
      %s1386 = scalar_lea.vmem %s194, 24
      %1387 = vst.msk [vmem:[%s1386] sm:$0xf] %vm537, %v1384
      %1388 = vst.msk [vmem:[%s1386 + $0x4] sm:$0xf] %vm537, %v1385
      %v1389 = vld [vmem:[%s1002] sm:$0xf]
      %v1390 = vld [vmem:[%s1002 + $0x4] sm:$0xf]
      %v1391 = vld [vmem:[%s1002 + $0x8] sm:$0x1]
      %v1395 = vunpack.c.l.b16 %v1389
      %v1396 = vunpack.c.l.b16 %v1390
      %v1397 = vunpack.c.l.b16 %v1391
      %v1398 = vpack.c.b16 %v1396, %v1395
      %v1399 = vpack.c.b16 %v1397, %v1397
      %v1401 = vshrl.u32 %v1398, 16
      %v1403 = vshll.u32 %v1398, 16
      %v1405 = vrot.slane %v1403, 1
      %v1406 = vor.u32 %v1401, %v1405
      %v1408 = vshll.u32 %v1399, 16
      %v1410 = vrot.slane %v1408, 1
      %v1411 = vsel %vm230, %v1406, %v1410
      %v1413 = vsel %vm243, %v1411, 0
      %1415 = vmatpush.bf16.msra.mxu0 0
      %1416 = vmatpush.bf16.msra.mxu0 0
      %1417 = vmatpush.bf16.msra.mxu0 0
      %1418 = vmatpush.bf16.msra.mxu0 0
      %1419 = vmatpush.bf16.msra.mxu0 0
      %1420 = vmatpush.bf16.msra.mxu0 0
      %1421 = vmatpush.bf16.msra.mxu0 0
      %1422 = vmatpush.bf16.msra.mxu0 %v249
      %1423 = vmatmul.bf16.gmra.mxu0 %v1413
      %v1424 = vpop.f32.mrf.mxu0
      %v1425 = vadd.f32 0.0, %v1424
      %v1426 = vpop.f32.mrf.mxu0
      %v1427 = vadd.f32 0.0, %v1426
      %1428 = vdwg.mxu0
      %v1429 = vsel %vm243, %v1398, 0
      %1431 = vmatpush.bf16.msra.mxu0 0
      %1432 = vmatpush.bf16.msra.mxu0 0
      %1433 = vmatpush.bf16.msra.mxu0 0
      %1434 = vmatpush.bf16.msra.mxu0 0
      %1435 = vmatpush.bf16.msra.mxu0 0
      %1436 = vmatpush.bf16.msra.mxu0 0
      %1437 = vmatpush.bf16.msra.mxu0 0
      %1438 = vmatpush.bf16.msra.mxu0 %v268
      %1439 = vmatmul.bf16.gmra.mxu0 %v1429
      %v1440 = vpop.f32.mrf.mxu0
      %v1441 = vadd.f32 %v1425, %v1440
      %v1442 = vpop.f32.mrf.mxu0
      %v1443 = vadd.f32 %v1427, %v1442
      %1444 = vdwg.mxu0
      %v1445 = vld [vmem:[%s1002] sm:$0xe]
      %v1447 = vunpack.c.l.b16 %v1445
      %v1448 = vpack.c.b16 %v1396, %v1447
      %v1449 = vrot.slane %v1448, 1
      %v1450 = vrot.slane %v1399, 1
      %v1451 = vsel %vm288, %v1449, %v1450
      %v1453 = vsel %vm243, %v1451, 0
      %1455 = vmatpush.bf16.msra.mxu0 0
      %1456 = vmatpush.bf16.msra.mxu0 0
      %1457 = vmatpush.bf16.msra.mxu0 0
      %1458 = vmatpush.bf16.msra.mxu0 0
      %1459 = vmatpush.bf16.msra.mxu0 0
      %1460 = vmatpush.bf16.msra.mxu0 0
      %1461 = vmatpush.bf16.msra.mxu0 0
      %1462 = vmatpush.bf16.msra.mxu0 %v296
      %1463 = vmatmul.bf16.gmra.mxu0 %v1453
      %v1464 = vpop.f32.mrf.mxu0
      %v1465 = vadd.f32 0.0, %v1464
      %v1466 = vpop.f32.mrf.mxu0
      %v1467 = vadd.f32 0.0, %v1466
      %1468 = vdwg.mxu0
      %v1469 = vadd.f32 %v1441, %v1465
      %v1470 = vadd.f32 %v1443, %v1467
      %v1471 = vld [vmem:[%s1285] sm:$0xf]
      %v1472 = vld [vmem:[%s1285 + $0x4] sm:$0xf]
      %v1475 = vunpack.c.l.b16 %v1471
      %v1476 = vunpack.c.l.b16 %v1472
      %v1477 = vpack.c.b16 %v1476, %v1475
      %v1479 = vsel %vm243, %v1477, 0
      %1481 = vmatpush.bf16.msra.mxu0 0
      %1482 = vmatpush.bf16.msra.mxu0 0
      %1483 = vmatpush.bf16.msra.mxu0 0
      %1484 = vmatpush.bf16.msra.mxu0 0
      %1485 = vmatpush.bf16.msra.mxu0 0
      %1486 = vmatpush.bf16.msra.mxu0 0
      %1487 = vmatpush.bf16.msra.mxu0 0
      %1488 = vmatpush.bf16.msra.mxu0 %v329
      %1489 = vmatmul.bf16.gmra.mxu0 %v1479
      %v1490 = vpop.f32.mrf.mxu0
      %v1491 = vadd.f32 0.0, %v1490
      %v1492 = vpop.f32.mrf.mxu0
      %v1493 = vadd.f32 0.0, %v1492
      %1494 = vdwg.mxu0
      %v1495 = vadd.f32 %v1469, %v1491
      %v1496 = vadd.f32 %v1470, %v1493
      %v1497 = vld [vmem:[%s1285] sm:$0xf]
      %v1498 = vld [vmem:[%s1285 + $0x4] sm:$0xf]
      %v1499 = vld [vmem:[%s1285 + $0x8] sm:$0x1]
      %v1503 = vunpack.c.l.b16 %v1497
      %v1504 = vunpack.c.l.b16 %v1498
      %v1505 = vunpack.c.l.b16 %v1499
      %v1506 = vpack.c.b16 %v1504, %v1503
      %v1507 = vpack.c.b16 %v1505, %v1505
      %v1509 = vshrl.u32 %v1506, 16
      %v1511 = vshll.u32 %v1506, 16
      %v1513 = vrot.slane %v1511, 1
      %v1514 = vor.u32 %v1509, %v1513
      %v1516 = vshll.u32 %v1507, 16
      %v1518 = vrot.slane %v1516, 1
      %v1519 = vsel %vm230, %v1514, %v1518
      %v1521 = vsel %vm243, %v1519, 0
      %1523 = vmatpush.bf16.msra.mxu0 0
      %1524 = vmatpush.bf16.msra.mxu0 0
      %1525 = vmatpush.bf16.msra.mxu0 0
      %1526 = vmatpush.bf16.msra.mxu0 0
      %1527 = vmatpush.bf16.msra.mxu0 0
      %1528 = vmatpush.bf16.msra.mxu0 0
      %1529 = vmatpush.bf16.msra.mxu0 0
      %1530 = vmatpush.bf16.msra.mxu0 %v374
      %1531 = vmatmul.bf16.gmra.mxu0 %v1521
      %v1532 = vpop.f32.mrf.mxu0
      %v1533 = vadd.f32 0.0, %v1532
      %v1534 = vpop.f32.mrf.mxu0
      %v1535 = vadd.f32 0.0, %v1534
      %1536 = vdwg.mxu0
      %v1537 = vadd.f32 %v1495, %v1533
      %v1538 = vadd.f32 %v1496, %v1535
      %v1539 = vld [vmem:[%s1285] sm:$0xe]
      %v1541 = vunpack.c.l.b16 %v1539
      %v1542 = vpack.c.b16 %v1504, %v1541
      %v1543 = vrot.slane %v1542, 1
      %v1544 = vrot.slane %v1507, 1
      %v1545 = vsel %vm288, %v1543, %v1544
      %v1547 = vsel %vm243, %v1545, 0
      %1549 = vmatpush.bf16.msra.mxu0 0
      %1550 = vmatpush.bf16.msra.mxu0 0
      %1551 = vmatpush.bf16.msra.mxu0 0
      %1552 = vmatpush.bf16.msra.mxu0 0
      %1553 = vmatpush.bf16.msra.mxu0 0
      %1554 = vmatpush.bf16.msra.mxu0 0
      %1555 = vmatpush.bf16.msra.mxu0 0
      %1556 = vmatpush.bf16.msra.mxu0 %v403
      %1557 = vmatmul.bf16.gmra.mxu0 %v1547
      %v1558 = vpop.f32.mrf.mxu0
      %v1559 = vadd.f32 0.0, %v1558
      %v1560 = vpop.f32.mrf.mxu0
      %v1561 = vadd.f32 0.0, %v1560
      %1562 = vdwg.mxu0
      %v1563 = vadd.f32 %v1537, %v1559
      %v1564 = vadd.f32 %v1538, %v1561
      %s1565 = sadd.s32 %s197, 6
      %s1566 = smul.u32 %s1565, 3
      %s1567 = smul.addr %s1566, 4
      %s1568 = scalar_lea.vmem %s184, %s1567
      %v1569 = vld [vmem:[%s1568] sm:$0xf]
      %v1570 = vld [vmem:[%s1568 + $0x4] sm:$0xf]
      %v1573 = vunpack.c.l.b16 %v1569
      %v1574 = vunpack.c.l.b16 %v1570
      %v1575 = vpack.c.b16 %v1574, %v1573
      %v1577 = vsel %vm243, %v1575, 0
      %1579 = vmatpush.bf16.msra.mxu0 0
      %1580 = vmatpush.bf16.msra.mxu0 0
      %1581 = vmatpush.bf16.msra.mxu0 0
      %1582 = vmatpush.bf16.msra.mxu0 0
      %1583 = vmatpush.bf16.msra.mxu0 0
      %1584 = vmatpush.bf16.msra.mxu0 0
      %1585 = vmatpush.bf16.msra.mxu0 0
      %1586 = vmatpush.bf16.msra.mxu0 %v436
      %1587 = vmatmul.bf16.gmra.mxu0 %v1577
      %v1588 = vpop.f32.mrf.mxu0
      %v1589 = vadd.f32 0.0, %v1588
      %v1590 = vpop.f32.mrf.mxu0
      %v1591 = vadd.f32 0.0, %v1590
      %1592 = vdwg.mxu0
      %v1593 = vadd.f32 %v1563, %v1589
      %v1594 = vadd.f32 %v1564, %v1591
      %v1595 = vld [vmem:[%s1568] sm:$0xf]
      %v1596 = vld [vmem:[%s1568 + $0x4] sm:$0xf]
      %v1597 = vld [vmem:[%s1568 + $0x8] sm:$0x1]
      %v1601 = vunpack.c.l.b16 %v1595
      %v1602 = vunpack.c.l.b16 %v1596
      %v1603 = vunpack.c.l.b16 %v1597
      %v1604 = vpack.c.b16 %v1602, %v1601
      %v1605 = vpack.c.b16 %v1603, %v1603
      %v1607 = vshrl.u32 %v1604, 16
      %v1609 = vshll.u32 %v1604, 16
      %v1611 = vrot.slane %v1609, 1
      %v1612 = vor.u32 %v1607, %v1611
      %v1614 = vshll.u32 %v1605, 16
      %v1616 = vrot.slane %v1614, 1
      %v1617 = vsel %vm230, %v1612, %v1616
      %v1619 = vsel %vm243, %v1617, 0
      %1621 = vmatpush.bf16.msra.mxu0 0
      %1622 = vmatpush.bf16.msra.mxu0 0
      %1623 = vmatpush.bf16.msra.mxu0 0
      %1624 = vmatpush.bf16.msra.mxu0 0
      %1625 = vmatpush.bf16.msra.mxu0 0
      %1626 = vmatpush.bf16.msra.mxu0 0
      %1627 = vmatpush.bf16.msra.mxu0 0
      %1628 = vmatpush.bf16.msra.mxu0 %v481
      %1629 = vmatmul.bf16.gmra.mxu0 %v1619
      %v1630 = vpop.f32.mrf.mxu0
      %v1631 = vadd.f32 0.0, %v1630
      %v1632 = vpop.f32.mrf.mxu0
      %v1633 = vadd.f32 0.0, %v1632
      %1634 = vdwg.mxu0
      %v1635 = vadd.f32 %v1593, %v1631
      %v1636 = vadd.f32 %v1594, %v1633
      %v1637 = vld [vmem:[%s1568] sm:$0xe]
      %v1639 = vunpack.c.l.b16 %v1637
      %v1640 = vpack.c.b16 %v1602, %v1639
      %v1641 = vrot.slane %v1640, 1
      %v1642 = vrot.slane %v1605, 1
      %v1643 = vsel %vm288, %v1641, %v1642
      %v1645 = vsel %vm243, %v1643, 0
      %1647 = vmatpush.bf16.msra.mxu0 0
      %1648 = vmatpush.bf16.msra.mxu0 0
      %1649 = vmatpush.bf16.msra.mxu0 0
      %1650 = vmatpush.bf16.msra.mxu0 0
      %1651 = vmatpush.bf16.msra.mxu0 0
      %1652 = vmatpush.bf16.msra.mxu0 0
      %1653 = vmatpush.bf16.msra.mxu0 0
      %1654 = vmatpush.bf16.msra.mxu0 %v510
      %1655 = vmatmul.bf16.gmra.mxu0 %v1645
      %v1656 = vpop.f32.mrf.mxu0
      %v1657 = vadd.f32 0.0, %v1656
      %v1658 = vpop.f32.mrf.mxu0
      %v1659 = vadd.f32 0.0, %v1658
      %1660 = vdwg.mxu0
      %v1661 = vadd.f32 %v1635, %v1657
      %v1662 = vadd.f32 %v1636, %v1659
      %v1663 = vadd.f32 %v1661, %v529
      %v1664 = vadd.f32 %v1662, %v529
      %v1665 = vmax.f32 %v1663, 0.0
      %v1666 = vmax.f32 %v1664, 0.0
      %v1667 = vpack.c.bf16 %v1665, %v1665
      %v1668 = vpack.c.bf16 %v1666, %v1666
      %s1669 = scalar_lea.vmem %s194, 32
      %1670 = vst.msk [vmem:[%s1669] sm:$0xf] %vm537, %v1667
      %1671 = vst.msk [vmem:[%s1669 + $0x4] sm:$0xf] %vm537, %v1668
      %v1672 = vld [vmem:[%s1285] sm:$0xf]
      %v1673 = vld [vmem:[%s1285 + $0x4] sm:$0xf]
      %v1674 = vld [vmem:[%s1285 + $0x8] sm:$0x1]
      %v1678 = vunpack.c.l.b16 %v1672
      %v1679 = vunpack.c.l.b16 %v1673
      %v1680 = vunpack.c.l.b16 %v1674
      %v1681 = vpack.c.b16 %v1679, %v1678
      %v1682 = vpack.c.b16 %v1680, %v1680
      %v1684 = vshrl.u32 %v1681, 16
      %v1686 = vshll.u32 %v1681, 16
      %v1688 = vrot.slane %v1686, 1
      %v1689 = vor.u32 %v1684, %v1688
      %v1691 = vshll.u32 %v1682, 16
      %v1693 = vrot.slane %v1691, 1
      %v1694 = vsel %vm230, %v1689, %v1693
      %v1696 = vsel %vm243, %v1694, 0
      %1698 = vmatpush.bf16.msra.mxu0 0
      %1699 = vmatpush.bf16.msra.mxu0 0
      %1700 = vmatpush.bf16.msra.mxu0 0
      %1701 = vmatpush.bf16.msra.mxu0 0
      %1702 = vmatpush.bf16.msra.mxu0 0
      %1703 = vmatpush.bf16.msra.mxu0 0
      %1704 = vmatpush.bf16.msra.mxu0 0
      %1705 = vmatpush.bf16.msra.mxu0 %v249
      %1706 = vmatmul.bf16.gmra.mxu0 %v1696
      %v1707 = vpop.f32.mrf.mxu0
      %v1708 = vadd.f32 0.0, %v1707
      %v1709 = vpop.f32.mrf.mxu0
      %v1710 = vadd.f32 0.0, %v1709
      %1711 = vdwg.mxu0
      %v1712 = vsel %vm243, %v1681, 0
      %1714 = vmatpush.bf16.msra.mxu0 0
      %1715 = vmatpush.bf16.msra.mxu0 0
      %1716 = vmatpush.bf16.msra.mxu0 0
      %1717 = vmatpush.bf16.msra.mxu0 0
      %1718 = vmatpush.bf16.msra.mxu0 0
      %1719 = vmatpush.bf16.msra.mxu0 0
      %1720 = vmatpush.bf16.msra.mxu0 0
      %1721 = vmatpush.bf16.msra.mxu0 %v268
      %1722 = vmatmul.bf16.gmra.mxu0 %v1712
      %v1723 = vpop.f32.mrf.mxu0
      %v1724 = vadd.f32 %v1708, %v1723
      %v1725 = vpop.f32.mrf.mxu0
      %v1726 = vadd.f32 %v1710, %v1725
      %1727 = vdwg.mxu0
      %v1728 = vld [vmem:[%s1285] sm:$0xe]
      %v1730 = vunpack.c.l.b16 %v1728
      %v1731 = vpack.c.b16 %v1679, %v1730
      %v1732 = vrot.slane %v1731, 1
      %v1733 = vrot.slane %v1682, 1
      %v1734 = vsel %vm288, %v1732, %v1733
      %v1736 = vsel %vm243, %v1734, 0
      %1738 = vmatpush.bf16.msra.mxu0 0
      %1739 = vmatpush.bf16.msra.mxu0 0
      %1740 = vmatpush.bf16.msra.mxu0 0
      %1741 = vmatpush.bf16.msra.mxu0 0
      %1742 = vmatpush.bf16.msra.mxu0 0
      %1743 = vmatpush.bf16.msra.mxu0 0
      %1744 = vmatpush.bf16.msra.mxu0 0
      %1745 = vmatpush.bf16.msra.mxu0 %v296
      %1746 = vmatmul.bf16.gmra.mxu0 %v1736
      %v1747 = vpop.f32.mrf.mxu0
      %v1748 = vadd.f32 0.0, %v1747
      %v1749 = vpop.f32.mrf.mxu0
      %v1750 = vadd.f32 0.0, %v1749
      %1751 = vdwg.mxu0
      %v1752 = vadd.f32 %v1724, %v1748
      %v1753 = vadd.f32 %v1726, %v1750
      %v1754 = vld [vmem:[%s1568] sm:$0xf]
      %v1755 = vld [vmem:[%s1568 + $0x4] sm:$0xf]
      %v1758 = vunpack.c.l.b16 %v1754
      %v1759 = vunpack.c.l.b16 %v1755
      %v1760 = vpack.c.b16 %v1759, %v1758
      %v1762 = vsel %vm243, %v1760, 0
      %1764 = vmatpush.bf16.msra.mxu0 0
      %1765 = vmatpush.bf16.msra.mxu0 0
      %1766 = vmatpush.bf16.msra.mxu0 0
      %1767 = vmatpush.bf16.msra.mxu0 0
      %1768 = vmatpush.bf16.msra.mxu0 0
      %1769 = vmatpush.bf16.msra.mxu0 0
      %1770 = vmatpush.bf16.msra.mxu0 0
      %1771 = vmatpush.bf16.msra.mxu0 %v329
      %1772 = vmatmul.bf16.gmra.mxu0 %v1762
      %v1773 = vpop.f32.mrf.mxu0
      %v1774 = vadd.f32 0.0, %v1773
      %v1775 = vpop.f32.mrf.mxu0
      %v1776 = vadd.f32 0.0, %v1775
      %1777 = vdwg.mxu0
      %v1778 = vadd.f32 %v1752, %v1774
      %v1779 = vadd.f32 %v1753, %v1776
      %v1780 = vld [vmem:[%s1568] sm:$0xf]
      %v1781 = vld [vmem:[%s1568 + $0x4] sm:$0xf]
      %v1782 = vld [vmem:[%s1568 + $0x8] sm:$0x1]
      %v1786 = vunpack.c.l.b16 %v1780
      %v1787 = vunpack.c.l.b16 %v1781
      %v1788 = vunpack.c.l.b16 %v1782
      %v1789 = vpack.c.b16 %v1787, %v1786
      %v1790 = vpack.c.b16 %v1788, %v1788
      %v1792 = vshrl.u32 %v1789, 16
      %v1794 = vshll.u32 %v1789, 16
      %v1796 = vrot.slane %v1794, 1
      %v1797 = vor.u32 %v1792, %v1796
      %v1799 = vshll.u32 %v1790, 16
      %v1801 = vrot.slane %v1799, 1
      %v1802 = vsel %vm230, %v1797, %v1801
      %v1804 = vsel %vm243, %v1802, 0
      %1806 = vmatpush.bf16.msra.mxu0 0
      %1807 = vmatpush.bf16.msra.mxu0 0
      %1808 = vmatpush.bf16.msra.mxu0 0
      %1809 = vmatpush.bf16.msra.mxu0 0
      %1810 = vmatpush.bf16.msra.mxu0 0
      %1811 = vmatpush.bf16.msra.mxu0 0
      %1812 = vmatpush.bf16.msra.mxu0 0
      %1813 = vmatpush.bf16.msra.mxu0 %v374
      %1814 = vmatmul.bf16.gmra.mxu0 %v1804
      %v1815 = vpop.f32.mrf.mxu0
      %v1816 = vadd.f32 0.0, %v1815
      %v1817 = vpop.f32.mrf.mxu0
      %v1818 = vadd.f32 0.0, %v1817
      %1819 = vdwg.mxu0
      %v1820 = vadd.f32 %v1778, %v1816
      %v1821 = vadd.f32 %v1779, %v1818
      %v1822 = vld [vmem:[%s1568] sm:$0xe]
      %v1824 = vunpack.c.l.b16 %v1822
      %v1825 = vpack.c.b16 %v1787, %v1824
      %v1826 = vrot.slane %v1825, 1
      %v1827 = vrot.slane %v1790, 1
      %v1828 = vsel %vm288, %v1826, %v1827
      %v1830 = vsel %vm243, %v1828, 0
      %1832 = vmatpush.bf16.msra.mxu0 0
      %1833 = vmatpush.bf16.msra.mxu0 0
      %1834 = vmatpush.bf16.msra.mxu0 0
      %1835 = vmatpush.bf16.msra.mxu0 0
      %1836 = vmatpush.bf16.msra.mxu0 0
      %1837 = vmatpush.bf16.msra.mxu0 0
      %1838 = vmatpush.bf16.msra.mxu0 0
      %1839 = vmatpush.bf16.msra.mxu0 %v403
      %1840 = vmatmul.bf16.gmra.mxu0 %v1830
      %v1841 = vpop.f32.mrf.mxu0
      %v1842 = vadd.f32 0.0, %v1841
      %v1843 = vpop.f32.mrf.mxu0
      %v1844 = vadd.f32 0.0, %v1843
      %1845 = vdwg.mxu0
      %v1846 = vadd.f32 %v1820, %v1842
      %v1847 = vadd.f32 %v1821, %v1844
      %s1848 = sadd.s32 %s197, 7
      %s1849 = smul.u32 %s1848, 3
      %s1850 = smul.addr %s1849, 4
      %s1851 = scalar_lea.vmem %s184, %s1850
      %v1852 = vld [vmem:[%s1851] sm:$0xf]
      %v1853 = vld [vmem:[%s1851 + $0x4] sm:$0xf]
      %v1856 = vunpack.c.l.b16 %v1852
      %v1857 = vunpack.c.l.b16 %v1853
      %v1858 = vpack.c.b16 %v1857, %v1856
      %v1860 = vsel %vm243, %v1858, 0
      %1862 = vmatpush.bf16.msra.mxu0 0
      %1863 = vmatpush.bf16.msra.mxu0 0
      %1864 = vmatpush.bf16.msra.mxu0 0
      %1865 = vmatpush.bf16.msra.mxu0 0
      %1866 = vmatpush.bf16.msra.mxu0 0
      %1867 = vmatpush.bf16.msra.mxu0 0
      %1868 = vmatpush.bf16.msra.mxu0 0
      %1869 = vmatpush.bf16.msra.mxu0 %v436
      %1870 = vmatmul.bf16.gmra.mxu0 %v1860
      %v1871 = vpop.f32.mrf.mxu0
      %v1872 = vadd.f32 0.0, %v1871
      %v1873 = vpop.f32.mrf.mxu0
      %v1874 = vadd.f32 0.0, %v1873
      %1875 = vdwg.mxu0
      %v1876 = vadd.f32 %v1846, %v1872
      %v1877 = vadd.f32 %v1847, %v1874
      %v1878 = vld [vmem:[%s1851] sm:$0xf]
      %v1879 = vld [vmem:[%s1851 + $0x4] sm:$0xf]
      %v1880 = vld [vmem:[%s1851 + $0x8] sm:$0x1]
      %v1884 = vunpack.c.l.b16 %v1878
      %v1885 = vunpack.c.l.b16 %v1879
      %v1886 = vunpack.c.l.b16 %v1880
      %v1887 = vpack.c.b16 %v1885, %v1884
      %v1888 = vpack.c.b16 %v1886, %v1886
      %v1890 = vshrl.u32 %v1887, 16
      %v1892 = vshll.u32 %v1887, 16
      %v1894 = vrot.slane %v1892, 1
      %v1895 = vor.u32 %v1890, %v1894
      %v1897 = vshll.u32 %v1888, 16
      %v1899 = vrot.slane %v1897, 1
      %v1900 = vsel %vm230, %v1895, %v1899
      %v1902 = vsel %vm243, %v1900, 0
      %1904 = vmatpush.bf16.msra.mxu0 0
      %1905 = vmatpush.bf16.msra.mxu0 0
      %1906 = vmatpush.bf16.msra.mxu0 0
      %1907 = vmatpush.bf16.msra.mxu0 0
      %1908 = vmatpush.bf16.msra.mxu0 0
      %1909 = vmatpush.bf16.msra.mxu0 0
      %1910 = vmatpush.bf16.msra.mxu0 0
      %1911 = vmatpush.bf16.msra.mxu0 %v481
      %1912 = vmatmul.bf16.gmra.mxu0 %v1902
      %v1913 = vpop.f32.mrf.mxu0
      %v1914 = vadd.f32 0.0, %v1913
      %v1915 = vpop.f32.mrf.mxu0
      %v1916 = vadd.f32 0.0, %v1915
      %1917 = vdwg.mxu0
      %v1918 = vadd.f32 %v1876, %v1914
      %v1919 = vadd.f32 %v1877, %v1916
      %v1920 = vld [vmem:[%s1851] sm:$0xe]
      %v1922 = vunpack.c.l.b16 %v1920
      %v1923 = vpack.c.b16 %v1885, %v1922
      %v1924 = vrot.slane %v1923, 1
      %v1925 = vrot.slane %v1888, 1
      %v1926 = vsel %vm288, %v1924, %v1925
      %v1928 = vsel %vm243, %v1926, 0
      %1930 = vmatpush.bf16.msra.mxu0 0
      %1931 = vmatpush.bf16.msra.mxu0 0
      %1932 = vmatpush.bf16.msra.mxu0 0
      %1933 = vmatpush.bf16.msra.mxu0 0
      %1934 = vmatpush.bf16.msra.mxu0 0
      %1935 = vmatpush.bf16.msra.mxu0 0
      %1936 = vmatpush.bf16.msra.mxu0 0
      %1937 = vmatpush.bf16.msra.mxu0 %v510
      %1938 = vmatmul.bf16.gmra.mxu0 %v1928
      %v1939 = vpop.f32.mrf.mxu0
      %v1940 = vadd.f32 0.0, %v1939
      %v1941 = vpop.f32.mrf.mxu0
      %v1942 = vadd.f32 0.0, %v1941
      %1943 = vdwg.mxu0
      %v1944 = vadd.f32 %v1918, %v1940
      %v1945 = vadd.f32 %v1919, %v1942
      %v1946 = vadd.f32 %v1944, %v529
      %v1947 = vadd.f32 %v1945, %v529
      %v1948 = vmax.f32 %v1946, 0.0
      %v1949 = vmax.f32 %v1947, 0.0
      %v1950 = vpack.c.bf16 %v1948, %v1948
      %v1951 = vpack.c.bf16 %v1949, %v1949
      %s1952 = scalar_lea.vmem %s194, 40
      %1953 = vst.msk [vmem:[%s1952] sm:$0xf] %vm537, %v1950
      %1954 = vst.msk [vmem:[%s1952 + $0x4] sm:$0xf] %vm537, %v1951
      %v1955 = vld [vmem:[%s1568] sm:$0xf]
      %v1956 = vld [vmem:[%s1568 + $0x4] sm:$0xf]
      %v1957 = vld [vmem:[%s1568 + $0x8] sm:$0x1]
      %v1961 = vunpack.c.l.b16 %v1955
      %v1962 = vunpack.c.l.b16 %v1956
      %v1963 = vunpack.c.l.b16 %v1957
      %v1964 = vpack.c.b16 %v1962, %v1961
      %v1965 = vpack.c.b16 %v1963, %v1963
      %v1967 = vshrl.u32 %v1964, 16
      %v1969 = vshll.u32 %v1964, 16
      %v1971 = vrot.slane %v1969, 1
      %v1972 = vor.u32 %v1967, %v1971
      %v1974 = vshll.u32 %v1965, 16
      %v1976 = vrot.slane %v1974, 1
      %v1977 = vsel %vm230, %v1972, %v1976
      %v1979 = vsel %vm243, %v1977, 0
      %1981 = vmatpush.bf16.msra.mxu0 0
      %1982 = vmatpush.bf16.msra.mxu0 0
      %1983 = vmatpush.bf16.msra.mxu0 0
      %1984 = vmatpush.bf16.msra.mxu0 0
      %1985 = vmatpush.bf16.msra.mxu0 0
      %1986 = vmatpush.bf16.msra.mxu0 0
      %1987 = vmatpush.bf16.msra.mxu0 0
      %1988 = vmatpush.bf16.msra.mxu0 %v249
      %1989 = vmatmul.bf16.gmra.mxu0 %v1979
      %v1990 = vpop.f32.mrf.mxu0
      %v1991 = vadd.f32 0.0, %v1990
      %v1992 = vpop.f32.mrf.mxu0
      %v1993 = vadd.f32 0.0, %v1992
      %1994 = vdwg.mxu0
      %v1995 = vsel %vm243, %v1964, 0
      %1997 = vmatpush.bf16.msra.mxu0 0
      %1998 = vmatpush.bf16.msra.mxu0 0
      %1999 = vmatpush.bf16.msra.mxu0 0
      %2000 = vmatpush.bf16.msra.mxu0 0
      %2001 = vmatpush.bf16.msra.mxu0 0
      %2002 = vmatpush.bf16.msra.mxu0 0
      %2003 = vmatpush.bf16.msra.mxu0 0
      %2004 = vmatpush.bf16.msra.mxu0 %v268
      %2005 = vmatmul.bf16.gmra.mxu0 %v1995
      %v2006 = vpop.f32.mrf.mxu0
      %v2007 = vadd.f32 %v1991, %v2006
      %v2008 = vpop.f32.mrf.mxu0
      %v2009 = vadd.f32 %v1993, %v2008
      %2010 = vdwg.mxu0
      %v2011 = vld [vmem:[%s1568] sm:$0xe]
      %v2013 = vunpack.c.l.b16 %v2011
      %v2014 = vpack.c.b16 %v1962, %v2013
      %v2015 = vrot.slane %v2014, 1
      %v2016 = vrot.slane %v1965, 1
      %v2017 = vsel %vm288, %v2015, %v2016
      %v2019 = vsel %vm243, %v2017, 0
      %2021 = vmatpush.bf16.msra.mxu0 0
      %2022 = vmatpush.bf16.msra.mxu0 0
      %2023 = vmatpush.bf16.msra.mxu0 0
      %2024 = vmatpush.bf16.msra.mxu0 0
      %2025 = vmatpush.bf16.msra.mxu0 0
      %2026 = vmatpush.bf16.msra.mxu0 0
      %2027 = vmatpush.bf16.msra.mxu0 0
      %2028 = vmatpush.bf16.msra.mxu0 %v296
      %2029 = vmatmul.bf16.gmra.mxu0 %v2019
      %v2030 = vpop.f32.mrf.mxu0
      %v2031 = vadd.f32 0.0, %v2030
      %v2032 = vpop.f32.mrf.mxu0
      %v2033 = vadd.f32 0.0, %v2032
      %2034 = vdwg.mxu0
      %v2035 = vadd.f32 %v2007, %v2031
      %v2036 = vadd.f32 %v2009, %v2033
      %v2037 = vld [vmem:[%s1851] sm:$0xf]
      %v2038 = vld [vmem:[%s1851 + $0x4] sm:$0xf]
      %v2041 = vunpack.c.l.b16 %v2037
      %v2042 = vunpack.c.l.b16 %v2038
      %v2043 = vpack.c.b16 %v2042, %v2041
      %v2045 = vsel %vm243, %v2043, 0
      %2047 = vmatpush.bf16.msra.mxu0 0
      %2048 = vmatpush.bf16.msra.mxu0 0
      %2049 = vmatpush.bf16.msra.mxu0 0
      %2050 = vmatpush.bf16.msra.mxu0 0
      %2051 = vmatpush.bf16.msra.mxu0 0
      %2052 = vmatpush.bf16.msra.mxu0 0
      %2053 = vmatpush.bf16.msra.mxu0 0
      %2054 = vmatpush.bf16.msra.mxu0 %v329
      %2055 = vmatmul.bf16.gmra.mxu0 %v2045
      %v2056 = vpop.f32.mrf.mxu0
      %v2057 = vadd.f32 0.0, %v2056
      %v2058 = vpop.f32.mrf.mxu0
      %v2059 = vadd.f32 0.0, %v2058
      %2060 = vdwg.mxu0
      %v2061 = vadd.f32 %v2035, %v2057
      %v2062 = vadd.f32 %v2036, %v2059
      %v2063 = vld [vmem:[%s1851] sm:$0xf]
      %v2064 = vld [vmem:[%s1851 + $0x4] sm:$0xf]
      %v2065 = vld [vmem:[%s1851 + $0x8] sm:$0x1]
      %v2069 = vunpack.c.l.b16 %v2063
      %v2070 = vunpack.c.l.b16 %v2064
      %v2071 = vunpack.c.l.b16 %v2065
      %v2072 = vpack.c.b16 %v2070, %v2069
      %v2073 = vpack.c.b16 %v2071, %v2071
      %v2075 = vshrl.u32 %v2072, 16
      %v2077 = vshll.u32 %v2072, 16
      %v2079 = vrot.slane %v2077, 1
      %v2080 = vor.u32 %v2075, %v2079
      %v2082 = vshll.u32 %v2073, 16
      %v2084 = vrot.slane %v2082, 1
      %v2085 = vsel %vm230, %v2080, %v2084
      %v2087 = vsel %vm243, %v2085, 0
      %2089 = vmatpush.bf16.msra.mxu0 0
      %2090 = vmatpush.bf16.msra.mxu0 0
      %2091 = vmatpush.bf16.msra.mxu0 0
      %2092 = vmatpush.bf16.msra.mxu0 0
      %2093 = vmatpush.bf16.msra.mxu0 0
      %2094 = vmatpush.bf16.msra.mxu0 0
      %2095 = vmatpush.bf16.msra.mxu0 0
      %2096 = vmatpush.bf16.msra.mxu0 %v374
      %2097 = vmatmul.bf16.gmra.mxu0 %v2087
      %v2098 = vpop.f32.mrf.mxu0
      %v2099 = vadd.f32 0.0, %v2098
      %v2100 = vpop.f32.mrf.mxu0
      %v2101 = vadd.f32 0.0, %v2100
      %2102 = vdwg.mxu0
      %v2103 = vadd.f32 %v2061, %v2099
      %v2104 = vadd.f32 %v2062, %v2101
      %v2105 = vld [vmem:[%s1851] sm:$0xe]
      %v2107 = vunpack.c.l.b16 %v2105
      %v2108 = vpack.c.b16 %v2070, %v2107
      %v2109 = vrot.slane %v2108, 1
      %v2110 = vrot.slane %v2073, 1
      %v2111 = vsel %vm288, %v2109, %v2110
      %v2113 = vsel %vm243, %v2111, 0
      %2115 = vmatpush.bf16.msra.mxu0 0
      %2116 = vmatpush.bf16.msra.mxu0 0
      %2117 = vmatpush.bf16.msra.mxu0 0
      %2118 = vmatpush.bf16.msra.mxu0 0
      %2119 = vmatpush.bf16.msra.mxu0 0
      %2120 = vmatpush.bf16.msra.mxu0 0
      %2121 = vmatpush.bf16.msra.mxu0 0
      %2122 = vmatpush.bf16.msra.mxu0 %v403
      %2123 = vmatmul.bf16.gmra.mxu0 %v2113
      %v2124 = vpop.f32.mrf.mxu0
      %v2125 = vadd.f32 0.0, %v2124
      %v2126 = vpop.f32.mrf.mxu0
      %v2127 = vadd.f32 0.0, %v2126
      %2128 = vdwg.mxu0
      %v2129 = vadd.f32 %v2103, %v2125
      %v2130 = vadd.f32 %v2104, %v2127
      %s2131 = sadd.s32 %s197, 8
      %s2132 = smul.u32 %s2131, 3
      %s2133 = smul.addr %s2132, 4
      %s2134 = scalar_lea.vmem %s184, %s2133
      %v2135 = vld [vmem:[%s2134] sm:$0xf]
      %v2136 = vld [vmem:[%s2134 + $0x4] sm:$0xf]
      %v2139 = vunpack.c.l.b16 %v2135
      %v2140 = vunpack.c.l.b16 %v2136
      %v2141 = vpack.c.b16 %v2140, %v2139
      %v2143 = vsel %vm243, %v2141, 0
      %2145 = vmatpush.bf16.msra.mxu0 0
      %2146 = vmatpush.bf16.msra.mxu0 0
      %2147 = vmatpush.bf16.msra.mxu0 0
      %2148 = vmatpush.bf16.msra.mxu0 0
      %2149 = vmatpush.bf16.msra.mxu0 0
      %2150 = vmatpush.bf16.msra.mxu0 0
      %2151 = vmatpush.bf16.msra.mxu0 0
      %2152 = vmatpush.bf16.msra.mxu0 %v436
      %2153 = vmatmul.bf16.gmra.mxu0 %v2143
      %v2154 = vpop.f32.mrf.mxu0
      %v2155 = vadd.f32 0.0, %v2154
      %v2156 = vpop.f32.mrf.mxu0
      %v2157 = vadd.f32 0.0, %v2156
      %2158 = vdwg.mxu0
      %v2159 = vadd.f32 %v2129, %v2155
      %v2160 = vadd.f32 %v2130, %v2157
      %v2161 = vld [vmem:[%s2134] sm:$0xf]
      %v2162 = vld [vmem:[%s2134 + $0x4] sm:$0xf]
      %v2163 = vld [vmem:[%s2134 + $0x8] sm:$0x1]
      %v2167 = vunpack.c.l.b16 %v2161
      %v2168 = vunpack.c.l.b16 %v2162
      %v2169 = vunpack.c.l.b16 %v2163
      %v2170 = vpack.c.b16 %v2168, %v2167
      %v2171 = vpack.c.b16 %v2169, %v2169
      %v2173 = vshrl.u32 %v2170, 16
      %v2175 = vshll.u32 %v2170, 16
      %v2177 = vrot.slane %v2175, 1
      %v2178 = vor.u32 %v2173, %v2177
      %v2180 = vshll.u32 %v2171, 16
      %v2182 = vrot.slane %v2180, 1
      %v2183 = vsel %vm230, %v2178, %v2182
      %v2185 = vsel %vm243, %v2183, 0
      %2187 = vmatpush.bf16.msra.mxu0 0
      %2188 = vmatpush.bf16.msra.mxu0 0
      %2189 = vmatpush.bf16.msra.mxu0 0
      %2190 = vmatpush.bf16.msra.mxu0 0
      %2191 = vmatpush.bf16.msra.mxu0 0
      %2192 = vmatpush.bf16.msra.mxu0 0
      %2193 = vmatpush.bf16.msra.mxu0 0
      %2194 = vmatpush.bf16.msra.mxu0 %v481
      %2195 = vmatmul.bf16.gmra.mxu0 %v2185
      %v2196 = vpop.f32.mrf.mxu0
      %v2197 = vadd.f32 0.0, %v2196
      %v2198 = vpop.f32.mrf.mxu0
      %v2199 = vadd.f32 0.0, %v2198
      %2200 = vdwg.mxu0
      %v2201 = vadd.f32 %v2159, %v2197
      %v2202 = vadd.f32 %v2160, %v2199
      %v2203 = vld [vmem:[%s2134] sm:$0xe]
      %v2205 = vunpack.c.l.b16 %v2203
      %v2206 = vpack.c.b16 %v2168, %v2205
      %v2207 = vrot.slane %v2206, 1
      %v2208 = vrot.slane %v2171, 1
      %v2209 = vsel %vm288, %v2207, %v2208
      %v2211 = vsel %vm243, %v2209, 0
      %2213 = vmatpush.bf16.msra.mxu0 0
      %2214 = vmatpush.bf16.msra.mxu0 0
      %2215 = vmatpush.bf16.msra.mxu0 0
      %2216 = vmatpush.bf16.msra.mxu0 0
      %2217 = vmatpush.bf16.msra.mxu0 0
      %2218 = vmatpush.bf16.msra.mxu0 0
      %2219 = vmatpush.bf16.msra.mxu0 0
      %2220 = vmatpush.bf16.msra.mxu0 %v510
      %2221 = vmatmul.bf16.gmra.mxu0 %v2211
      %v2222 = vpop.f32.mrf.mxu0
      %v2223 = vadd.f32 0.0, %v2222
      %v2224 = vpop.f32.mrf.mxu0
      %v2225 = vadd.f32 0.0, %v2224
      %2226 = vdwg.mxu0
      %v2227 = vadd.f32 %v2201, %v2223
      %v2228 = vadd.f32 %v2202, %v2225
      %v2229 = vadd.f32 %v2227, %v529
      %v2230 = vadd.f32 %v2228, %v529
      %v2231 = vmax.f32 %v2229, 0.0
      %v2232 = vmax.f32 %v2230, 0.0
      %v2233 = vpack.c.bf16 %v2231, %v2231
      %v2234 = vpack.c.bf16 %v2232, %v2232
      %s2235 = scalar_lea.vmem %s194, 48
      %2236 = vst.msk [vmem:[%s2235] sm:$0xf] %vm537, %v2233
      %2237 = vst.msk [vmem:[%s2235 + $0x4] sm:$0xf] %vm537, %v2234
      %v2238 = vld [vmem:[%s1851] sm:$0xf]
      %v2239 = vld [vmem:[%s1851 + $0x4] sm:$0xf]
      %v2240 = vld [vmem:[%s1851 + $0x8] sm:$0x1]
      %v2244 = vunpack.c.l.b16 %v2238
      %v2245 = vunpack.c.l.b16 %v2239
      %v2246 = vunpack.c.l.b16 %v2240
      %v2247 = vpack.c.b16 %v2245, %v2244
      %v2248 = vpack.c.b16 %v2246, %v2246
      %v2250 = vshrl.u32 %v2247, 16
      %v2252 = vshll.u32 %v2247, 16
      %v2254 = vrot.slane %v2252, 1
      %v2255 = vor.u32 %v2250, %v2254
      %v2257 = vshll.u32 %v2248, 16
      %v2259 = vrot.slane %v2257, 1
      %v2260 = vsel %vm230, %v2255, %v2259
      %v2262 = vsel %vm243, %v2260, 0
      %2264 = vmatpush.bf16.msra.mxu0 0
      %2265 = vmatpush.bf16.msra.mxu0 0
      %2266 = vmatpush.bf16.msra.mxu0 0
      %2267 = vmatpush.bf16.msra.mxu0 0
      %2268 = vmatpush.bf16.msra.mxu0 0
      %2269 = vmatpush.bf16.msra.mxu0 0
      %2270 = vmatpush.bf16.msra.mxu0 0
      %2271 = vmatpush.bf16.msra.mxu0 %v249
      %2272 = vmatmul.bf16.gmra.mxu0 %v2262
      %v2273 = vpop.f32.mrf.mxu0
      %v2274 = vadd.f32 0.0, %v2273
      %v2275 = vpop.f32.mrf.mxu0
      %v2276 = vadd.f32 0.0, %v2275
      %2277 = vdwg.mxu0
      %v2278 = vsel %vm243, %v2247, 0
      %2280 = vmatpush.bf16.msra.mxu0 0
      %2281 = vmatpush.bf16.msra.mxu0 0
      %2282 = vmatpush.bf16.msra.mxu0 0
      %2283 = vmatpush.bf16.msra.mxu0 0
      %2284 = vmatpush.bf16.msra.mxu0 0
      %2285 = vmatpush.bf16.msra.mxu0 0
      %2286 = vmatpush.bf16.msra.mxu0 0
      %2287 = vmatpush.bf16.msra.mxu0 %v268
      %2288 = vmatmul.bf16.gmra.mxu0 %v2278
      %v2289 = vpop.f32.mrf.mxu0
      %v2290 = vadd.f32 %v2274, %v2289
      %v2291 = vpop.f32.mrf.mxu0
      %v2292 = vadd.f32 %v2276, %v2291
      %2293 = vdwg.mxu0
      %v2294 = vld [vmem:[%s1851] sm:$0xe]
      %v2296 = vunpack.c.l.b16 %v2294
      %v2297 = vpack.c.b16 %v2245, %v2296
      %v2298 = vrot.slane %v2297, 1
      %v2299 = vrot.slane %v2248, 1
      %v2300 = vsel %vm288, %v2298, %v2299
      %v2302 = vsel %vm243, %v2300, 0
      %2304 = vmatpush.bf16.msra.mxu0 0
      %2305 = vmatpush.bf16.msra.mxu0 0
      %2306 = vmatpush.bf16.msra.mxu0 0
      %2307 = vmatpush.bf16.msra.mxu0 0
      %2308 = vmatpush.bf16.msra.mxu0 0
      %2309 = vmatpush.bf16.msra.mxu0 0
      %2310 = vmatpush.bf16.msra.mxu0 0
      %2311 = vmatpush.bf16.msra.mxu0 %v296
      %2312 = vmatmul.bf16.gmra.mxu0 %v2302
      %v2313 = vpop.f32.mrf.mxu0
      %v2314 = vadd.f32 0.0, %v2313
      %v2315 = vpop.f32.mrf.mxu0
      %v2316 = vadd.f32 0.0, %v2315
      %2317 = vdwg.mxu0
      %v2318 = vadd.f32 %v2290, %v2314
      %v2319 = vadd.f32 %v2292, %v2316
      %v2320 = vld [vmem:[%s2134] sm:$0xf]
      %v2321 = vld [vmem:[%s2134 + $0x4] sm:$0xf]
      %v2324 = vunpack.c.l.b16 %v2320
      %v2325 = vunpack.c.l.b16 %v2321
      %v2326 = vpack.c.b16 %v2325, %v2324
      %v2328 = vsel %vm243, %v2326, 0
      %2330 = vmatpush.bf16.msra.mxu0 0
      %2331 = vmatpush.bf16.msra.mxu0 0
      %2332 = vmatpush.bf16.msra.mxu0 0
      %2333 = vmatpush.bf16.msra.mxu0 0
      %2334 = vmatpush.bf16.msra.mxu0 0
      %2335 = vmatpush.bf16.msra.mxu0 0
      %2336 = vmatpush.bf16.msra.mxu0 0
      %2337 = vmatpush.bf16.msra.mxu0 %v329
      %2338 = vmatmul.bf16.gmra.mxu0 %v2328
      %v2339 = vpop.f32.mrf.mxu0
      %v2340 = vadd.f32 0.0, %v2339
      %v2341 = vpop.f32.mrf.mxu0
      %v2342 = vadd.f32 0.0, %v2341
      %2343 = vdwg.mxu0
      %v2344 = vadd.f32 %v2318, %v2340
      %v2345 = vadd.f32 %v2319, %v2342
      %v2346 = vld [vmem:[%s2134] sm:$0xf]
      %v2347 = vld [vmem:[%s2134 + $0x4] sm:$0xf]
      %v2348 = vld [vmem:[%s2134 + $0x8] sm:$0x1]
      %v2352 = vunpack.c.l.b16 %v2346
      %v2353 = vunpack.c.l.b16 %v2347
      %v2354 = vunpack.c.l.b16 %v2348
      %v2355 = vpack.c.b16 %v2353, %v2352
      %v2356 = vpack.c.b16 %v2354, %v2354
      %v2358 = vshrl.u32 %v2355, 16
      %v2360 = vshll.u32 %v2355, 16
      %v2362 = vrot.slane %v2360, 1
      %v2363 = vor.u32 %v2358, %v2362
      %v2365 = vshll.u32 %v2356, 16
      %v2367 = vrot.slane %v2365, 1
      %v2368 = vsel %vm230, %v2363, %v2367
      %v2370 = vsel %vm243, %v2368, 0
      %2372 = vmatpush.bf16.msra.mxu0 0
      %2373 = vmatpush.bf16.msra.mxu0 0
      %2374 = vmatpush.bf16.msra.mxu0 0
      %2375 = vmatpush.bf16.msra.mxu0 0
      %2376 = vmatpush.bf16.msra.mxu0 0
      %2377 = vmatpush.bf16.msra.mxu0 0
      %2378 = vmatpush.bf16.msra.mxu0 0
      %2379 = vmatpush.bf16.msra.mxu0 %v374
      %2380 = vmatmul.bf16.gmra.mxu0 %v2370
      %v2381 = vpop.f32.mrf.mxu0
      %v2382 = vadd.f32 0.0, %v2381
      %v2383 = vpop.f32.mrf.mxu0
      %v2384 = vadd.f32 0.0, %v2383
      %2385 = vdwg.mxu0
      %v2386 = vadd.f32 %v2344, %v2382
      %v2387 = vadd.f32 %v2345, %v2384
      %v2388 = vld [vmem:[%s2134] sm:$0xe]
      %v2390 = vunpack.c.l.b16 %v2388
      %v2391 = vpack.c.b16 %v2353, %v2390
      %v2392 = vrot.slane %v2391, 1
      %v2393 = vrot.slane %v2356, 1
      %v2394 = vsel %vm288, %v2392, %v2393
      %v2396 = vsel %vm243, %v2394, 0
      %2398 = vmatpush.bf16.msra.mxu0 0
      %2399 = vmatpush.bf16.msra.mxu0 0
      %2400 = vmatpush.bf16.msra.mxu0 0
      %2401 = vmatpush.bf16.msra.mxu0 0
      %2402 = vmatpush.bf16.msra.mxu0 0
      %2403 = vmatpush.bf16.msra.mxu0 0
      %2404 = vmatpush.bf16.msra.mxu0 0
      %2405 = vmatpush.bf16.msra.mxu0 %v403
      %2406 = vmatmul.bf16.gmra.mxu0 %v2396
      %v2407 = vpop.f32.mrf.mxu0
      %v2408 = vadd.f32 0.0, %v2407
      %v2409 = vpop.f32.mrf.mxu0
      %v2410 = vadd.f32 0.0, %v2409
      %2411 = vdwg.mxu0
      %v2412 = vadd.f32 %v2386, %v2408
      %v2413 = vadd.f32 %v2387, %v2410
      %s2414 = sadd.s32 %s197, 9
      %s2415 = smul.u32 %s2414, 3
      %s2416 = smul.addr %s2415, 4
      %s2417 = scalar_lea.vmem %s184, %s2416
      %v2418 = vld [vmem:[%s2417] sm:$0xf]
      %v2419 = vld [vmem:[%s2417 + $0x4] sm:$0xf]
      %v2422 = vunpack.c.l.b16 %v2418
      %v2423 = vunpack.c.l.b16 %v2419
      %v2424 = vpack.c.b16 %v2423, %v2422
      %v2426 = vsel %vm243, %v2424, 0
      %2428 = vmatpush.bf16.msra.mxu0 0
      %2429 = vmatpush.bf16.msra.mxu0 0
      %2430 = vmatpush.bf16.msra.mxu0 0
      %2431 = vmatpush.bf16.msra.mxu0 0
      %2432 = vmatpush.bf16.msra.mxu0 0
      %2433 = vmatpush.bf16.msra.mxu0 0
      %2434 = vmatpush.bf16.msra.mxu0 0
      %2435 = vmatpush.bf16.msra.mxu0 %v436
      %2436 = vmatmul.bf16.gmra.mxu0 %v2426
      %v2437 = vpop.f32.mrf.mxu0
      %v2438 = vadd.f32 0.0, %v2437
      %v2439 = vpop.f32.mrf.mxu0
      %v2440 = vadd.f32 0.0, %v2439
      %2441 = vdwg.mxu0
      %v2442 = vadd.f32 %v2412, %v2438
      %v2443 = vadd.f32 %v2413, %v2440
      %v2444 = vld [vmem:[%s2417] sm:$0xf]
      %v2445 = vld [vmem:[%s2417 + $0x4] sm:$0xf]
      %v2446 = vld [vmem:[%s2417 + $0x8] sm:$0x1]
      %v2450 = vunpack.c.l.b16 %v2444
      %v2451 = vunpack.c.l.b16 %v2445
      %v2452 = vunpack.c.l.b16 %v2446
      %v2453 = vpack.c.b16 %v2451, %v2450
      %v2454 = vpack.c.b16 %v2452, %v2452
      %v2456 = vshrl.u32 %v2453, 16
      %v2458 = vshll.u32 %v2453, 16
      %v2460 = vrot.slane %v2458, 1
      %v2461 = vor.u32 %v2456, %v2460
      %v2463 = vshll.u32 %v2454, 16
      %v2465 = vrot.slane %v2463, 1
      %v2466 = vsel %vm230, %v2461, %v2465
      %v2468 = vsel %vm243, %v2466, 0
      %2470 = vmatpush.bf16.msra.mxu0 0
      %2471 = vmatpush.bf16.msra.mxu0 0
      %2472 = vmatpush.bf16.msra.mxu0 0
      %2473 = vmatpush.bf16.msra.mxu0 0
      %2474 = vmatpush.bf16.msra.mxu0 0
      %2475 = vmatpush.bf16.msra.mxu0 0
      %2476 = vmatpush.bf16.msra.mxu0 0
      %2477 = vmatpush.bf16.msra.mxu0 %v481
      %2478 = vmatmul.bf16.gmra.mxu0 %v2468
      %v2479 = vpop.f32.mrf.mxu0
      %v2480 = vadd.f32 0.0, %v2479
      %v2481 = vpop.f32.mrf.mxu0
      %v2482 = vadd.f32 0.0, %v2481
      %2483 = vdwg.mxu0
      %v2484 = vadd.f32 %v2442, %v2480
      %v2485 = vadd.f32 %v2443, %v2482
      %v2486 = vld [vmem:[%s2417] sm:$0xe]
      %v2488 = vunpack.c.l.b16 %v2486
      %v2489 = vpack.c.b16 %v2451, %v2488
      %v2490 = vrot.slane %v2489, 1
      %v2491 = vrot.slane %v2454, 1
      %v2492 = vsel %vm288, %v2490, %v2491
      %v2494 = vsel %vm243, %v2492, 0
      %2496 = vmatpush.bf16.msra.mxu0 0
      %2497 = vmatpush.bf16.msra.mxu0 0
      %2498 = vmatpush.bf16.msra.mxu0 0
      %2499 = vmatpush.bf16.msra.mxu0 0
      %2500 = vmatpush.bf16.msra.mxu0 0
      %2501 = vmatpush.bf16.msra.mxu0 0
      %2502 = vmatpush.bf16.msra.mxu0 0
      %2503 = vmatpush.bf16.msra.mxu0 %v510
      %2504 = vmatmul.bf16.gmra.mxu0 %v2494
      %v2505 = vpop.f32.mrf.mxu0
      %v2506 = vadd.f32 0.0, %v2505
      %v2507 = vpop.f32.mrf.mxu0
      %v2508 = vadd.f32 0.0, %v2507
      %2509 = vdwg.mxu0
      %v2510 = vadd.f32 %v2484, %v2506
      %v2511 = vadd.f32 %v2485, %v2508
      %v2512 = vadd.f32 %v2510, %v529
      %v2513 = vadd.f32 %v2511, %v529
      %v2514 = vmax.f32 %v2512, 0.0
      %v2515 = vmax.f32 %v2513, 0.0
      %v2516 = vpack.c.bf16 %v2514, %v2514
      %v2517 = vpack.c.bf16 %v2515, %v2515
      %s2518 = scalar_lea.vmem %s194, 56
      %2519 = vst.msk [vmem:[%s2518] sm:$0xf] %vm537, %v2516
      %2520 = vst.msk [vmem:[%s2518 + $0x4] sm:$0xf] %vm537, %v2517
      %s2521 = smul.u32 8, %s19
      %p2522 = scmp.lt.s32.totalorder %s18, 1
      %s2523 = scalar_select %p2522, %s18, 1
      %p2524 = scmp.lt.s32.totalorder %s2521, 15
      %s2525 = scalar_select %p2524, %s2521, 15
      %s2526 = smul.addr %s2525, 2
      %s2527 = smul.addr %s2523, 32
      %s2528 = sadd.s32 %s2526, %s2527
      %s2529 = smul.addr %s2528, 4
      %s2530 = scalar_lea.vmem %s3, %s2529
      // Predicated region
      $region33: #{tpu_custom_call.1} parent=31 // pred_check
        %p2531 = pneg %p114
      $region34: #{tpu_custom_call.1} parent=31 // pred_check_branch
        %2533 = sbr.rel (%p2531) target = $region36
      $region35: #{tpu_custom_call.1} parent=31 // pred_region
        %s2534 = smul.u32 8, %s19
      $region36: #{tpu_custom_call.1} parent=31 // pred_fallthru
        _
    $region32: #{tpu_custom_call.1} parent=5 // pred_fallthru
      _
    %p2535 = scmp.le.s32.totalorder 2, %s9
    // Predicated region
    $region37: #{tpu_custom_call.1} parent=5 // pred_check
      %p2536 = pneg %p2535
    $region38: #{tpu_custom_call.1} parent=5 // pred_check_branch
      %2538 = sbr.rel (%p2536) target = $region40
    $region39: #{tpu_custom_call.1} parent=5 // pred_region
      %s2539 = ssub.s32 %s9, 2
      // Predicated region
      $region41: #{tpu_custom_call.1} parent=39 // pred_check
        %p2540 = pneg %p120
      $region42: #{tpu_custom_call.1} parent=39 // pred_check_branch
        %2542 = sbr.rel (%p2540) target = $region44
      $region43: #{tpu_custom_call.1} parent=39 // pred_region
        %s2543 = smul.u32 8, %s21
        %p2544 = scmp.lt.s32.totalorder %s20, 1
        %s2545 = scalar_select %p2544, %s20, 1
        %p2546 = scmp.lt.s32.totalorder %s2543, 15
        %s2547 = scalar_select %p2546, %s2543, 15
        %s2548 = smul.addr %s2547, 2
        %s2549 = smul.addr %s2545, 32
        %s2550 = sadd.s32 %s2548, %s2549
        %s2551 = smul.addr %s2550, 4
        %s2552 = scalar_lea.vmem %s3, %s2551
      $region44: #{tpu_custom_call.1} parent=39 // pred_fallthru
        _
    $region40: #{tpu_custom_call.1} parent=5 // pred_fallthru
      _
  $region6: #{tpu_custom_call.1} parent=0 // loop_footer
    %s13 = sadd.s32 1, %s9
  $region7: #{tpu_custom_call.1} parent=0 // loop_footer_branch
    %8 = sbr.rel target = $region3
  $region8: #{tpu_custom_call.1} parent=0 // loop_exit
    _

</llo_original>
